<compile_context>
chip_gen: v6e
topology: v6e:2x2x1
jax: 0.10.0
libtpu: 0.0.40
codegen_flags: <defaults>
</compile_context>

<pallas_src>
import functools

import jax
import jax.numpy as jnp
from jax import lax
from jax.experimental import pallas as pl
from jax.experimental.pallas import tpu as pltpu


# ---------------------------------------------------------------------------
# Pallas kernel: fused (patches @ weight) + bias + LeakyReLU epilogue
# ---------------------------------------------------------------------------
def _matmul_bias_act_kernel(x_ref, w_ref, b_ref, o_ref, *, neg_slope, apply_act):
    # x_ref: (tm, K) bf16 | w_ref: (K, N) bf16 | b_ref: (1, N) f32 | o_ref: (tm, N) f32
    acc = jnp.dot(x_ref[...], w_ref[...], preferred_element_type=jnp.float32)
    acc = acc + b_ref[...]
    if apply_act:
        acc = jnp.where(acc >= 0.0, acc, acc * neg_slope)
    o_ref[...] = acc.astype(o_ref.dtype)


def _round_up(x, m):
    return (x + m - 1) // m * m


def fused_matmul_bias_act(x, w, b, *, neg_slope=0.2, apply_act=True, tm=256):
    """y = act(x @ w + b). x:(M,K) f32, w:(K,N) f32, b:(N,) f32 -> (M,N) f32."""
    M, K = x.shape
    K2, N = w.shape
    assert K == K2
    # Pad M (sublane dim) so the M-tile evenly divides it.
    Mp = _round_up(M, 8)
    tile_m = min(tm, Mp)
    Mp = _round_up(Mp, tile_m)
    if Mp != M:
        x = jnp.pad(x, ((0, Mp - M), (0, 0)))
    grid = (Mp // tile_m,)

    kernel = functools.partial(_matmul_bias_act_kernel,
                               neg_slope=neg_slope, apply_act=apply_act)
    out = pl.pallas_call(
        kernel,
        out_shape=jax.ShapeDtypeStruct((Mp, N), jnp.float32),
        grid_spec=pltpu.PrefetchScalarGridSpec(
            num_scalar_prefetch=0,
            grid=grid,
            in_specs=[
                pl.BlockSpec((tile_m, K), lambda i: (i, 0)),  # patch tile
                pl.BlockSpec((K, N), lambda i: (0, 0)),       # weight (VMEM resident)
                pl.BlockSpec((1, N), lambda i: (0, 0)),       # bias
            ],
            out_specs=pl.BlockSpec((tile_m, N), lambda i: (i, 0)),
        ),
        compiler_params=pltpu.CompilerParams(
            dimension_semantics=("parallel",),
            vmem_limit_bytes=32 * 1024 * 1024,
        ),
    )(x.astype(jnp.bfloat16), w.astype(jnp.bfloat16),
      b.reshape(1, N).astype(jnp.float32))
    return out[:M]


# ---------------------------------------------------------------------------
# Wrapper-side data prep
# ---------------------------------------------------------------------------
def _im2col_4x4_s2_p1(x_nhwc):
    """im2col for a 4x4 / stride-2 / pad-1 conv. Returns ((B*OH*OW, 16*C), dims)."""
    B, H, W, C = x_nhwc.shape
    OH, OW = H // 2, W // 2
    xp = jnp.pad(x_nhwc, ((0, 0), (1, 1), (1, 1), (0, 0)))
    taps = []
    for kh in range(4):
        for kw in range(4):
            taps.append(xp[:, kh:kh + 2 * OH:2, kw:kw + 2 * OW:2, :])
    patches = jnp.concatenate(taps, axis=-1)            # (B, OH, OW, 16*C)
    return patches.reshape(B * OH * OW, 16 * C), (B, OH, OW)


def spectral_normalize(w, u, n_iter=1, eps=1e-12):
    """torch.nn.utils.spectral_norm-style weight scaling: W / sigma_max(W)."""
    cout = w.shape[0]
    wm = w.reshape(cout, -1)
    v = None
    for _ in range(n_iter):
        v = wm.T @ u
        v = v / (jnp.linalg.norm(v) + eps)
        u = wm @ v
        u = u / (jnp.linalg.norm(u) + eps)
    sigma = jnp.dot(u, wm @ v)
    return w / sigma


# ---------------------------------------------------------------------------
# Discriminator forward (Pallas path)
# ---------------------------------------------------------------------------
def discriminator_forward(x_nchw, params, *, neg_slope=0.2):
    y = jnp.transpose(x_nchw, (0, 2, 3, 1)).astype(jnp.float32)   # NHWC
    convs = [
        (params["w1"], params["b1"]),
        (params["w2_sn"], None),
        (params["w3_sn"], None),
        (params["w4_sn"], None),
    ]
    for w, b in convs:
        cout = w.shape[0]
        patches, (B, OH, OW) = _im2col_4x4_s2_p1(y)
        # (Cout, Cin, kH, kW) -> (kH, kW, Cin, Cout) -> (16*Cin, Cout): matches patch order
        wm = jnp.transpose(w, (2, 3, 1, 0)).reshape(-1, cout)
        bias = b if b is not None else jnp.zeros((cout,), jnp.float32)
        out = fused_matmul_bias_act(patches, wm, bias,
                                    neg_slope=neg_slope, apply_act=True)
        y = out.reshape(B, OH, OW, cout)

    # final 1x1 conv (Cout = 1), with bias, no activation
    B, OH, OW, C = y.shape
    wm = jnp.transpose(params["w_out"].reshape(1, C))              # (C, 1)
    out = fused_matmul_bias_act(y.reshape(B * OH * OW, C), wm, params["b_out"],
                                apply_act=False)
    return jnp.transpose(out.reshape(B, OH, OW, 1), (0, 3, 1, 2))  # NCHW


# ---------------------------------------------------------------------------
# Pure-JAX reference (matches the PyTorch forward)
# ---------------------------------------------------------------------------
def discriminator_ref(x, params, *, neg_slope=0.2):
    dn = ("NCHW", "OIHW", "NCHW")

    def conv(y, w, stride, pad):
        return lax.conv_general_dilated(
            y, w, (stride, stride), ((pad, pad), (pad, pad)),
            dimension_numbers=dn, precision=lax.Precision.HIGHEST)

    y = conv(x, params["w1"], 2, 1) + params["b1"][None, :, None, None]
    y = jnp.where(y >= 0, y, neg_slope * y)
    for name in ("w2_sn", "w3_sn", "w4_sn"):
        y = conv(y, params[name], 2, 1)
        y = jnp.where(y >= 0, y, neg_slope * y)
    y = conv(y, params["w_out"], 1, 0) + params["b_out"][None, :, None, None]
    return y


# ---------------------------------------------------------------------------
# Parameter init (deterministic)
# ---------------------------------------------------------------------------
def init_params(key, in_channels=3, hidden_dims=(32, 64, 128, 256)):
    ks = jax.random.split(key, 10)

    def he(k, shape, fan_in):
        return jax.random.normal(k, shape, jnp.float32) * (2.0 / fan_in) ** 0.5

    p = {}
    p["w1"] = he(ks[0], (hidden_dims[0], in_channels, 4, 4), in_channels * 16)
    p["b1"] = 0.01 * jax.random.normal(ks[1], (hidden_dims[0],), jnp.float32)
    for i in range(3):
        cin, cout = hidden_dims[i], hidden_dims[i + 1]
        w = he(ks[2 + 2 * i], (cout, cin, 4, 4), cin * 16)
        u = jax.random.normal(ks[3 + 2 * i], (cout,), jnp.float32)
        p[f"w{i + 2}_sn"] = spectral_normalize(w, u)
    p["w_out"] = he(ks[8], (1, hidden_dims[-1], 1, 1), hidden_dims[-1])
    p["b_out"] = 0.01 * jax.random.normal(ks[9], (1,), jnp.float32)
    return p


if __name__ == "__main__":
    key = jax.random.PRNGKey(0)
    kp, kx = jax.random.split(key)

    B, C, H, W = 2, 3, 32, 32
    params = init_params(kp, in_channels=C)
    x = jax.random.normal(kx, (B, C, H, W), dtype=jnp.float32)

    fwd = jax.jit(discriminator_forward)
    out = jax.block_until_ready(fwd(x, params))
    assert out.shape == (B, 1, H // 16, W // 16), out.shape

    ref = discriminator_ref(x, params)
    rel = jnp.linalg.norm(out - ref) / (jnp.linalg.norm(ref) + 1e-12)
    assert float(rel) < 5e-2, f"mismatch vs reference: rel L2 = {float(rel):.4f}"

    print("KERNEL_OK")
</pallas_src>

<mosaic_0001>
module attributes {stable_mosaic.version = 11 : i64} {
  func.func @_matmul_bias_act_kernel(%arg0: i32, %arg1: memref<256x48xbf16, #tpu.memory_space<vmem>>, %arg2: memref<48x32xbf16, #tpu.memory_space<vmem>>, %arg3: memref<1x32xf32, #tpu.memory_space<vmem>>, %arg4: memref<256x32xf32, #tpu.memory_space<vmem>>) attributes {dimension_semantics = [#tpu.dimension_semantics<parallel>], iteration_bounds = array<i64: 2>, scalar_prefetch = 0 : i64, scratch_operands = 0 : i64, tpu.core_type = #tpu.core_type<tc>, window_params = [{transform_indices = @transform_0, window_bounds = array<i64: 256, 48>}, {pipeline_mode = #tpu.pipeline_mode<synchronous>, transform_indices = @transform_1, window_bounds = array<i64: 48, 32>}, {pipeline_mode = #tpu.pipeline_mode<synchronous>, transform_indices = @transform_2, window_bounds = array<i64: 1, 32>}, {transform_indices = @transform_3, window_bounds = array<i64: 256, 32>}]} {
    %c0 = arith.constant 0 : index
    %c0_0 = arith.constant 0 : index
    %0 = vector.load %arg1[%c0, %c0_0] : memref<256x48xbf16, #tpu.memory_space<vmem>>, vector<256x48xbf16>
    %c0_1 = arith.constant 0 : index
    %c0_2 = arith.constant 0 : index
    %1 = vector.load %arg2[%c0_1, %c0_2] : memref<48x32xbf16, #tpu.memory_space<vmem>>, vector<48x32xbf16>
    %cst = arith.constant dense<0.000000e+00> : vector<256x32xf32>
    %2 = tpu.matmul %0, %1, %cst {dimension_numbers = #tpu.dot_dimension_numbers<[1], [0], [0], [1], [0, 0, 1, 1], [], []>} : vector<256x48xbf16>, vector<48x32xbf16>, vector<256x32xf32> -> vector<256x32xf32>
    %c0_3 = arith.constant 0 : index
    %c0_4 = arith.constant 0 : index
    %3 = vector.load %arg3[%c0_3, %c0_4] : memref<1x32xf32, #tpu.memory_space<vmem>>, vector<1x32xf32>
    %4 = vector.broadcast %3 : vector<1x32xf32> to vector<256x32xf32>
    %5 = arith.addf %2, %4 : vector<256x32xf32>
    %cst_5 = arith.constant 0.000000e+00 : f32
    %6 = vector.broadcast %cst_5 : f32 to vector<256x32xf32>
    %7 = arith.cmpf oge, %5, %6 : vector<256x32xf32>
    %cst_6 = arith.constant 2.000000e-01 : f32
    %8 = vector.broadcast %cst_6 : f32 to vector<256x32xf32>
    %9 = arith.mulf %5, %8 : vector<256x32xf32>
    %10 = arith.select %7, %5, %9 : vector<256x32xi1>, vector<256x32xf32>
    %c0_7 = arith.constant 0 : index
    %c0_8 = arith.constant 0 : index
    %11 = vector.load %arg4[%c0_7, %c0_8] : memref<256x32xf32, #tpu.memory_space<vmem>>, vector<256x32xf32>
    tpu.vector_store %arg4[%c0_7, %c0_8], %10 {strides = array<i32>} : memref<256x32xf32, #tpu.memory_space<vmem>>, vector<256x32xf32>,
    return
  }
  func.func @transform_0(%arg0: i32) -> (i32, i32) {
    %c0_i32 = arith.constant 0 : i32
    %c0_i32_0 = arith.constant 0 : i32
    return %arg0, %c0_i32 : i32, i32
  }
  func.func @transform_1(%arg0: i32) -> (i32, i32) {
    %c0_i32 = arith.constant 0 : i32
    %c0_i32_0 = arith.constant 0 : i32
    %c0_i32_1 = arith.constant 0 : i32
    return %c0_i32, %c0_i32_0 : i32, i32
  }
  func.func @transform_2(%arg0: i32) -> (i32, i32) {
    %c0_i32 = arith.constant 0 : i32
    %c0_i32_0 = arith.constant 0 : i32
    %c0_i32_1 = arith.constant 0 : i32
    return %c0_i32, %c0_i32_0 : i32, i32
  }
  func.func @transform_3(%arg0: i32) -> (i32, i32) {
    %c0_i32 = arith.constant 0 : i32
    %c0_i32_0 = arith.constant 0 : i32
    return %arg0, %c0_i32 : i32, i32
  }
}

module attributes {stable_mosaic.version = 11 : i64} {
  func.func @_matmul_bias_act_kernel(%arg0: i32, %arg1: memref<128x512xbf16, #tpu.memory_space<vmem>>, %arg2: memref<512x64xbf16, #tpu.memory_space<vmem>>, %arg3: memref<1x64xf32, #tpu.memory_space<vmem>>, %arg4: memref<128x64xf32, #tpu.memory_space<vmem>>) attributes {dimension_semantics = [#tpu.dimension_semantics<parallel>], iteration_bounds = array<i64: 1>, scalar_prefetch = 0 : i64, scratch_operands = 0 : i64, tpu.core_type = #tpu.core_type<tc>, window_params = [{transform_indices = @transform_0, window_bounds = array<i64: 128, 512>}, {pipeline_mode = #tpu.pipeline_mode<synchronous>, transform_indices = @transform_1, window_bounds = array<i64: 512, 64>}, {pipeline_mode = #tpu.pipeline_mode<synchronous>, transform_indices = @transform_2, window_bounds = array<i64: 1, 64>}, {transform_indices = @transform_3, window_bounds = array<i64: 128, 64>}]} {
    %c0 = arith.constant 0 : index
    %c0_0 = arith.constant 0 : index
    %0 = vector.load %arg1[%c0, %c0_0] : memref<128x512xbf16, #tpu.memory_space<vmem>>, vector<128x512xbf16>
    %c0_1 = arith.constant 0 : index
    %c0_2 = arith.constant 0 : index
    %1 = vector.load %arg2[%c0_1, %c0_2] : memref<512x64xbf16, #tpu.memory_space<vmem>>, vector<512x64xbf16>
    %cst = arith.constant dense<0.000000e+00> : vector<128x64xf32>
    %2 = tpu.matmul %0, %1, %cst {dimension_numbers = #tpu.dot_dimension_numbers<[1], [0], [0], [1], [0, 0, 1, 1], [], []>} : vector<128x512xbf16>, vector<512x64xbf16>, vector<128x64xf32> -> vector<128x64xf32>
    %c0_3 = arith.constant 0 : index
    %c0_4 = arith.constant 0 : index
    %3 = vector.load %arg3[%c0_3, %c0_4] : memref<1x64xf32, #tpu.memory_space<vmem>>, vector<1x64xf32>
    %4 = vector.broadcast %3 : vector<1x64xf32> to vector<128x64xf32>
    %5 = arith.addf %2, %4 : vector<128x64xf32>
    %cst_5 = arith.constant 0.000000e+00 : f32
    %6 = vector.broadcast %cst_5 : f32 to vector<128x64xf32>
    %7 = arith.cmpf oge, %5, %6 : vector<128x64xf32>
    %cst_6 = arith.constant 2.000000e-01 : f32
    %8 = vector.broadcast %cst_6 : f32 to vector<128x64xf32>
    %9 = arith.mulf %5, %8 : vector<128x64xf32>
    %10 = arith.select %7, %5, %9 : vector<128x64xi1>, vector<128x64xf32>
    %c0_7 = arith.constant 0 : index
    %c0_8 = arith.constant 0 : index
    %11 = vector.load %arg4[%c0_7, %c0_8] : memref<128x64xf32, #tpu.memory_space<vmem>>, vector<128x64xf32>
    tpu.vector_store %arg4[%c0_7, %c0_8], %10 {strides = array<i32>} : memref<128x64xf32, #tpu.memory_space<vmem>>, vector<128x64xf32>,
    return
  }
  func.func @transform_0(%arg0: i32) -> (i32, i32) {
    %c0_i32 = arith.constant 0 : i32
    %c0_i32_0 = arith.constant 0 : i32
    return %arg0, %c0_i32 : i32, i32
  }
  func.func @transform_1(%arg0: i32) -> (i32, i32) {
    %c0_i32 = arith.constant 0 : i32
    %c0_i32_0 = arith.constant 0 : i32
    %c0_i32_1 = arith.constant 0 : i32
    return %c0_i32, %c0_i32_0 : i32, i32
  }
  func.func @transform_2(%arg0: i32) -> (i32, i32) {
    %c0_i32 = arith.constant 0 : i32
    %c0_i32_0 = arith.constant 0 : i32
    %c0_i32_1 = arith.constant 0 : i32
    return %c0_i32, %c0_i32_0 : i32, i32
  }
  func.func @transform_3(%arg0: i32) -> (i32, i32) {
    %c0_i32 = arith.constant 0 : i32
    %c0_i32_0 = arith.constant 0 : i32
    return %arg0, %c0_i32 : i32, i32
  }
}

module attributes {stable_mosaic.version = 11 : i64} {
  func.func @_matmul_bias_act_kernel(%arg0: i32, %arg1: memref<32x1024xbf16, #tpu.memory_space<vmem>>, %arg2: memref<1024x128xbf16, #tpu.memory_space<vmem>>, %arg3: memref<1x128xf32, #tpu.memory_space<vmem>>, %arg4: memref<32x128xf32, #tpu.memory_space<vmem>>) attributes {dimension_semantics = [#tpu.dimension_semantics<parallel>], iteration_bounds = array<i64: 1>, scalar_prefetch = 0 : i64, scratch_operands = 0 : i64, tpu.core_type = #tpu.core_type<tc>, window_params = [{transform_indices = @transform_0, window_bounds = array<i64: 32, 1024>}, {pipeline_mode = #tpu.pipeline_mode<synchronous>, transform_indices = @transform_1, window_bounds = array<i64: 1024, 128>}, {pipeline_mode = #tpu.pipeline_mode<synchronous>, transform_indices = @transform_2, window_bounds = array<i64: 1, 128>}, {transform_indices = @transform_3, window_bounds = array<i64: 32, 128>}]} {
    %c0 = arith.constant 0 : index
    %c0_0 = arith.constant 0 : index
    %0 = vector.load %arg1[%c0, %c0_0] : memref<32x1024xbf16, #tpu.memory_space<vmem>>, vector<32x1024xbf16>
    %c0_1 = arith.constant 0 : index
    %c0_2 = arith.constant 0 : index
    %1 = vector.load %arg2[%c0_1, %c0_2] : memref<1024x128xbf16, #tpu.memory_space<vmem>>, vector<1024x128xbf16>
    %cst = arith.constant dense<0.000000e+00> : vector<32x128xf32>
    %2 = tpu.matmul %0, %1, %cst {dimension_numbers = #tpu.dot_dimension_numbers<[1], [0], [0], [1], [0, 0, 1, 1], [], []>} : vector<32x1024xbf16>, vector<1024x128xbf16>, vector<32x128xf32> -> vector<32x128xf32>
    %c0_3 = arith.constant 0 : index
    %c0_4 = arith.constant 0 : index
    %3 = vector.load %arg3[%c0_3, %c0_4] : memref<1x128xf32, #tpu.memory_space<vmem>>, vector<1x128xf32>
    %4 = vector.broadcast %3 : vector<1x128xf32> to vector<32x128xf32>
    %5 = arith.addf %2, %4 : vector<32x128xf32>
    %cst_5 = arith.constant 0.000000e+00 : f32
    %6 = vector.broadcast %cst_5 : f32 to vector<32x128xf32>
    %7 = arith.cmpf oge, %5, %6 : vector<32x128xf32>
    %cst_6 = arith.constant 2.000000e-01 : f32
    %8 = vector.broadcast %cst_6 : f32 to vector<32x128xf32>
    %9 = arith.mulf %5, %8 : vector<32x128xf32>
    %10 = arith.select %7, %5, %9 : vector<32x128xi1>, vector<32x128xf32>
    %c0_7 = arith.constant 0 : index
    %c0_8 = arith.constant 0 : index
    %11 = vector.load %arg4[%c0_7, %c0_8] : memref<32x128xf32, #tpu.memory_space<vmem>>, vector<32x128xf32>
    tpu.vector_store %arg4[%c0_7, %c0_8], %10 {strides = array<i32>} : memref<32x128xf32, #tpu.memory_space<vmem>>, vector<32x128xf32>,
    return
  }
  func.func @transform_0(%arg0: i32) -> (i32, i32) {
    %c0_i32 = arith.constant 0 : i32
    %c0_i32_0 = arith.constant 0 : i32
    return %arg0, %c0_i32 : i32, i32
  }
  func.func @transform_1(%arg0: i32) -> (i32, i32) {
    %c0_i32 = arith.constant 0 : i32
    %c0_i32_0 = arith.constant 0 : i32
    %c0_i32_1 = arith.constant 0 : i32
    return %c0_i32, %c0_i32_0 : i32, i32
  }
  func.func @transform_2(%arg0: i32) -> (i32, i32) {
    %c0_i32 = arith.constant 0 : i32
    %c0_i32_0 = arith.constant 0 : i32
    %c0_i32_1 = arith.constant 0 : i32
    return %c0_i32, %c0_i32_0 : i32, i32
  }
  func.func @transform_3(%arg0: i32) -> (i32, i32) {
    %c0_i32 = arith.constant 0 : i32
    %c0_i32_0 = arith.constant 0 : i32
    return %arg0, %c0_i32 : i32, i32
  }
}

module attributes {stable_mosaic.version = 11 : i64} {
  func.func @_matmul_bias_act_kernel(%arg0: i32, %arg1: memref<8x2048xbf16, #tpu.memory_space<vmem>>, %arg2: memref<2048x256xbf16, #tpu.memory_space<vmem>>, %arg3: memref<1x256xf32, #tpu.memory_space<vmem>>, %arg4: memref<8x256xf32, #tpu.memory_space<vmem>>) attributes {dimension_semantics = [#tpu.dimension_semantics<parallel>], iteration_bounds = array<i64: 1>, scalar_prefetch = 0 : i64, scratch_operands = 0 : i64, tpu.core_type = #tpu.core_type<tc>, window_params = [{transform_indices = @transform_0, window_bounds = array<i64: 8, 2048>}, {pipeline_mode = #tpu.pipeline_mode<synchronous>, transform_indices = @transform_1, window_bounds = array<i64: 2048, 256>}, {pipeline_mode = #tpu.pipeline_mode<synchronous>, transform_indices = @transform_2, window_bounds = array<i64: 1, 256>}, {transform_indices = @transform_3, window_bounds = array<i64: 8, 256>}]} {
    %c0 = arith.constant 0 : index
    %c0_0 = arith.constant 0 : index
    %0 = vector.load %arg1[%c0, %c0_0] : memref<8x2048xbf16, #tpu.memory_space<vmem>>, vector<8x2048xbf16>
    %c0_1 = arith.constant 0 : index
    %c0_2 = arith.constant 0 : index
    %1 = vector.load %arg2[%c0_1, %c0_2] : memref<2048x256xbf16, #tpu.memory_space<vmem>>, vector<2048x256xbf16>
    %cst = arith.constant dense<0.000000e+00> : vector<8x256xf32>
    %2 = tpu.matmul %0, %1, %cst {dimension_numbers = #tpu.dot_dimension_numbers<[1], [0], [0], [1], [0, 0, 1, 1], [], []>} : vector<8x2048xbf16>, vector<2048x256xbf16>, vector<8x256xf32> -> vector<8x256xf32>
    %c0_3 = arith.constant 0 : index
    %c0_4 = arith.constant 0 : index
    %3 = vector.load %arg3[%c0_3, %c0_4] : memref<1x256xf32, #tpu.memory_space<vmem>>, vector<1x256xf32>
    %4 = vector.broadcast %3 : vector<1x256xf32> to vector<8x256xf32>
    %5 = arith.addf %2, %4 : vector<8x256xf32>
    %cst_5 = arith.constant 0.000000e+00 : f32
    %6 = vector.broadcast %cst_5 : f32 to vector<8x256xf32>
    %7 = arith.cmpf oge, %5, %6 : vector<8x256xf32>
    %cst_6 = arith.constant 2.000000e-01 : f32
    %8 = vector.broadcast %cst_6 : f32 to vector<8x256xf32>
    %9 = arith.mulf %5, %8 : vector<8x256xf32>
    %10 = arith.select %7, %5, %9 : vector<8x256xi1>, vector<8x256xf32>
    %c0_7 = arith.constant 0 : index
    %c0_8 = arith.constant 0 : index
    %11 = vector.load %arg4[%c0_7, %c0_8] : memref<8x256xf32, #tpu.memory_space<vmem>>, vector<8x256xf32>
    tpu.vector_store %arg4[%c0_7, %c0_8], %10 {strides = array<i32>} : memref<8x256xf32, #tpu.memory_space<vmem>>, vector<8x256xf32>,
    return
  }
  func.func @transform_0(%arg0: i32) -> (i32, i32) {
    %c0_i32 = arith.constant 0 : i32
    %c0_i32_0 = arith.constant 0 : i32
    return %arg0, %c0_i32 : i32, i32
  }
  func.func @transform_1(%arg0: i32) -> (i32, i32) {
    %c0_i32 = arith.constant 0 : i32
    %c0_i32_0 = arith.constant 0 : i32
    %c0_i32_1 = arith.constant 0 : i32
    return %c0_i32, %c0_i32_0 : i32, i32
  }
  func.func @transform_2(%arg0: i32) -> (i32, i32) {
    %c0_i32 = arith.constant 0 : i32
    %c0_i32_0 = arith.constant 0 : i32
    %c0_i32_1 = arith.constant 0 : i32
    return %c0_i32, %c0_i32_0 : i32, i32
  }
  func.func @transform_3(%arg0: i32) -> (i32, i32) {
    %c0_i32 = arith.constant 0 : i32
    %c0_i32_0 = arith.constant 0 : i32
    return %arg0, %c0_i32 : i32, i32
  }
}

module attributes {stable_mosaic.version = 11 : i64} {
  func.func @_matmul_bias_act_kernel(%arg0: i32, %arg1: memref<8x256xbf16, #tpu.memory_space<vmem>>, %arg2: memref<256x1xbf16, #tpu.memory_space<vmem>>, %arg3: memref<1x1xf32, #tpu.memory_space<vmem>>, %arg4: memref<8x1xf32, #tpu.memory_space<vmem>>) attributes {dimension_semantics = [#tpu.dimension_semantics<parallel>], iteration_bounds = array<i64: 1>, scalar_prefetch = 0 : i64, scratch_operands = 0 : i64, tpu.core_type = #tpu.core_type<tc>, window_params = [{transform_indices = @transform_0, window_bounds = array<i64: 8, 256>}, {pipeline_mode = #tpu.pipeline_mode<synchronous>, transform_indices = @transform_1, window_bounds = array<i64: 256, 1>}, {pipeline_mode = #tpu.pipeline_mode<synchronous>, transform_indices = @transform_2, window_bounds = array<i64: 1, 1>}, {transform_indices = @transform_3, window_bounds = array<i64: 8, 1>}]} {
    %c0 = arith.constant 0 : index
    %c0_0 = arith.constant 0 : index
    %0 = vector.load %arg1[%c0, %c0_0] : memref<8x256xbf16, #tpu.memory_space<vmem>>, vector<8x256xbf16>
    %c0_1 = arith.constant 0 : index
    %c0_2 = arith.constant 0 : index
    %1 = vector.load %arg2[%c0_1, %c0_2] : memref<256x1xbf16, #tpu.memory_space<vmem>>, vector<256x1xbf16>
    %cst = arith.constant dense<0.000000e+00> : vector<8x1xf32>
    %2 = tpu.matmul %0, %1, %cst {dimension_numbers = #tpu.dot_dimension_numbers<[1], [0], [0], [1], [0, 0, 1, 1], [], []>} : vector<8x256xbf16>, vector<256x1xbf16>, vector<8x1xf32> -> vector<8x1xf32>
    %c0_3 = arith.constant 0 : index
    %c0_4 = arith.constant 0 : index
    %3 = vector.load %arg3[%c0_3, %c0_4] : memref<1x1xf32, #tpu.memory_space<vmem>>, vector<1x1xf32>
    %4 = vector.broadcast %3 : vector<1x1xf32> to vector<8x1xf32>
    %5 = arith.addf %2, %4 : vector<8x1xf32>
    %c0_5 = arith.constant 0 : index
    %c0_6 = arith.constant 0 : index
    %6 = vector.load %arg4[%c0_5, %c0_6] : memref<8x1xf32, #tpu.memory_space<vmem>>, vector<8x1xf32>
    tpu.vector_store %arg4[%c0_5, %c0_6], %5 {strides = array<i32>} : memref<8x1xf32, #tpu.memory_space<vmem>>, vector<8x1xf32>,
    return
  }
  func.func @transform_0(%arg0: i32) -> (i32, i32) {
    %c0_i32 = arith.constant 0 : i32
    %c0_i32_0 = arith.constant 0 : i32
    return %arg0, %c0_i32 : i32, i32
  }
  func.func @transform_1(%arg0: i32) -> (i32, i32) {
    %c0_i32 = arith.constant 0 : i32
    %c0_i32_0 = arith.constant 0 : i32
    %c0_i32_1 = arith.constant 0 : i32
    return %c0_i32, %c0_i32_0 : i32, i32
  }
  func.func @transform_2(%arg0: i32) -> (i32, i32) {
    %c0_i32 = arith.constant 0 : i32
    %c0_i32_0 = arith.constant 0 : i32
    %c0_i32_1 = arith.constant 0 : i32
    return %c0_i32, %c0_i32_0 : i32, i32
  }
  func.func @transform_3(%arg0: i32) -> (i32, i32) {
    %c0_i32 = arith.constant 0 : i32
    %c0_i32_0 = arith.constant 0 : i32
    return %arg0, %c0_i32 : i32, i32
  }
}

</mosaic_0001>

<llo_original>
// kernel: discriminator_forward.5
$region0: #{discriminator_forward.5}
  #allocation0 [shape = 'u32[]', space=smem, size = 0x4, offset = 0x4, fixed_abs, tag = 'smem constant byte address 0x4 - core index']
  #allocation1 [shape = 'u32[144,128]{1,0:T(1,128)}', space=vmem, size = 0x12000, scoped, tag = 'internal scratch']
  %s0 = inlined_call_operand.vmem [shape: bf16[512,48], index: 0, kind: input, shape index: {}]
  %s1 = inlined_call_operand.vmem [shape: bf16[48,32], index: 1, kind: input, shape index: {}]
  %s2 = inlined_call_operand.vmem [shape: f32[1,32], index: 2, kind: input, shape index: {}]
  %s3 = inlined_call_operand.vmem [shape: f32[512,32], index: 3, kind: output, shape index: {}]
  %s4 = sld [smem:[#allocation0]]
  $region45: #{discriminator_forward.5} parent=0
    _
  %s6 = ssub.s32 1, %s4
  %s7 = scalar_select 0, %s6, %s4
  loop: start=0, step=1, limit=4
  $region2: #{discriminator_forward.5} parent=0 // loop_pre_header
    _
  $region3: #{discriminator_forward.5} parent=0 // loop_header
    %s9 = sphi 0, %s13
    %p10 = scmp.ge.s32.totalorder %s9, 4
    %s19 = sphi 0, %s21
    %s22 = sphi 0, %s19
    %s23 = sphi 0, %s22
    %s39 = sphi 0, %s23
    %s43 = sphi 0, %s43
    %s45 = sphi 0, %s43
    %s46 = sphi 0, %s45
    %s60 = sphi 0, %s46
    %s64 = sphi 0, %s64
    %s66 = sphi 0, %s64
    %s67 = sphi 0, %s66
    %s81 = sphi 0, %s67
    %s87 = sphi 0, %s89
    %s90 = sphi 0, %s87
    %s91 = sphi 0, %s90
    %s107 = sphi 0, %s91
  $region4: #{discriminator_forward.5} parent=0 // loop_header_branch
    %12 = sbr.rel (%p10) target = $region8
  $region5: #{discriminator_forward.5} parent=0 // loop_body
    %s14 = ssub.s32 %s9, 1
    %s15 = ssub.s32 %s9, 2
    %s16 = sadd.s32 %s9, 1
    %s17 = ssub.s32 %s9, %s16
    %p18 = scmp.eq.s32.totalorder %s17, 0
    %s20 = sadd.s32 %s19, 1
    %s21 = scalar_select %p18, %s19, %s20
    %p24 = pneg %p18
    %p25 = scmp.eq.s32.totalorder %s9, 1
    %p26 = por %p24, %p25
    %p27 = scmp.ne.s32.totalorder %s19, %s22
    %p28 = scmp.eq.s32.totalorder %s9, 0
    %p29 = por %p27, %p28
    %p30 = scmp.ne.s32.totalorder %s19, %s22
    %p31 = scmp.eq.s32.totalorder %s14, 1
    %p32 = por %p30, %p31
    %p33 = scmp.ne.s32.totalorder %s22, %s23
    %p34 = scmp.eq.s32.totalorder %s14, 0
    %p35 = por %p33, %p34
    %p36 = scmp.ne.s32.totalorder %s22, %s23
    %p37 = scmp.eq.s32.totalorder %s15, 1
    %p38 = por %p36, %p37
    %p40 = scmp.ne.s32.totalorder %s23, %s39
    %p41 = scmp.eq.s32.totalorder %s15, 0
    %p42 = por %p40, %p41
    %s44 = sadd.s32 %s43, 1
    %p47 = scmp.eq.s32.totalorder %s9, 1
    %p48 = scmp.ne.s32.totalorder %s43, %s45
    %p49 = scmp.eq.s32.totalorder %s9, 0
    %p50 = por %p48, %p49
    %p51 = scmp.ne.s32.totalorder %s43, %s45
    %p52 = scmp.eq.s32.totalorder %s14, 1
    %p53 = por %p51, %p52
    %p54 = scmp.ne.s32.totalorder %s45, %s46
    %p55 = scmp.eq.s32.totalorder %s14, 0
    %p56 = por %p54, %p55
    %p57 = scmp.ne.s32.totalorder %s45, %s46
    %p58 = scmp.eq.s32.totalorder %s15, 1
    %p59 = por %p57, %p58
    %p61 = scmp.ne.s32.totalorder %s46, %s60
    %p62 = scmp.eq.s32.totalorder %s15, 0
    %p63 = por %p61, %p62
    %s65 = sadd.s32 %s64, 1
    %p68 = scmp.eq.s32.totalorder %s9, 1
    %p69 = scmp.ne.s32.totalorder %s64, %s66
    %p70 = scmp.eq.s32.totalorder %s9, 0
    %p71 = por %p69, %p70
    %p72 = scmp.ne.s32.totalorder %s64, %s66
    %p73 = scmp.eq.s32.totalorder %s14, 1
    %p74 = por %p72, %p73
    %p75 = scmp.ne.s32.totalorder %s66, %s67
    %p76 = scmp.eq.s32.totalorder %s14, 0
    %p77 = por %p75, %p76
    %p78 = scmp.ne.s32.totalorder %s66, %s67
    %p79 = scmp.eq.s32.totalorder %s15, 1
    %p80 = por %p78, %p79
    %p82 = scmp.ne.s32.totalorder %s67, %s81
    %p83 = scmp.eq.s32.totalorder %s15, 0
    %p84 = por %p82, %p83
    %s85 = ssub.s32 %s9, %s16
    %p86 = scmp.eq.s32.totalorder %s85, 0
    %s88 = sadd.s32 %s87, 1
    %s89 = scalar_select %p86, %s87, %s88
    %p92 = pneg %p86
    %p93 = scmp.eq.s32.totalorder %s9, 1
    %p94 = por %p92, %p93
    %p95 = scmp.ne.s32.totalorder %s87, %s90
    %p96 = scmp.eq.s32.totalorder %s9, 0
    %p97 = por %p95, %p96
    %p98 = scmp.ne.s32.totalorder %s87, %s90
    %p99 = scmp.eq.s32.totalorder %s14, 1
    %p100 = por %p98, %p99
    %p101 = scmp.ne.s32.totalorder %s90, %s91
    %p102 = scmp.eq.s32.totalorder %s14, 0
    %p103 = por %p101, %p102
    %p104 = scmp.ne.s32.totalorder %s90, %s91
    %p105 = scmp.eq.s32.totalorder %s15, 1
    %p106 = por %p104, %p105
    %p108 = scmp.ne.s32.totalorder %s91, %s107
    %p109 = scmp.eq.s32.totalorder %s15, 0
    %p110 = por %p108, %p109
    %p111 = scmp.le.s32.totalorder 1, %s9
    %p112 = scmp.lt.s32.totalorder %s9, 3
    %p113 = pnand %p111, %p112
    %p114 = pneg %p113
    // Predicated region
    $region9: #{discriminator_forward.5} parent=5 // pred_check
      _
    $region10: #{discriminator_forward.5} parent=5 // pred_check_branch
      %116 = sbr.rel (%p113) target = $region12
    $region11: #{discriminator_forward.5} parent=5 // pred_region
      %s117 = ssub.s32 %s9, 1
      // Predicated region
      $region13: #{discriminator_forward.5} parent=11 // pred_check
        %p118 = pneg %p56
      $region14: #{discriminator_forward.5} parent=11 // pred_check_branch
        %120 = sbr.rel (%p118) target = $region16
      $region15: #{discriminator_forward.5} parent=11 // pred_region
        _
      $region16: #{discriminator_forward.5} parent=11 // pred_fallthru
        _
      // Predicated region
      $region17: #{discriminator_forward.5} parent=11 // pred_check
        %p121 = pneg %p77
      $region18: #{discriminator_forward.5} parent=11 // pred_check_branch
        %123 = sbr.rel (%p121) target = $region20
      $region19: #{discriminator_forward.5} parent=11 // pred_region
        _
      $region20: #{discriminator_forward.5} parent=11 // pred_fallthru
        _
    $region12: #{discriminator_forward.5} parent=5 // pred_fallthru
      _
    %p124 = scmp.lt.s32.totalorder %s9, 2
    // Predicated region
    $region21: #{discriminator_forward.5} parent=5 // pred_check
      %p125 = pneg %p124
    $region22: #{discriminator_forward.5} parent=5 // pred_check_branch
      %127 = sbr.rel (%p125) target = $region24
    $region23: #{discriminator_forward.5} parent=5 // pred_region
      // Predicated region
      $region25: #{discriminator_forward.5} parent=23 // pred_check
        %p128 = pneg %p29
      $region26: #{discriminator_forward.5} parent=23 // pred_check_branch
        %130 = sbr.rel (%p128) target = $region28
      $region27: #{discriminator_forward.5} parent=23 // pred_region
        %s131 = smul.u32 32, %s9
        %p132 = scmp.lt.s32.totalorder %s131, 63
        %s133 = scalar_select %p132, %s131, 63
        %s134 = smul.addr %s133, 4
        %s135 = scalar_lea.vmem %s0, %s134
        %s136 = smul.u32 32, %s9
      $region28: #{discriminator_forward.5} parent=23 // pred_fallthru
        _
    $region24: #{discriminator_forward.5} parent=5 // pred_fallthru
      _
    %p137 = scmp.le.s32.totalorder 1, %s9
    %p138 = scmp.lt.s32.totalorder %s9, 3
    %p139 = pnand %p137, %p138
    %p140 = pneg %p139
    // Predicated region
    $region29: #{discriminator_forward.5} parent=5 // pred_check
      _
    $region30: #{discriminator_forward.5} parent=5 // pred_check_branch
      %142 = sbr.rel (%p139) target = $region32
    $region31: #{discriminator_forward.5} parent=5 // pred_region
      %s143 = ssub.s32 %s9, 1
      %s144 = smul.u32 32, %s14
      %p145 = scmp.lt.s32.totalorder %s144, 63
      %s146 = scalar_select %p145, %s144, 63
      %s147 = smul.addr %s146, 4
      %s148 = scalar_lea.vmem %s0, %s147
      %p149 = pneg %p35
      %p150 = pneg %p32
      %p151 = pneg %p56
      %p152 = pneg %p53
      %p153 = pneg %p77
      %p154 = pneg %p74
      %p155 = pneg %p103
      %p156 = pneg %p100
      %s157 = smul.u32 32, %s14
      %p158 = scmp.lt.s32.totalorder %s157, 63
      %s159 = scalar_select %p158, %s157, 63
      %s160 = smul.addr %s159, 8
      %s161 = scalar_lea.vmem %s3, %s160
      %s162 = smul.u32 32, %s14
      %p163 = scmp.lt.s32.totalorder %s162, 63
      %s164 = scalar_select %p163, %s162, 63
      %s165 = smul.addr %s164, 4
      %s166 = scalar_lea.vmem %s0, %s165
      %s167 = smul.u32 32, %s14
      %s168 = smul.u32 32, %s14
      %p169 = scmp.lt.s32.totalorder %s168, 63
      %s170 = scalar_select %p169, %s168, 63
      %s171 = smul.addr %s170, 8
      %s172 = scalar_lea.vmem %s3, %s171
      %s173 = smul.u32 32, %s14
      %v175 = vld [vmem:[%s166] sm:$0xf]
      %v176 = vld [vmem:[%s166 + $0x4] sm:$0xf]
      %v177 = vld [vmem:[%s166 + $0x8] sm:$0xf]
      %v178 = vld [vmem:[%s166 + $0xc] sm:$0xf]
      %v179 = vld [vmem:[%s166 + $0x10] sm:$0xf]
      %v180 = vld [vmem:[%s166 + $0x14] sm:$0xf]
      %v181 = vld [vmem:[%s166 + $0x18] sm:$0xf]
      %v182 = vld [vmem:[%s166 + $0x1c] sm:$0xf]
      %v183 = vld [vmem:[%s166 + $0x20] sm:$0xf]
      %v184 = vld [vmem:[%s166 + $0x24] sm:$0xf]
      %v185 = vld [vmem:[%s166 + $0x28] sm:$0xf]
      %v186 = vld [vmem:[%s166 + $0x2c] sm:$0xf]
      %v187 = vld [vmem:[%s166 + $0x30] sm:$0xf]
      %v188 = vld [vmem:[%s166 + $0x34] sm:$0xf]
      %v189 = vld [vmem:[%s166 + $0x38] sm:$0xf]
      %v190 = vld [vmem:[%s166 + $0x3c] sm:$0xf]
      %v191 = vld [vmem:[%s166 + $0x40] sm:$0xf]
      %v192 = vld [vmem:[%s166 + $0x44] sm:$0xf]
      %v193 = vld [vmem:[%s166 + $0x48] sm:$0xf]
      %v194 = vld [vmem:[%s166 + $0x4c] sm:$0xf]
      %v195 = vld [vmem:[%s166 + $0x50] sm:$0xf]
      %v196 = vld [vmem:[%s166 + $0x54] sm:$0xf]
      %v197 = vld [vmem:[%s166 + $0x58] sm:$0xf]
      %v198 = vld [vmem:[%s166 + $0x5c] sm:$0xf]
      %v199 = vld [vmem:[%s166 + $0x60] sm:$0xf]
      %v200 = vld [vmem:[%s166 + $0x64] sm:$0xf]
      %v201 = vld [vmem:[%s166 + $0x68] sm:$0xf]
      %v202 = vld [vmem:[%s166 + $0x6c] sm:$0xf]
      %v203 = vld [vmem:[%s166 + $0x70] sm:$0xf]
      %v204 = vld [vmem:[%s166 + $0x74] sm:$0xf]
      %v205 = vld [vmem:[%s166 + $0x78] sm:$0xf]
      %v206 = vld [vmem:[%s166 + $0x7c] sm:$0xf]
      %v207 = vld [vmem:[%s1] sm:$0xf]
      %v208 = vld [vmem:[%s1 + $0x4] sm:$0xf]
      %v209 = vld [vmem:[%s1 + $0x8] sm:$0xf]
      %v210 = vld [vmem:[%s1 + $0xc] sm:$0xf]
      %v211 = vld [vmem:[%s1 + $0x10] sm:$0xf]
      %v212 = vld [vmem:[%s1 + $0x14] sm:$0xf]
      %v213 = vld [vmem:[%s2] sm:$0x1]
      %v215 = vlaneseq
      %v216 = vshrl.u32 %v215, 7
      %v217 = vsub.s32 0, %v216
      %v218 = vrot.slane %v213, %v217
      %v252 = vunpack.c.l.b16 %v175
      %v253 = vunpack.c.l.b16 %v176
      %v254 = vunpack.c.l.b16 %v177
      %v255 = vunpack.c.l.b16 %v178
      %v256 = vunpack.c.l.b16 %v179
      %v257 = vunpack.c.l.b16 %v180
      %v258 = vunpack.c.l.b16 %v181
      %v259 = vunpack.c.l.b16 %v182
      %v260 = vunpack.c.l.b16 %v183
      %v261 = vunpack.c.l.b16 %v184
      %v262 = vunpack.c.l.b16 %v185
      %v263 = vunpack.c.l.b16 %v186
      %v264 = vunpack.c.l.b16 %v187
      %v265 = vunpack.c.l.b16 %v188
      %v266 = vunpack.c.l.b16 %v189
      %v267 = vunpack.c.l.b16 %v190
      %v268 = vunpack.c.l.b16 %v191
      %v269 = vunpack.c.l.b16 %v192
      %v270 = vunpack.c.l.b16 %v193
      %v271 = vunpack.c.l.b16 %v194
      %v272 = vunpack.c.l.b16 %v195
      %v273 = vunpack.c.l.b16 %v196
      %v274 = vunpack.c.l.b16 %v197
      %v275 = vunpack.c.l.b16 %v198
      %v276 = vunpack.c.l.b16 %v199
      %v277 = vunpack.c.l.b16 %v200
      %v278 = vunpack.c.l.b16 %v201
      %v279 = vunpack.c.l.b16 %v202
      %v280 = vunpack.c.l.b16 %v203
      %v281 = vunpack.c.l.b16 %v204
      %v282 = vunpack.c.l.b16 %v205
      %v283 = vunpack.c.l.b16 %v206
      %v284 = vpack.c.b16 %v253, %v252
      %v285 = vpack.c.b16 %v255, %v254
      %v286 = vpack.c.b16 %v257, %v256
      %v287 = vpack.c.b16 %v259, %v258
      %v288 = vpack.c.b16 %v261, %v260
      %v289 = vpack.c.b16 %v263, %v262
      %v290 = vpack.c.b16 %v265, %v264
      %v291 = vpack.c.b16 %v267, %v266
      %v292 = vpack.c.b16 %v269, %v268
      %v293 = vpack.c.b16 %v271, %v270
      %v294 = vpack.c.b16 %v273, %v272
      %v295 = vpack.c.b16 %v275, %v274
      %v296 = vpack.c.b16 %v277, %v276
      %v297 = vpack.c.b16 %v279, %v278
      %v298 = vpack.c.b16 %v281, %v280
      %v299 = vpack.c.b16 %v283, %v282
      %v306 = vunpack.c.l.b16 %v207
      %v307 = vunpack.c.l.b16 %v208
      %v308 = vunpack.c.l.b16 %v209
      %v309 = vunpack.c.l.b16 %v210
      %v310 = vunpack.c.l.b16 %v211
      %v311 = vunpack.c.l.b16 %v212
      %v312 = vpack.c.b16 %v307, %v306
      %v313 = vpack.c.b16 %v309, %v308
      %v314 = vpack.c.b16 %v311, %v310
      %vm318 = vcmask 392192
      %v320 = vsel %vm318, %v284, 0
      %v323 = vsel %vm318, %v285, 0
      %v326 = vsel %vm318, %v286, 0
      %v329 = vsel %vm318, %v287, 0
      %v332 = vsel %vm318, %v288, 0
      %v335 = vsel %vm318, %v289, 0
      %v338 = vsel %vm318, %v290, 0
      %v341 = vsel %vm318, %v291, 0
      %v344 = vsel %vm318, %v292, 0
      %v347 = vsel %vm318, %v293, 0
      %v350 = vsel %vm318, %v294, 0
      %v353 = vsel %vm318, %v295, 0
      %v356 = vsel %vm318, %v296, 0
      %v359 = vsel %vm318, %v297, 0
      %v362 = vsel %vm318, %v298, 0
      %v365 = vsel %vm318, %v299, 0
      %367 = vmatprep.subr.bf16.mxu0 0
      %368 = vmatpush1.bf16.msra.mxu0 0
      %369 = vmatprep.subr.bf16.mxu0 0
      %370 = vmatpush1.bf16.msra.mxu0 0
      %371 = vmatprep.subr.bf16.mxu0 0
      %372 = vmatpush1.bf16.msra.mxu0 0
      %373 = vmatprep.subr.bf16.mxu0 0
      %374 = vmatpush1.bf16.msra.mxu0 0
      %375 = vmatprep.subr.bf16.mxu0 0
      %376 = vmatpush1.bf16.msra.mxu0 0
      %377 = vmatprep.subr.bf16.mxu0 0
      %378 = vmatpush1.bf16.msra.mxu0 %v314
      %379 = vmatprep.subr.bf16.mxu0 0
      %380 = vmatpush1.bf16.msra.mxu0 %v313
      %381 = vmatprep.subr.bf16.mxu0 0
      %382 = vmatpush1.bf16.msra.mxu0 %v312
      %383 = vmatprep.subr.bf16.mxu0 0
      %384 = vmatpush2.bf16.msra.mxu0 0
      %385 = vmatprep.subr.bf16.mxu0 0
      %386 = vmatpush2.bf16.msra.mxu0 0
      %387 = vmatprep.subr.bf16.mxu0 0
      %388 = vmatpush2.bf16.msra.mxu0 0
      %389 = vmatprep.subr.bf16.mxu0 0
      %390 = vmatpush2.bf16.msra.mxu0 0
      %391 = vmatprep.subr.bf16.mxu0 0
      %392 = vmatpush2.bf16.msra.mxu0 0
      %393 = vmatprep.subr.bf16.mxu0 0
      %394 = vmatpush2.bf16.msra.mxu0 0
      %395 = vmatprep.subr.bf16.mxu0 0
      %396 = vmatpush2.bf16.msra.mxu0 0
      %397 = vmatprep.subr.bf16.mxu0 0
      %398 = vmatpush2.bf16.msra.mxu0 0
      %399 = vmatprep.mubr.bf16.mxu0 0
      %400 = vmatmul.mubr.bf16.gmra.mxu0 %v320
      %v401 = vpop.f32.mrf.mxu0
      %v402 = vadd.f32 %v218, %v401
      %v403 = vpop.f32.mrf.mxu0
      %v404 = vpop.f32.mrf.mxu0
      %v405 = vadd.f32 %v218, %v404
      %v406 = vpop.f32.mrf.mxu0
      %407 = vmatprep.mubr.bf16.mxu0 0
      %408 = vmatmul.mubr.bf16.gmra.mxu0 %v323
      %v409 = vpop.f32.mrf.mxu0
      %v410 = vadd.f32 %v218, %v409
      %v411 = vpop.f32.mrf.mxu0
      %v412 = vpop.f32.mrf.mxu0
      %v413 = vadd.f32 %v218, %v412
      %v414 = vpop.f32.mrf.mxu0
      %415 = vmatprep.mubr.bf16.mxu0 0
      %416 = vmatmul.mubr.bf16.gmra.mxu0 %v326
      %v417 = vpop.f32.mrf.mxu0
      %v418 = vadd.f32 %v218, %v417
      %v419 = vpop.f32.mrf.mxu0
      %v420 = vpop.f32.mrf.mxu0
      %v421 = vadd.f32 %v218, %v420
      %v422 = vpop.f32.mrf.mxu0
      %423 = vmatprep.mubr.bf16.mxu0 0
      %424 = vmatmul.mubr.bf16.gmra.mxu0 %v329
      %v425 = vpop.f32.mrf.mxu0
      %v426 = vadd.f32 %v218, %v425
      %v427 = vpop.f32.mrf.mxu0
      %v428 = vpop.f32.mrf.mxu0
      %v429 = vadd.f32 %v218, %v428
      %v430 = vpop.f32.mrf.mxu0
      %431 = vmatprep.mubr.bf16.mxu0 0
      %432 = vmatmul.mubr.bf16.gmra.mxu0 %v332
      %v433 = vpop.f32.mrf.mxu0
      %v434 = vadd.f32 %v218, %v433
      %v435 = vpop.f32.mrf.mxu0
      %v436 = vpop.f32.mrf.mxu0
      %v437 = vadd.f32 %v218, %v436
      %v438 = vpop.f32.mrf.mxu0
      %439 = vmatprep.mubr.bf16.mxu0 0
      %440 = vmatmul.mubr.bf16.gmra.mxu0 %v335
      %v441 = vpop.f32.mrf.mxu0
      %v442 = vadd.f32 %v218, %v441
      %v443 = vpop.f32.mrf.mxu0
      %v444 = vpop.f32.mrf.mxu0
      %v445 = vadd.f32 %v218, %v444
      %v446 = vpop.f32.mrf.mxu0
      %447 = vmatprep.mubr.bf16.mxu0 0
      %448 = vmatmul.mubr.bf16.gmra.mxu0 %v338
      %v449 = vpop.f32.mrf.mxu0
      %v450 = vadd.f32 %v218, %v449
      %v451 = vpop.f32.mrf.mxu0
      %v452 = vpop.f32.mrf.mxu0
      %v453 = vadd.f32 %v218, %v452
      %v454 = vpop.f32.mrf.mxu0
      %455 = vmatprep.mubr.bf16.mxu0 0
      %456 = vmatmul.mubr.bf16.gmra.mxu0 %v341
      %v457 = vpop.f32.mrf.mxu0
      %v458 = vadd.f32 %v218, %v457
      %v459 = vpop.f32.mrf.mxu0
      %v460 = vpop.f32.mrf.mxu0
      %v461 = vadd.f32 %v218, %v460
      %v462 = vpop.f32.mrf.mxu0
      %463 = vmatprep.mubr.bf16.mxu0 0
      %464 = vmatmul.mubr.bf16.gmra.mxu0 %v344
      %v465 = vpop.f32.mrf.mxu0
      %v466 = vadd.f32 %v218, %v465
      %v467 = vpop.f32.mrf.mxu0
      %v468 = vpop.f32.mrf.mxu0
      %v469 = vadd.f32 %v218, %v468
      %v470 = vpop.f32.mrf.mxu0
      %471 = vmatprep.mubr.bf16.mxu0 0
      %472 = vmatmul.mubr.bf16.gmra.mxu0 %v347
      %v473 = vpop.f32.mrf.mxu0
      %v474 = vadd.f32 %v218, %v473
      %v475 = vpop.f32.mrf.mxu0
      %v476 = vpop.f32.mrf.mxu0
      %v477 = vadd.f32 %v218, %v476
      %v478 = vpop.f32.mrf.mxu0
      %479 = vmatprep.mubr.bf16.mxu0 0
      %480 = vmatmul.mubr.bf16.gmra.mxu0 %v350
      %v481 = vpop.f32.mrf.mxu0
      %v482 = vadd.f32 %v218, %v481
      %v483 = vpop.f32.mrf.mxu0
      %v484 = vpop.f32.mrf.mxu0
      %v485 = vadd.f32 %v218, %v484
      %v486 = vpop.f32.mrf.mxu0
      %487 = vmatprep.mubr.bf16.mxu0 0
      %488 = vmatmul.mubr.bf16.gmra.mxu0 %v353
      %v489 = vpop.f32.mrf.mxu0
      %v490 = vadd.f32 %v218, %v489
      %v491 = vpop.f32.mrf.mxu0
      %v492 = vpop.f32.mrf.mxu0
      %v493 = vadd.f32 %v218, %v492
      %v494 = vpop.f32.mrf.mxu0
      %495 = vmatprep.mubr.bf16.mxu0 0
      %496 = vmatmul.mubr.bf16.gmra.mxu0 %v356
      %v497 = vpop.f32.mrf.mxu0
      %v498 = vadd.f32 %v218, %v497
      %v499 = vpop.f32.mrf.mxu0
      %v500 = vpop.f32.mrf.mxu0
      %v501 = vadd.f32 %v218, %v500
      %v502 = vpop.f32.mrf.mxu0
      %503 = vmatprep.mubr.bf16.mxu0 0
      %504 = vmatmul.mubr.bf16.gmra.mxu0 %v359
      %v505 = vpop.f32.mrf.mxu0
      %v506 = vadd.f32 %v218, %v505
      %v507 = vpop.f32.mrf.mxu0
      %v508 = vpop.f32.mrf.mxu0
      %v509 = vadd.f32 %v218, %v508
      %v510 = vpop.f32.mrf.mxu0
      %511 = vmatprep.mubr.bf16.mxu0 0
      %512 = vmatmul.mubr.bf16.gmra.mxu0 %v362
      %v513 = vpop.f32.mrf.mxu0
      %v514 = vadd.f32 %v218, %v513
      %v515 = vpop.f32.mrf.mxu0
      %v516 = vpop.f32.mrf.mxu0
      %v517 = vadd.f32 %v218, %v516
      %v518 = vpop.f32.mrf.mxu0
      %519 = vmatprep.mubr.bf16.mxu0 0
      %520 = vmatmul.mubr.bf16.gmra.mxu0 %v365
      %v521 = vpop.f32.mrf.mxu0
      %v522 = vadd.f32 %v218, %v521
      %v523 = vpop.f32.mrf.mxu0
      %v524 = vpop.f32.mrf.mxu0
      %v525 = vadd.f32 %v218, %v524
      %v526 = vpop.f32.mrf.mxu0
      %527 = vdwg.mxu0
      %vm528 = vcmp.ge.f32.partialorder %v402, 0.0
      %vm529 = vcmp.ge.f32.partialorder %v405, 0.0
      %vm530 = vcmp.ge.f32.partialorder %v410, 0.0
      %vm531 = vcmp.ge.f32.partialorder %v413, 0.0
      %vm532 = vcmp.ge.f32.partialorder %v418, 0.0
      %vm533 = vcmp.ge.f32.partialorder %v421, 0.0
      %vm534 = vcmp.ge.f32.partialorder %v426, 0.0
      %vm535 = vcmp.ge.f32.partialorder %v429, 0.0
      %vm536 = vcmp.ge.f32.partialorder %v434, 0.0
      %vm537 = vcmp.ge.f32.partialorder %v437, 0.0
      %vm538 = vcmp.ge.f32.partialorder %v442, 0.0
      %vm539 = vcmp.ge.f32.partialorder %v445, 0.0
      %vm540 = vcmp.ge.f32.partialorder %v450, 0.0
      %vm541 = vcmp.ge.f32.partialorder %v453, 0.0
      %vm542 = vcmp.ge.f32.partialorder %v458, 0.0
      %vm543 = vcmp.ge.f32.partialorder %v461, 0.0
      %vm544 = vcmp.ge.f32.partialorder %v466, 0.0
      %vm545 = vcmp.ge.f32.partialorder %v469, 0.0
      %vm546 = vcmp.ge.f32.partialorder %v474, 0.0
      %vm547 = vcmp.ge.f32.partialorder %v477, 0.0
      %vm548 = vcmp.ge.f32.partialorder %v482, 0.0
      %vm549 = vcmp.ge.f32.partialorder %v485, 0.0
      %vm550 = vcmp.ge.f32.partialorder %v490, 0.0
      %vm551 = vcmp.ge.f32.partialorder %v493, 0.0
      %vm552 = vcmp.ge.f32.partialorder %v498, 0.0
      %vm553 = vcmp.ge.f32.partialorder %v501, 0.0
      %vm554 = vcmp.ge.f32.partialorder %v506, 0.0
      %vm555 = vcmp.ge.f32.partialorder %v509, 0.0
      %vm556 = vcmp.ge.f32.partialorder %v514, 0.0
      %vm557 = vcmp.ge.f32.partialorder %v517, 0.0
      %vm558 = vcmp.ge.f32.partialorder %v522, 0.0
      %vm559 = vcmp.ge.f32.partialorder %v525, 0.0
      %v560 = vmul.f32 %v402, 0.2
      %v561 = vmul.f32 %v405, 0.2
      %v562 = vmul.f32 %v410, 0.2
      %v563 = vmul.f32 %v413, 0.2
      %v564 = vmul.f32 %v418, 0.2
      %v565 = vmul.f32 %v421, 0.2
      %v566 = vmul.f32 %v426, 0.2
      %v567 = vmul.f32 %v429, 0.2
      %v568 = vmul.f32 %v434, 0.2
      %v569 = vmul.f32 %v437, 0.2
      %v570 = vmul.f32 %v442, 0.2
      %v571 = vmul.f32 %v445, 0.2
      %v572 = vmul.f32 %v450, 0.2
      %v573 = vmul.f32 %v453, 0.2
      %v574 = vmul.f32 %v458, 0.2
      %v575 = vmul.f32 %v461, 0.2
      %v576 = vmul.f32 %v466, 0.2
      %v577 = vmul.f32 %v469, 0.2
      %v578 = vmul.f32 %v474, 0.2
      %v579 = vmul.f32 %v477, 0.2
      %v580 = vmul.f32 %v482, 0.2
      %v581 = vmul.f32 %v485, 0.2
      %v582 = vmul.f32 %v490, 0.2
      %v583 = vmul.f32 %v493, 0.2
      %v584 = vmul.f32 %v498, 0.2
      %v585 = vmul.f32 %v501, 0.2
      %v586 = vmul.f32 %v506, 0.2
      %v587 = vmul.f32 %v509, 0.2
      %v588 = vmul.f32 %v514, 0.2
      %v589 = vmul.f32 %v517, 0.2
      %v590 = vmul.f32 %v522, 0.2
      %v591 = vmul.f32 %v525, 0.2
      %v592 = vsel %vm528, %v402, %v560
      %v593 = vsel %vm529, %v405, %v561
      %v594 = vsel %vm530, %v410, %v562
      %v595 = vsel %vm531, %v413, %v563
      %v596 = vsel %vm532, %v418, %v564
      %v597 = vsel %vm533, %v421, %v565
      %v598 = vsel %vm534, %v426, %v566
      %v599 = vsel %vm535, %v429, %v567
      %v600 = vsel %vm536, %v434, %v568
      %v601 = vsel %vm537, %v437, %v569
      %v602 = vsel %vm538, %v442, %v570
      %v603 = vsel %vm539, %v445, %v571
      %v604 = vsel %vm540, %v450, %v572
      %v605 = vsel %vm541, %v453, %v573
      %v606 = vsel %vm542, %v458, %v574
      %v607 = vsel %vm543, %v461, %v575
      %v608 = vsel %vm544, %v466, %v576
      %v609 = vsel %vm545, %v469, %v577
      %v610 = vsel %vm546, %v474, %v578
      %v611 = vsel %vm547, %v477, %v579
      %v612 = vsel %vm548, %v482, %v580
      %v613 = vsel %vm549, %v485, %v581
      %v614 = vsel %vm550, %v490, %v582
      %v615 = vsel %vm551, %v493, %v583
      %v616 = vsel %vm552, %v498, %v584
      %v617 = vsel %vm553, %v501, %v585
      %v618 = vsel %vm554, %v506, %v586
      %v619 = vsel %vm555, %v509, %v587
      %v620 = vsel %vm556, %v514, %v588
      %v621 = vsel %vm557, %v517, %v589
      %v622 = vsel %vm558, %v522, %v590
      %v623 = vsel %vm559, %v525, %v591
      %vm624 = vcmask 261120
      %625 = vst.msk [vmem:[%s172] sm:$0xff] %vm624, %v592
      %626 = vst.msk [vmem:[%s172 + $0x8] sm:$0xff] %vm624, %v593
      %627 = vst.msk [vmem:[%s172 + $0x10] sm:$0xff] %vm624, %v594
      %628 = vst.msk [vmem:[%s172 + $0x18] sm:$0xff] %vm624, %v595
      %629 = vst.msk [vmem:[%s172 + $0x20] sm:$0xff] %vm624, %v596
      %630 = vst.msk [vmem:[%s172 + $0x28] sm:$0xff] %vm624, %v597
      %631 = vst.msk [vmem:[%s172 + $0x30] sm:$0xff] %vm624, %v598
      %632 = vst.msk [vmem:[%s172 + $0x38] sm:$0xff] %vm624, %v599
      %633 = vst.msk [vmem:[%s172 + $0x40] sm:$0xff] %vm624, %v600
      %634 = vst.msk [vmem:[%s172 + $0x48] sm:$0xff] %vm624, %v601
      %635 = vst.msk [vmem:[%s172 + $0x50] sm:$0xff] %vm624, %v602
      %636 = vst.msk [vmem:[%s172 + $0x58] sm:$0xff] %vm624, %v603
      %637 = vst.msk [vmem:[%s172 + $0x60] sm:$0xff] %vm624, %v604
      %638 = vst.msk [vmem:[%s172 + $0x68] sm:$0xff] %vm624, %v605
      %639 = vst.msk [vmem:[%s172 + $0x70] sm:$0xff] %vm624, %v606
      %640 = vst.msk [vmem:[%s172 + $0x78] sm:$0xff] %vm624, %v607
      %641 = vst.msk [vmem:[%s172 + $0x80] sm:$0xff] %vm624, %v608
      %642 = vst.msk [vmem:[%s172 + $0x88] sm:$0xff] %vm624, %v609
      %643 = vst.msk [vmem:[%s172 + $0x90] sm:$0xff] %vm624, %v610
      %644 = vst.msk [vmem:[%s172 + $0x98] sm:$0xff] %vm624, %v611
      %645 = vst.msk [vmem:[%s172 + $0xa0] sm:$0xff] %vm624, %v612
      %646 = vst.msk [vmem:[%s172 + $0xa8] sm:$0xff] %vm624, %v613
      %647 = vst.msk [vmem:[%s172 + $0xb0] sm:$0xff] %vm624, %v614
      %648 = vst.msk [vmem:[%s172 + $0xb8] sm:$0xff] %vm624, %v615
      %649 = vst.msk [vmem:[%s172 + $0xc0] sm:$0xff] %vm624, %v616
      %650 = vst.msk [vmem:[%s172 + $0xc8] sm:$0xff] %vm624, %v617
      %651 = vst.msk [vmem:[%s172 + $0xd0] sm:$0xff] %vm624, %v618
      %652 = vst.msk [vmem:[%s172 + $0xd8] sm:$0xff] %vm624, %v619
      %653 = vst.msk [vmem:[%s172 + $0xe0] sm:$0xff] %vm624, %v620
      %654 = vst.msk [vmem:[%s172 + $0xe8] sm:$0xff] %vm624, %v621
      %655 = vst.msk [vmem:[%s172 + $0xf0] sm:$0xff] %vm624, %v622
      %656 = vst.msk [vmem:[%s172 + $0xf8] sm:$0xff] %vm624, %v623
      %s657 = smul.u32 32, %s14
      %p658 = scmp.lt.s32.totalorder %s657, 63
      %s659 = scalar_select %p658, %s657, 63
      %s660 = smul.addr %s659, 8
      %s661 = scalar_lea.vmem %s3, %s660
      // Predicated region
      $region33: #{discriminator_forward.5} parent=31 // pred_check
        %p662 = pneg %p100
      $region34: #{discriminator_forward.5} parent=31 // pred_check_branch
        %664 = sbr.rel (%p662) target = $region36
      $region35: #{discriminator_forward.5} parent=31 // pred_region
        %s665 = smul.u32 32, %s14
      $region36: #{discriminator_forward.5} parent=31 // pred_fallthru
        _
    $region32: #{discriminator_forward.5} parent=5 // pred_fallthru
      _
    %p666 = scmp.le.s32.totalorder 2, %s9
    // Predicated region
    $region37: #{discriminator_forward.5} parent=5 // pred_check
      %p667 = pneg %p666
    $region38: #{discriminator_forward.5} parent=5 // pred_check_branch
      %669 = sbr.rel (%p667) target = $region40
    $region39: #{discriminator_forward.5} parent=5 // pred_region
      %s670 = ssub.s32 %s9, 2
      // Predicated region
      $region41: #{discriminator_forward.5} parent=39 // pred_check
        %p671 = pneg %p106
      $region42: #{discriminator_forward.5} parent=39 // pred_check_branch
        %673 = sbr.rel (%p671) target = $region44
      $region43: #{discriminator_forward.5} parent=39 // pred_region
        %s674 = smul.u32 32, %s15
        %p675 = scmp.lt.s32.totalorder %s674, 63
        %s676 = scalar_select %p675, %s674, 63
        %s677 = smul.addr %s676, 8
        %s678 = scalar_lea.vmem %s3, %s677
      $region44: #{discriminator_forward.5} parent=39 // pred_fallthru
        _
    $region40: #{discriminator_forward.5} parent=5 // pred_fallthru
      _
  $region6: #{discriminator_forward.5} parent=0 // loop_footer
    %s13 = sadd.s32 1, %s9
  $region7: #{discriminator_forward.5} parent=0 // loop_footer_branch
    %8 = sbr.rel target = $region3
  $region8: #{discriminator_forward.5} parent=0 // loop_exit
    _

// kernel: discriminator_forward.6
$region0: #{discriminator_forward.6}
  #allocation0 [shape = 'u32[]', space=smem, size = 0x4, offset = 0x4, fixed_abs, tag = 'smem constant byte address 0x4 - core index']
  #allocation1 [shape = 'u32[144,128]{1,0:T(1,128)}', space=vmem, size = 0x12000, scoped, tag = 'internal scratch']
  %s0 = inlined_call_operand.vmem [shape: bf16[128,512], index: 0, kind: input, shape index: {}]
  %s1 = inlined_call_operand.vmem [shape: bf16[512,64], index: 1, kind: input, shape index: {}]
  %s2 = inlined_call_operand.vmem [shape: f32[1,64], index: 2, kind: input, shape index: {}]
  %s3 = inlined_call_operand.vmem [shape: f32[128,64], index: 3, kind: output, shape index: {}]
  %s4 = sld [smem:[#allocation0]]
  $region22: #{discriminator_forward.6} parent=0
    _
  %s6 = ssub.s32 1, %s4
  %s7 = scalar_select 0, %s6, %s4
  // Predicated region
  $region2: #{discriminator_forward.6} parent=0 // pred_check
    _
  $region3: #{discriminator_forward.6} parent=0 // pred_check_branch
    %9 = sbr.rel (0) target = $region5
  $region4: #{discriminator_forward.6} parent=0 // pred_region
    _
  $region5: #{discriminator_forward.6} parent=0 // pred_fallthru
    _
  // Predicated region
  $region6: #{discriminator_forward.6} parent=0 // pred_check
    _
  $region7: #{discriminator_forward.6} parent=0 // pred_check_branch
    %11 = sbr.rel (0) target = $region9
  $region8: #{discriminator_forward.6} parent=0 // pred_region
    _
  $region9: #{discriminator_forward.6} parent=0 // pred_fallthru
    _
  // Predicated region
  $region10: #{discriminator_forward.6} parent=0 // pred_check
    _
  $region11: #{discriminator_forward.6} parent=0 // pred_check_branch
    %13 = sbr.rel (0) target = $region13
  $region12: #{discriminator_forward.6} parent=0 // pred_region
    _
  $region13: #{discriminator_forward.6} parent=0 // pred_fallthru
    _
  %v15 = vld [vmem:[%s0] sm:$0xff]
  %v16 = vld [vmem:[%s0 + $0x8] sm:$0xff]
  %v17 = vld [vmem:[%s0 + $0x10] sm:$0xff]
  %v18 = vld [vmem:[%s0 + $0x18] sm:$0xff]
  %v19 = vld [vmem:[%s0 + $0x20] sm:$0xff]
  %v20 = vld [vmem:[%s0 + $0x28] sm:$0xff]
  %v21 = vld [vmem:[%s0 + $0x30] sm:$0xff]
  %v22 = vld [vmem:[%s0 + $0x38] sm:$0xff]
  %v23 = vld [vmem:[%s0 + $0x40] sm:$0xff]
  %v24 = vld [vmem:[%s0 + $0x48] sm:$0xff]
  %v25 = vld [vmem:[%s0 + $0x50] sm:$0xff]
  %v26 = vld [vmem:[%s0 + $0x58] sm:$0xff]
  %v27 = vld [vmem:[%s0 + $0x60] sm:$0xff]
  %v28 = vld [vmem:[%s0 + $0x68] sm:$0xff]
  %v29 = vld [vmem:[%s0 + $0x70] sm:$0xff]
  %v30 = vld [vmem:[%s0 + $0x78] sm:$0xff]
  %v31 = vld [vmem:[%s0 + $0x80] sm:$0xff]
  %v32 = vld [vmem:[%s0 + $0x88] sm:$0xff]
  %v33 = vld [vmem:[%s0 + $0x90] sm:$0xff]
  %v34 = vld [vmem:[%s0 + $0x98] sm:$0xff]
  %v35 = vld [vmem:[%s0 + $0xa0] sm:$0xff]
  %v36 = vld [vmem:[%s0 + $0xa8] sm:$0xff]
  %v37 = vld [vmem:[%s0 + $0xb0] sm:$0xff]
  %v38 = vld [vmem:[%s0 + $0xb8] sm:$0xff]
  %v39 = vld [vmem:[%s0 + $0xc0] sm:$0xff]
  %v40 = vld [vmem:[%s0 + $0xc8] sm:$0xff]
  %v41 = vld [vmem:[%s0 + $0xd0] sm:$0xff]
  %v42 = vld [vmem:[%s0 + $0xd8] sm:$0xff]
  %v43 = vld [vmem:[%s0 + $0xe0] sm:$0xff]
  %v44 = vld [vmem:[%s0 + $0xe8] sm:$0xff]
  %v45 = vld [vmem:[%s0 + $0xf0] sm:$0xff]
  %v46 = vld [vmem:[%s0 + $0xf8] sm:$0xff]
  %v47 = vld [vmem:[%s1] sm:$0xf]
  %v48 = vld [vmem:[%s1 + $0x4] sm:$0xf]
  %v49 = vld [vmem:[%s1 + $0x8] sm:$0xf]
  %v50 = vld [vmem:[%s1 + $0xc] sm:$0xf]
  %v51 = vld [vmem:[%s1 + $0x10] sm:$0xf]
  %v52 = vld [vmem:[%s1 + $0x14] sm:$0xf]
  %v53 = vld [vmem:[%s1 + $0x18] sm:$0xf]
  %v54 = vld [vmem:[%s1 + $0x1c] sm:$0xf]
  %v55 = vld [vmem:[%s1 + $0x20] sm:$0xf]
  %v56 = vld [vmem:[%s1 + $0x24] sm:$0xf]
  %v57 = vld [vmem:[%s1 + $0x28] sm:$0xf]
  %v58 = vld [vmem:[%s1 + $0x2c] sm:$0xf]
  %v59 = vld [vmem:[%s1 + $0x30] sm:$0xf]
  %v60 = vld [vmem:[%s1 + $0x34] sm:$0xf]
  %v61 = vld [vmem:[%s1 + $0x38] sm:$0xf]
  %v62 = vld [vmem:[%s1 + $0x3c] sm:$0xf]
  %v63 = vld [vmem:[%s1 + $0x40] sm:$0xf]
  %v64 = vld [vmem:[%s1 + $0x44] sm:$0xf]
  %v65 = vld [vmem:[%s1 + $0x48] sm:$0xf]
  %v66 = vld [vmem:[%s1 + $0x4c] sm:$0xf]
  %v67 = vld [vmem:[%s1 + $0x50] sm:$0xf]
  %v68 = vld [vmem:[%s1 + $0x54] sm:$0xf]
  %v69 = vld [vmem:[%s1 + $0x58] sm:$0xf]
  %v70 = vld [vmem:[%s1 + $0x5c] sm:$0xf]
  %v71 = vld [vmem:[%s1 + $0x60] sm:$0xf]
  %v72 = vld [vmem:[%s1 + $0x64] sm:$0xf]
  %v73 = vld [vmem:[%s1 + $0x68] sm:$0xf]
  %v74 = vld [vmem:[%s1 + $0x6c] sm:$0xf]
  %v75 = vld [vmem:[%s1 + $0x70] sm:$0xf]
  %v76 = vld [vmem:[%s1 + $0x74] sm:$0xf]
  %v77 = vld [vmem:[%s1 + $0x78] sm:$0xf]
  %v78 = vld [vmem:[%s1 + $0x7c] sm:$0xf]
  %v79 = vld [vmem:[%s1 + $0x80] sm:$0xf]
  %v80 = vld [vmem:[%s1 + $0x84] sm:$0xf]
  %v81 = vld [vmem:[%s1 + $0x88] sm:$0xf]
  %v82 = vld [vmem:[%s1 + $0x8c] sm:$0xf]
  %v83 = vld [vmem:[%s1 + $0x90] sm:$0xf]
  %v84 = vld [vmem:[%s1 + $0x94] sm:$0xf]
  %v85 = vld [vmem:[%s1 + $0x98] sm:$0xf]
  %v86 = vld [vmem:[%s1 + $0x9c] sm:$0xf]
  %v87 = vld [vmem:[%s1 + $0xa0] sm:$0xf]
  %v88 = vld [vmem:[%s1 + $0xa4] sm:$0xf]
  %v89 = vld [vmem:[%s1 + $0xa8] sm:$0xf]
  %v90 = vld [vmem:[%s1 + $0xac] sm:$0xf]
  %v91 = vld [vmem:[%s1 + $0xb0] sm:$0xf]
  %v92 = vld [vmem:[%s1 + $0xb4] sm:$0xf]
  %v93 = vld [vmem:[%s1 + $0xb8] sm:$0xf]
  %v94 = vld [vmem:[%s1 + $0xbc] sm:$0xf]
  %v95 = vld [vmem:[%s1 + $0xc0] sm:$0xf]
  %v96 = vld [vmem:[%s1 + $0xc4] sm:$0xf]
  %v97 = vld [vmem:[%s1 + $0xc8] sm:$0xf]
  %v98 = vld [vmem:[%s1 + $0xcc] sm:$0xf]
  %v99 = vld [vmem:[%s1 + $0xd0] sm:$0xf]
  %v100 = vld [vmem:[%s1 + $0xd4] sm:$0xf]
  %v101 = vld [vmem:[%s1 + $0xd8] sm:$0xf]
  %v102 = vld [vmem:[%s1 + $0xdc] sm:$0xf]
  %v103 = vld [vmem:[%s1 + $0xe0] sm:$0xf]
  %v104 = vld [vmem:[%s1 + $0xe4] sm:$0xf]
  %v105 = vld [vmem:[%s1 + $0xe8] sm:$0xf]
  %v106 = vld [vmem:[%s1 + $0xec] sm:$0xf]
  %v107 = vld [vmem:[%s1 + $0xf0] sm:$0xf]
  %v108 = vld [vmem:[%s1 + $0xf4] sm:$0xf]
  %v109 = vld [vmem:[%s1 + $0xf8] sm:$0xf]
  %v110 = vld [vmem:[%s1 + $0xfc] sm:$0xf]
  %v111 = vld [vmem:[%s2] sm:$0x1]
  %v113 = vlaneseq
  %v114 = vshrl.u32 %v113, 7
  %v115 = vsub.s32 0, %v114
  %v116 = vrot.slane %v111, %v115
  %v150 = vunpack.c.l.b16 %v15
  %v151 = vunpack.c.h.b16 %v15
  %v152 = vunpack.c.l.b16 %v16
  %v153 = vunpack.c.h.b16 %v16
  %v154 = vunpack.c.l.b16 %v17
  %v155 = vunpack.c.h.b16 %v17
  %v156 = vunpack.c.l.b16 %v18
  %v157 = vunpack.c.h.b16 %v18
  %v158 = vunpack.c.l.b16 %v19
  %v159 = vunpack.c.h.b16 %v19
  %v160 = vunpack.c.l.b16 %v20
  %v161 = vunpack.c.h.b16 %v20
  %v162 = vunpack.c.l.b16 %v21
  %v163 = vunpack.c.h.b16 %v21
  %v164 = vunpack.c.l.b16 %v22
  %v165 = vunpack.c.h.b16 %v22
  %v166 = vunpack.c.l.b16 %v23
  %v167 = vunpack.c.h.b16 %v23
  %v168 = vunpack.c.l.b16 %v24
  %v169 = vunpack.c.h.b16 %v24
  %v170 = vunpack.c.l.b16 %v25
  %v171 = vunpack.c.h.b16 %v25
  %v172 = vunpack.c.l.b16 %v26
  %v173 = vunpack.c.h.b16 %v26
  %v174 = vunpack.c.l.b16 %v27
  %v175 = vunpack.c.h.b16 %v27
  %v176 = vunpack.c.l.b16 %v28
  %v177 = vunpack.c.h.b16 %v28
  %v178 = vunpack.c.l.b16 %v29
  %v179 = vunpack.c.h.b16 %v29
  %v180 = vunpack.c.l.b16 %v30
  %v181 = vunpack.c.h.b16 %v30
  %v182 = vunpack.c.l.b16 %v31
  %v183 = vunpack.c.h.b16 %v31
  %v184 = vunpack.c.l.b16 %v32
  %v185 = vunpack.c.h.b16 %v32
  %v186 = vunpack.c.l.b16 %v33
  %v187 = vunpack.c.h.b16 %v33
  %v188 = vunpack.c.l.b16 %v34
  %v189 = vunpack.c.h.b16 %v34
  %v190 = vunpack.c.l.b16 %v35
  %v191 = vunpack.c.h.b16 %v35
  %v192 = vunpack.c.l.b16 %v36
  %v193 = vunpack.c.h.b16 %v36
  %v194 = vunpack.c.l.b16 %v37
  %v195 = vunpack.c.h.b16 %v37
  %v196 = vunpack.c.l.b16 %v38
  %v197 = vunpack.c.h.b16 %v38
  %v198 = vunpack.c.l.b16 %v39
  %v199 = vunpack.c.h.b16 %v39
  %v200 = vunpack.c.l.b16 %v40
  %v201 = vunpack.c.h.b16 %v40
  %v202 = vunpack.c.l.b16 %v41
  %v203 = vunpack.c.h.b16 %v41
  %v204 = vunpack.c.l.b16 %v42
  %v205 = vunpack.c.h.b16 %v42
  %v206 = vunpack.c.l.b16 %v43
  %v207 = vunpack.c.h.b16 %v43
  %v208 = vunpack.c.l.b16 %v44
  %v209 = vunpack.c.h.b16 %v44
  %v210 = vunpack.c.l.b16 %v45
  %v211 = vunpack.c.h.b16 %v45
  %v212 = vunpack.c.l.b16 %v46
  %v213 = vunpack.c.h.b16 %v46
  %v214 = vpack.c.b16 %v154, %v150
  %v215 = vpack.c.b16 %v155, %v151
  %v216 = vpack.c.b16 %v156, %v152
  %v217 = vpack.c.b16 %v157, %v153
  %v218 = vpack.c.b16 %v162, %v158
  %v219 = vpack.c.b16 %v163, %v159
  %v220 = vpack.c.b16 %v164, %v160
  %v221 = vpack.c.b16 %v165, %v161
  %v222 = vpack.c.b16 %v170, %v166
  %v223 = vpack.c.b16 %v171, %v167
  %v224 = vpack.c.b16 %v172, %v168
  %v225 = vpack.c.b16 %v173, %v169
  %v226 = vpack.c.b16 %v178, %v174
  %v227 = vpack.c.b16 %v179, %v175
  %v228 = vpack.c.b16 %v180, %v176
  %v229 = vpack.c.b16 %v181, %v177
  %v230 = vpack.c.b16 %v186, %v182
  %v231 = vpack.c.b16 %v187, %v183
  %v232 = vpack.c.b16 %v188, %v184
  %v233 = vpack.c.b16 %v189, %v185
  %v234 = vpack.c.b16 %v194, %v190
  %v235 = vpack.c.b16 %v195, %v191
  %v236 = vpack.c.b16 %v196, %v192
  %v237 = vpack.c.b16 %v197, %v193
  %v238 = vpack.c.b16 %v202, %v198
  %v239 = vpack.c.b16 %v203, %v199
  %v240 = vpack.c.b16 %v204, %v200
  %v241 = vpack.c.b16 %v205, %v201
  %v242 = vpack.c.b16 %v210, %v206
  %v243 = vpack.c.b16 %v211, %v207
  %v244 = vpack.c.b16 %v212, %v208
  %v245 = vpack.c.b16 %v213, %v209
  %v342 = vunpack.c.l.b16 %v47
  %v343 = vunpack.c.l.b16 %v48
  %v344 = vunpack.c.l.b16 %v49
  %v345 = vunpack.c.l.b16 %v50
  %v346 = vunpack.c.l.b16 %v51
  %v347 = vunpack.c.l.b16 %v52
  %v348 = vunpack.c.l.b16 %v53
  %v349 = vunpack.c.l.b16 %v54
  %v350 = vunpack.c.l.b16 %v55
  %v351 = vunpack.c.l.b16 %v56
  %v352 = vunpack.c.l.b16 %v57
  %v353 = vunpack.c.l.b16 %v58
  %v354 = vunpack.c.l.b16 %v59
  %v355 = vunpack.c.l.b16 %v60
  %v356 = vunpack.c.l.b16 %v61
  %v357 = vunpack.c.l.b16 %v62
  %v358 = vunpack.c.l.b16 %v63
  %v359 = vunpack.c.l.b16 %v64
  %v360 = vunpack.c.l.b16 %v65
  %v361 = vunpack.c.l.b16 %v66
  %v362 = vunpack.c.l.b16 %v67
  %v363 = vunpack.c.l.b16 %v68
  %v364 = vunpack.c.l.b16 %v69
  %v365 = vunpack.c.l.b16 %v70
  %v366 = vunpack.c.l.b16 %v71
  %v367 = vunpack.c.l.b16 %v72
  %v368 = vunpack.c.l.b16 %v73
  %v369 = vunpack.c.l.b16 %v74
  %v370 = vunpack.c.l.b16 %v75
  %v371 = vunpack.c.l.b16 %v76
  %v372 = vunpack.c.l.b16 %v77
  %v373 = vunpack.c.l.b16 %v78
  %v374 = vunpack.c.l.b16 %v79
  %v375 = vunpack.c.l.b16 %v80
  %v376 = vunpack.c.l.b16 %v81
  %v377 = vunpack.c.l.b16 %v82
  %v378 = vunpack.c.l.b16 %v83
  %v379 = vunpack.c.l.b16 %v84
  %v380 = vunpack.c.l.b16 %v85
  %v381 = vunpack.c.l.b16 %v86
  %v382 = vunpack.c.l.b16 %v87
  %v383 = vunpack.c.l.b16 %v88
  %v384 = vunpack.c.l.b16 %v89
  %v385 = vunpack.c.l.b16 %v90
  %v386 = vunpack.c.l.b16 %v91
  %v387 = vunpack.c.l.b16 %v92
  %v388 = vunpack.c.l.b16 %v93
  %v389 = vunpack.c.l.b16 %v94
  %v390 = vunpack.c.l.b16 %v95
  %v391 = vunpack.c.l.b16 %v96
  %v392 = vunpack.c.l.b16 %v97
  %v393 = vunpack.c.l.b16 %v98
  %v394 = vunpack.c.l.b16 %v99
  %v395 = vunpack.c.l.b16 %v100
  %v396 = vunpack.c.l.b16 %v101
  %v397 = vunpack.c.l.b16 %v102
  %v398 = vunpack.c.l.b16 %v103
  %v399 = vunpack.c.l.b16 %v104
  %v400 = vunpack.c.l.b16 %v105
  %v401 = vunpack.c.l.b16 %v106
  %v402 = vunpack.c.l.b16 %v107
  %v403 = vunpack.c.l.b16 %v108
  %v404 = vunpack.c.l.b16 %v109
  %v405 = vunpack.c.l.b16 %v110
  %v406 = vpack.c.b16 %v343, %v342
  %v407 = vpack.c.b16 %v345, %v344
  %v408 = vpack.c.b16 %v347, %v346
  %v409 = vpack.c.b16 %v349, %v348
  %v410 = vpack.c.b16 %v351, %v350
  %v411 = vpack.c.b16 %v353, %v352
  %v412 = vpack.c.b16 %v355, %v354
  %v413 = vpack.c.b16 %v357, %v356
  %v414 = vpack.c.b16 %v359, %v358
  %v415 = vpack.c.b16 %v361, %v360
  %v416 = vpack.c.b16 %v363, %v362
  %v417 = vpack.c.b16 %v365, %v364
  %v418 = vpack.c.b16 %v367, %v366
  %v419 = vpack.c.b16 %v369, %v368
  %v420 = vpack.c.b16 %v371, %v370
  %v421 = vpack.c.b16 %v373, %v372
  %v422 = vpack.c.b16 %v375, %v374
  %v423 = vpack.c.b16 %v377, %v376
  %v424 = vpack.c.b16 %v379, %v378
  %v425 = vpack.c.b16 %v381, %v380
  %v426 = vpack.c.b16 %v383, %v382
  %v427 = vpack.c.b16 %v385, %v384
  %v428 = vpack.c.b16 %v387, %v386
  %v429 = vpack.c.b16 %v389, %v388
  %v430 = vpack.c.b16 %v391, %v390
  %v431 = vpack.c.b16 %v393, %v392
  %v432 = vpack.c.b16 %v395, %v394
  %v433 = vpack.c.b16 %v397, %v396
  %v434 = vpack.c.b16 %v399, %v398
  %v435 = vpack.c.b16 %v401, %v400
  %v436 = vpack.c.b16 %v403, %v402
  %v437 = vpack.c.b16 %v405, %v404
  %470 = vmatprep.subr.bf16.mxu0 0
  %471 = vmatpush1.bf16.msra.mxu0 %v413
  %472 = vmatprep.subr.bf16.mxu0 0
  %473 = vmatpush1.bf16.msra.mxu0 %v412
  %474 = vmatprep.subr.bf16.mxu0 0
  %475 = vmatpush1.bf16.msra.mxu0 %v411
  %476 = vmatprep.subr.bf16.mxu0 0
  %477 = vmatpush1.bf16.msra.mxu0 %v410
  %478 = vmatprep.subr.bf16.mxu0 0
  %479 = vmatpush1.bf16.msra.mxu0 %v409
  %480 = vmatprep.subr.bf16.mxu0 0
  %481 = vmatpush1.bf16.msra.mxu0 %v408
  %482 = vmatprep.subr.bf16.mxu0 0
  %483 = vmatpush1.bf16.msra.mxu0 %v407
  %484 = vmatprep.subr.bf16.mxu0 0
  %485 = vmatpush1.bf16.msra.mxu0 %v406
  %486 = vmatprep.subr.bf16.mxu0 0
  %487 = vmatpush2.bf16.msra.mxu0 %v421
  %488 = vmatprep.subr.bf16.mxu0 0
  %489 = vmatpush2.bf16.msra.mxu0 %v420
  %490 = vmatprep.subr.bf16.mxu0 0
  %491 = vmatpush2.bf16.msra.mxu0 %v419
  %492 = vmatprep.subr.bf16.mxu0 0
  %493 = vmatpush2.bf16.msra.mxu0 %v418
  %494 = vmatprep.subr.bf16.mxu0 0
  %495 = vmatpush2.bf16.msra.mxu0 %v417
  %496 = vmatprep.subr.bf16.mxu0 0
  %497 = vmatpush2.bf16.msra.mxu0 %v416
  %498 = vmatprep.subr.bf16.mxu0 0
  %499 = vmatpush2.bf16.msra.mxu0 %v415
  %500 = vmatprep.subr.bf16.mxu0 0
  %501 = vmatpush2.bf16.msra.mxu0 %v414
  %502 = vmatprep.mubr.bf16.mxu0 %v215
  %503 = vmatmul.mubr.bf16.gmra.mxu0 %v214
  %v504 = vpop.f32.mrf.mxu0
  %v505 = vadd.f32 %v116, %v504
  %v506 = vpop.f32.mrf.mxu0
  %v507 = vpop.f32.mrf.mxu0
  %v508 = vadd.f32 %v116, %v507
  %v509 = vpop.f32.mrf.mxu0
  %510 = vmatprep.mubr.bf16.mxu0 %v219
  %511 = vmatmul.mubr.bf16.gmra.mxu0 %v218
  %v512 = vpop.f32.mrf.mxu0
  %v513 = vadd.f32 %v116, %v512
  %v514 = vpop.f32.mrf.mxu0
  %v515 = vpop.f32.mrf.mxu0
  %v516 = vadd.f32 %v116, %v515
  %v517 = vpop.f32.mrf.mxu0
  %518 = vmatprep.mubr.bf16.mxu0 %v223
  %519 = vmatmul.mubr.bf16.gmra.mxu0 %v222
  %v520 = vpop.f32.mrf.mxu0
  %v521 = vadd.f32 %v116, %v520
  %v522 = vpop.f32.mrf.mxu0
  %v523 = vpop.f32.mrf.mxu0
  %v524 = vadd.f32 %v116, %v523
  %v525 = vpop.f32.mrf.mxu0
  %526 = vmatprep.mubr.bf16.mxu0 %v227
  %527 = vmatmul.mubr.bf16.gmra.mxu0 %v226
  %v528 = vpop.f32.mrf.mxu0
  %v529 = vadd.f32 %v116, %v528
  %v530 = vpop.f32.mrf.mxu0
  %v531 = vpop.f32.mrf.mxu0
  %v532 = vadd.f32 %v116, %v531
  %v533 = vpop.f32.mrf.mxu0
  %534 = vmatprep.mubr.bf16.mxu0 %v231
  %535 = vmatmul.mubr.bf16.gmra.mxu0 %v230
  %v536 = vpop.f32.mrf.mxu0
  %v537 = vadd.f32 %v116, %v536
  %v538 = vpop.f32.mrf.mxu0
  %v539 = vpop.f32.mrf.mxu0
  %v540 = vadd.f32 %v116, %v539
  %v541 = vpop.f32.mrf.mxu0
  %542 = vmatprep.mubr.bf16.mxu0 %v235
  %543 = vmatmul.mubr.bf16.gmra.mxu0 %v234
  %v544 = vpop.f32.mrf.mxu0
  %v545 = vadd.f32 %v116, %v544
  %v546 = vpop.f32.mrf.mxu0
  %v547 = vpop.f32.mrf.mxu0
  %v548 = vadd.f32 %v116, %v547
  %v549 = vpop.f32.mrf.mxu0
  %550 = vmatprep.mubr.bf16.mxu0 %v239
  %551 = vmatmul.mubr.bf16.gmra.mxu0 %v238
  %v552 = vpop.f32.mrf.mxu0
  %v553 = vadd.f32 %v116, %v552
  %v554 = vpop.f32.mrf.mxu0
  %v555 = vpop.f32.mrf.mxu0
  %v556 = vadd.f32 %v116, %v555
  %v557 = vpop.f32.mrf.mxu0
  %558 = vmatprep.mubr.bf16.mxu0 %v243
  %559 = vmatmul.mubr.bf16.gmra.mxu0 %v242
  %v560 = vpop.f32.mrf.mxu0
  %v561 = vadd.f32 %v116, %v560
  %v562 = vpop.f32.mrf.mxu0
  %v563 = vpop.f32.mrf.mxu0
  %v564 = vadd.f32 %v116, %v563
  %v565 = vpop.f32.mrf.mxu0
  %566 = vdwg.mxu0
  %567 = vmatprep.subr.bf16.mxu0 0
  %568 = vmatpush1.bf16.msra.mxu0 %v429
  %569 = vmatprep.subr.bf16.mxu0 0
  %570 = vmatpush1.bf16.msra.mxu0 %v428
  %571 = vmatprep.subr.bf16.mxu0 0
  %572 = vmatpush1.bf16.msra.mxu0 %v427
  %573 = vmatprep.subr.bf16.mxu0 0
  %574 = vmatpush1.bf16.msra.mxu0 %v426
  %575 = vmatprep.subr.bf16.mxu0 0
  %576 = vmatpush1.bf16.msra.mxu0 %v425
  %577 = vmatprep.subr.bf16.mxu0 0
  %578 = vmatpush1.bf16.msra.mxu0 %v424
  %579 = vmatprep.subr.bf16.mxu0 0
  %580 = vmatpush1.bf16.msra.mxu0 %v423
  %581 = vmatprep.subr.bf16.mxu0 0
  %582 = vmatpush1.bf16.msra.mxu0 %v422
  %583 = vmatprep.subr.bf16.mxu0 0
  %584 = vmatpush2.bf16.msra.mxu0 %v437
  %585 = vmatprep.subr.bf16.mxu0 0
  %586 = vmatpush2.bf16.msra.mxu0 %v436
  %587 = vmatprep.subr.bf16.mxu0 0
  %588 = vmatpush2.bf16.msra.mxu0 %v435
  %589 = vmatprep.subr.bf16.mxu0 0
  %590 = vmatpush2.bf16.msra.mxu0 %v434
  %591 = vmatprep.subr.bf16.mxu0 0
  %592 = vmatpush2.bf16.msra.mxu0 %v433
  %593 = vmatprep.subr.bf16.mxu0 0
  %594 = vmatpush2.bf16.msra.mxu0 %v432
  %595 = vmatprep.subr.bf16.mxu0 0
  %596 = vmatpush2.bf16.msra.mxu0 %v431
  %597 = vmatprep.subr.bf16.mxu0 0
  %598 = vmatpush2.bf16.msra.mxu0 %v430
  %599 = vmatprep.mubr.bf16.mxu0 %v217
  %600 = vmatmul.mubr.bf16.gmra.mxu0 %v216
  %v601 = vpop.f32.mrf.mxu0
  %v602 = vadd.f32 %v505, %v601
  %v603 = vpop.f32.mrf.mxu0
  %v604 = vpop.f32.mrf.mxu0
  %v605 = vadd.f32 %v508, %v604
  %v606 = vpop.f32.mrf.mxu0
  %607 = vmatprep.mubr.bf16.mxu0 %v221
  %608 = vmatmul.mubr.bf16.gmra.mxu0 %v220
  %v609 = vpop.f32.mrf.mxu0
  %v610 = vadd.f32 %v513, %v609
  %v611 = vpop.f32.mrf.mxu0
  %v612 = vpop.f32.mrf.mxu0
  %v613 = vadd.f32 %v516, %v612
  %v614 = vpop.f32.mrf.mxu0
  %615 = vmatprep.mubr.bf16.mxu0 %v225
  %616 = vmatmul.mubr.bf16.gmra.mxu0 %v224
  %v617 = vpop.f32.mrf.mxu0
  %v618 = vadd.f32 %v521, %v617
  %v619 = vpop.f32.mrf.mxu0
  %v620 = vpop.f32.mrf.mxu0
  %v621 = vadd.f32 %v524, %v620
  %v622 = vpop.f32.mrf.mxu0
  %623 = vmatprep.mubr.bf16.mxu0 %v229
  %624 = vmatmul.mubr.bf16.gmra.mxu0 %v228
  %v625 = vpop.f32.mrf.mxu0
  %v626 = vadd.f32 %v529, %v625
  %v627 = vpop.f32.mrf.mxu0
  %v628 = vpop.f32.mrf.mxu0
  %v629 = vadd.f32 %v532, %v628
  %v630 = vpop.f32.mrf.mxu0
  %631 = vmatprep.mubr.bf16.mxu0 %v233
  %632 = vmatmul.mubr.bf16.gmra.mxu0 %v232
  %v633 = vpop.f32.mrf.mxu0
  %v634 = vadd.f32 %v537, %v633
  %v635 = vpop.f32.mrf.mxu0
  %v636 = vpop.f32.mrf.mxu0
  %v637 = vadd.f32 %v540, %v636
  %v638 = vpop.f32.mrf.mxu0
  %639 = vmatprep.mubr.bf16.mxu0 %v237
  %640 = vmatmul.mubr.bf16.gmra.mxu0 %v236
  %v641 = vpop.f32.mrf.mxu0
  %v642 = vadd.f32 %v545, %v641
  %v643 = vpop.f32.mrf.mxu0
  %v644 = vpop.f32.mrf.mxu0
  %v645 = vadd.f32 %v548, %v644
  %v646 = vpop.f32.mrf.mxu0
  %647 = vmatprep.mubr.bf16.mxu0 %v241
  %648 = vmatmul.mubr.bf16.gmra.mxu0 %v240
  %v649 = vpop.f32.mrf.mxu0
  %v650 = vadd.f32 %v553, %v649
  %v651 = vpop.f32.mrf.mxu0
  %v652 = vpop.f32.mrf.mxu0
  %v653 = vadd.f32 %v556, %v652
  %v654 = vpop.f32.mrf.mxu0
  %655 = vmatprep.mubr.bf16.mxu0 %v245
  %656 = vmatmul.mubr.bf16.gmra.mxu0 %v244
  %v657 = vpop.f32.mrf.mxu0
  %v658 = vadd.f32 %v561, %v657
  %v659 = vpop.f32.mrf.mxu0
  %v660 = vpop.f32.mrf.mxu0
  %v661 = vadd.f32 %v564, %v660
  %v662 = vpop.f32.mrf.mxu0
  %663 = vdwg.mxu0
  %vm664 = vcmp.ge.f32.partialorder %v602, 0.0
  %vm665 = vcmp.ge.f32.partialorder %v605, 0.0
  %vm666 = vcmp.ge.f32.partialorder %v610, 0.0
  %vm667 = vcmp.ge.f32.partialorder %v613, 0.0
  %vm668 = vcmp.ge.f32.partialorder %v618, 0.0
  %vm669 = vcmp.ge.f32.partialorder %v621, 0.0
  %vm670 = vcmp.ge.f32.partialorder %v626, 0.0
  %vm671 = vcmp.ge.f32.partialorder %v629, 0.0
  %vm672 = vcmp.ge.f32.partialorder %v634, 0.0
  %vm673 = vcmp.ge.f32.partialorder %v637, 0.0
  %vm674 = vcmp.ge.f32.partialorder %v642, 0.0
  %vm675 = vcmp.ge.f32.partialorder %v645, 0.0
  %vm676 = vcmp.ge.f32.partialorder %v650, 0.0
  %vm677 = vcmp.ge.f32.partialorder %v653, 0.0
  %vm678 = vcmp.ge.f32.partialorder %v658, 0.0
  %vm679 = vcmp.ge.f32.partialorder %v661, 0.0
  %v680 = vmul.f32 %v602, 0.2
  %v681 = vmul.f32 %v605, 0.2
  %v682 = vmul.f32 %v610, 0.2
  %v683 = vmul.f32 %v613, 0.2
  %v684 = vmul.f32 %v618, 0.2
  %v685 = vmul.f32 %v621, 0.2
  %v686 = vmul.f32 %v626, 0.2
  %v687 = vmul.f32 %v629, 0.2
  %v688 = vmul.f32 %v634, 0.2
  %v689 = vmul.f32 %v637, 0.2
  %v690 = vmul.f32 %v642, 0.2
  %v691 = vmul.f32 %v645, 0.2
  %v692 = vmul.f32 %v650, 0.2
  %v693 = vmul.f32 %v653, 0.2
  %v694 = vmul.f32 %v658, 0.2
  %v695 = vmul.f32 %v661, 0.2
  %v696 = vsel %vm664, %v602, %v680
  %v697 = vsel %vm665, %v605, %v681
  %v698 = vsel %vm666, %v610, %v682
  %v699 = vsel %vm667, %v613, %v683
  %v700 = vsel %vm668, %v618, %v684
  %v701 = vsel %vm669, %v621, %v685
  %v702 = vsel %vm670, %v626, %v686
  %v703 = vsel %vm671, %v629, %v687
  %v704 = vsel %vm672, %v634, %v688
  %v705 = vsel %vm673, %v637, %v689
  %v706 = vsel %vm674, %v642, %v690
  %v707 = vsel %vm675, %v645, %v691
  %v708 = vsel %vm676, %v650, %v692
  %v709 = vsel %vm677, %v653, %v693
  %v710 = vsel %vm678, %v658, %v694
  %v711 = vsel %vm679, %v661, %v695
  %vm712 = vcmask 523264
  %713 = vst.msk [vmem:[%s3] sm:$0xff] %vm712, %v696
  %714 = vst.msk [vmem:[%s3 + $0x8] sm:$0xff] %vm712, %v697
  %715 = vst.msk [vmem:[%s3 + $0x10] sm:$0xff] %vm712, %v698
  %716 = vst.msk [vmem:[%s3 + $0x18] sm:$0xff] %vm712, %v699
  %717 = vst.msk [vmem:[%s3 + $0x20] sm:$0xff] %vm712, %v700
  %718 = vst.msk [vmem:[%s3 + $0x28] sm:$0xff] %vm712, %v701
  %719 = vst.msk [vmem:[%s3 + $0x30] sm:$0xff] %vm712, %v702
  %720 = vst.msk [vmem:[%s3 + $0x38] sm:$0xff] %vm712, %v703
  %721 = vst.msk [vmem:[%s3 + $0x40] sm:$0xff] %vm712, %v704
  %722 = vst.msk [vmem:[%s3 + $0x48] sm:$0xff] %vm712, %v705
  %723 = vst.msk [vmem:[%s3 + $0x50] sm:$0xff] %vm712, %v706
  %724 = vst.msk [vmem:[%s3 + $0x58] sm:$0xff] %vm712, %v707
  %725 = vst.msk [vmem:[%s3 + $0x60] sm:$0xff] %vm712, %v708
  %726 = vst.msk [vmem:[%s3 + $0x68] sm:$0xff] %vm712, %v709
  %727 = vst.msk [vmem:[%s3 + $0x70] sm:$0xff] %vm712, %v710
  %728 = vst.msk [vmem:[%s3 + $0x78] sm:$0xff] %vm712, %v711
  // Predicated region
  $region14: #{discriminator_forward.6} parent=0 // pred_check
    _
  $region15: #{discriminator_forward.6} parent=0 // pred_check_branch
    %730 = sbr.rel (0) target = $region17
  $region16: #{discriminator_forward.6} parent=0 // pred_region
    _
  $region17: #{discriminator_forward.6} parent=0 // pred_fallthru
    _
  // Predicated region
  $region18: #{discriminator_forward.6} parent=0 // pred_check
    _
  $region19: #{discriminator_forward.6} parent=0 // pred_check_branch
    %732 = sbr.rel (0) target = $region21
  $region20: #{discriminator_forward.6} parent=0 // pred_region
    _
  $region21: #{discriminator_forward.6} parent=0 // pred_fallthru
    _

// kernel: discriminator_forward.7
$region0: #{discriminator_forward.7}
  #allocation0 [shape = 'u32[]', space=smem, size = 0x4, offset = 0x4, fixed_abs, tag = 'smem constant byte address 0x4 - core index']
  #allocation1 [shape = 'u32[144,128]{1,0:T(1,128)}', space=vmem, size = 0x12000, scoped, tag = 'internal scratch']
  %s0 = inlined_call_operand.vmem [shape: bf16[32,1024], index: 0, kind: input, shape index: {}]
  %s1 = inlined_call_operand.vmem [shape: bf16[1024,128], index: 1, kind: input, shape index: {}]
  %s2 = inlined_call_operand.vmem [shape: f32[1,128], index: 2, kind: input, shape index: {}]
  %s3 = inlined_call_operand.vmem [shape: f32[32,128], index: 3, kind: output, shape index: {}]
  %s4 = sld [smem:[#allocation0]]
  $region22: #{discriminator_forward.7} parent=0
    _
  %s6 = ssub.s32 1, %s4
  %s7 = scalar_select 0, %s6, %s4
  // Predicated region
  $region2: #{discriminator_forward.7} parent=0 // pred_check
    _
  $region3: #{discriminator_forward.7} parent=0 // pred_check_branch
    %9 = sbr.rel (0) target = $region5
  $region4: #{discriminator_forward.7} parent=0 // pred_region
    _
  $region5: #{discriminator_forward.7} parent=0 // pred_fallthru
    _
  // Predicated region
  $region6: #{discriminator_forward.7} parent=0 // pred_check
    _
  $region7: #{discriminator_forward.7} parent=0 // pred_check_branch
    %11 = sbr.rel (0) target = $region9
  $region8: #{discriminator_forward.7} parent=0 // pred_region
    _
  $region9: #{discriminator_forward.7} parent=0 // pred_fallthru
    _
  // Predicated region
  $region10: #{discriminator_forward.7} parent=0 // pred_check
    _
  $region11: #{discriminator_forward.7} parent=0 // pred_check_branch
    %13 = sbr.rel (0) target = $region13
  $region12: #{discriminator_forward.7} parent=0 // pred_region
    _
  $region13: #{discriminator_forward.7} parent=0 // pred_fallthru
    _
  %v15 = vld [vmem:[%s0] sm:$0xff]
  %v16 = vld [vmem:[%s0 + $0x8] sm:$0xff]
  %v17 = vld [vmem:[%s0 + $0x10] sm:$0xff]
  %v18 = vld [vmem:[%s0 + $0x18] sm:$0xff]
  %v19 = vld [vmem:[%s0 + $0x20] sm:$0xff]
  %v20 = vld [vmem:[%s0 + $0x28] sm:$0xff]
  %v21 = vld [vmem:[%s0 + $0x30] sm:$0xff]
  %v22 = vld [vmem:[%s0 + $0x38] sm:$0xff]
  %v23 = vld [vmem:[%s0 + $0x40] sm:$0xff]
  %v24 = vld [vmem:[%s0 + $0x48] sm:$0xff]
  %v25 = vld [vmem:[%s0 + $0x50] sm:$0xff]
  %v26 = vld [vmem:[%s0 + $0x58] sm:$0xff]
  %v27 = vld [vmem:[%s0 + $0x60] sm:$0xff]
  %v28 = vld [vmem:[%s0 + $0x68] sm:$0xff]
  %v29 = vld [vmem:[%s0 + $0x70] sm:$0xff]
  %v30 = vld [vmem:[%s0 + $0x78] sm:$0xff]
  %v31 = vld [vmem:[%s1] sm:$0xf]
  %v32 = vld [vmem:[%s1 + $0x4] sm:$0xf]
  %v33 = vld [vmem:[%s1 + $0x8] sm:$0xf]
  %v34 = vld [vmem:[%s1 + $0xc] sm:$0xf]
  %v35 = vld [vmem:[%s1 + $0x10] sm:$0xf]
  %v36 = vld [vmem:[%s1 + $0x14] sm:$0xf]
  %v37 = vld [vmem:[%s1 + $0x18] sm:$0xf]
  %v38 = vld [vmem:[%s1 + $0x1c] sm:$0xf]
  %v39 = vld [vmem:[%s1 + $0x20] sm:$0xf]
  %v40 = vld [vmem:[%s1 + $0x24] sm:$0xf]
  %v41 = vld [vmem:[%s1 + $0x28] sm:$0xf]
  %v42 = vld [vmem:[%s1 + $0x2c] sm:$0xf]
  %v43 = vld [vmem:[%s1 + $0x30] sm:$0xf]
  %v44 = vld [vmem:[%s1 + $0x34] sm:$0xf]
  %v45 = vld [vmem:[%s1 + $0x38] sm:$0xf]
  %v46 = vld [vmem:[%s1 + $0x3c] sm:$0xf]
  %v47 = vld [vmem:[%s1 + $0x40] sm:$0xf]
  %v48 = vld [vmem:[%s1 + $0x44] sm:$0xf]
  %v49 = vld [vmem:[%s1 + $0x48] sm:$0xf]
  %v50 = vld [vmem:[%s1 + $0x4c] sm:$0xf]
  %v51 = vld [vmem:[%s1 + $0x50] sm:$0xf]
  %v52 = vld [vmem:[%s1 + $0x54] sm:$0xf]
  %v53 = vld [vmem:[%s1 + $0x58] sm:$0xf]
  %v54 = vld [vmem:[%s1 + $0x5c] sm:$0xf]
  %v55 = vld [vmem:[%s1 + $0x60] sm:$0xf]
  %v56 = vld [vmem:[%s1 + $0x64] sm:$0xf]
  %v57 = vld [vmem:[%s1 + $0x68] sm:$0xf]
  %v58 = vld [vmem:[%s1 + $0x6c] sm:$0xf]
  %v59 = vld [vmem:[%s1 + $0x70] sm:$0xf]
  %v60 = vld [vmem:[%s1 + $0x74] sm:$0xf]
  %v61 = vld [vmem:[%s1 + $0x78] sm:$0xf]
  %v62 = vld [vmem:[%s1 + $0x7c] sm:$0xf]
  %v63 = vld [vmem:[%s1 + $0x80] sm:$0xf]
  %v64 = vld [vmem:[%s1 + $0x84] sm:$0xf]
  %v65 = vld [vmem:[%s1 + $0x88] sm:$0xf]
  %v66 = vld [vmem:[%s1 + $0x8c] sm:$0xf]
  %v67 = vld [vmem:[%s1 + $0x90] sm:$0xf]
  %v68 = vld [vmem:[%s1 + $0x94] sm:$0xf]
  %v69 = vld [vmem:[%s1 + $0x98] sm:$0xf]
  %v70 = vld [vmem:[%s1 + $0x9c] sm:$0xf]
  %v71 = vld [vmem:[%s1 + $0xa0] sm:$0xf]
  %v72 = vld [vmem:[%s1 + $0xa4] sm:$0xf]
  %v73 = vld [vmem:[%s1 + $0xa8] sm:$0xf]
  %v74 = vld [vmem:[%s1 + $0xac] sm:$0xf]
  %v75 = vld [vmem:[%s1 + $0xb0] sm:$0xf]
  %v76 = vld [vmem:[%s1 + $0xb4] sm:$0xf]
  %v77 = vld [vmem:[%s1 + $0xb8] sm:$0xf]
  %v78 = vld [vmem:[%s1 + $0xbc] sm:$0xf]
  %v79 = vld [vmem:[%s1 + $0xc0] sm:$0xf]
  %v80 = vld [vmem:[%s1 + $0xc4] sm:$0xf]
  %v81 = vld [vmem:[%s1 + $0xc8] sm:$0xf]
  %v82 = vld [vmem:[%s1 + $0xcc] sm:$0xf]
  %v83 = vld [vmem:[%s1 + $0xd0] sm:$0xf]
  %v84 = vld [vmem:[%s1 + $0xd4] sm:$0xf]
  %v85 = vld [vmem:[%s1 + $0xd8] sm:$0xf]
  %v86 = vld [vmem:[%s1 + $0xdc] sm:$0xf]
  %v87 = vld [vmem:[%s1 + $0xe0] sm:$0xf]
  %v88 = vld [vmem:[%s1 + $0xe4] sm:$0xf]
  %v89 = vld [vmem:[%s1 + $0xe8] sm:$0xf]
  %v90 = vld [vmem:[%s1 + $0xec] sm:$0xf]
  %v91 = vld [vmem:[%s1 + $0xf0] sm:$0xf]
  %v92 = vld [vmem:[%s1 + $0xf4] sm:$0xf]
  %v93 = vld [vmem:[%s1 + $0xf8] sm:$0xf]
  %v94 = vld [vmem:[%s1 + $0xfc] sm:$0xf]
  %v95 = vld [vmem:[%s1 + $0x100] sm:$0xf]
  %v96 = vld [vmem:[%s1 + $0x104] sm:$0xf]
  %v97 = vld [vmem:[%s1 + $0x108] sm:$0xf]
  %v98 = vld [vmem:[%s1 + $0x10c] sm:$0xf]
  %v99 = vld [vmem:[%s1 + $0x110] sm:$0xf]
  %v100 = vld [vmem:[%s1 + $0x114] sm:$0xf]
  %v101 = vld [vmem:[%s1 + $0x118] sm:$0xf]
  %v102 = vld [vmem:[%s1 + $0x11c] sm:$0xf]
  %v103 = vld [vmem:[%s1 + $0x120] sm:$0xf]
  %v104 = vld [vmem:[%s1 + $0x124] sm:$0xf]
  %v105 = vld [vmem:[%s1 + $0x128] sm:$0xf]
  %v106 = vld [vmem:[%s1 + $0x12c] sm:$0xf]
  %v107 = vld [vmem:[%s1 + $0x130] sm:$0xf]
  %v108 = vld [vmem:[%s1 + $0x134] sm:$0xf]
  %v109 = vld [vmem:[%s1 + $0x138] sm:$0xf]
  %v110 = vld [vmem:[%s1 + $0x13c] sm:$0xf]
  %v111 = vld [vmem:[%s1 + $0x140] sm:$0xf]
  %v112 = vld [vmem:[%s1 + $0x144] sm:$0xf]
  %v113 = vld [vmem:[%s1 + $0x148] sm:$0xf]
  %v114 = vld [vmem:[%s1 + $0x14c] sm:$0xf]
  %v115 = vld [vmem:[%s1 + $0x150] sm:$0xf]
  %v116 = vld [vmem:[%s1 + $0x154] sm:$0xf]
  %v117 = vld [vmem:[%s1 + $0x158] sm:$0xf]
  %v118 = vld [vmem:[%s1 + $0x15c] sm:$0xf]
  %v119 = vld [vmem:[%s1 + $0x160] sm:$0xf]
  %v120 = vld [vmem:[%s1 + $0x164] sm:$0xf]
  %v121 = vld [vmem:[%s1 + $0x168] sm:$0xf]
  %v122 = vld [vmem:[%s1 + $0x16c] sm:$0xf]
  %v123 = vld [vmem:[%s1 + $0x170] sm:$0xf]
  %v124 = vld [vmem:[%s1 + $0x174] sm:$0xf]
  %v125 = vld [vmem:[%s1 + $0x178] sm:$0xf]
  %v126 = vld [vmem:[%s1 + $0x17c] sm:$0xf]
  %v127 = vld [vmem:[%s1 + $0x180] sm:$0xf]
  %v128 = vld [vmem:[%s1 + $0x184] sm:$0xf]
  %v129 = vld [vmem:[%s1 + $0x188] sm:$0xf]
  %v130 = vld [vmem:[%s1 + $0x18c] sm:$0xf]
  %v131 = vld [vmem:[%s1 + $0x190] sm:$0xf]
  %v132 = vld [vmem:[%s1 + $0x194] sm:$0xf]
  %v133 = vld [vmem:[%s1 + $0x198] sm:$0xf]
  %v134 = vld [vmem:[%s1 + $0x19c] sm:$0xf]
  %v135 = vld [vmem:[%s1 + $0x1a0] sm:$0xf]
  %v136 = vld [vmem:[%s1 + $0x1a4] sm:$0xf]
  %v137 = vld [vmem:[%s1 + $0x1a8] sm:$0xf]
  %v138 = vld [vmem:[%s1 + $0x1ac] sm:$0xf]
  %v139 = vld [vmem:[%s1 + $0x1b0] sm:$0xf]
  %v140 = vld [vmem:[%s1 + $0x1b4] sm:$0xf]
  %v141 = vld [vmem:[%s1 + $0x1b8] sm:$0xf]
  %v142 = vld [vmem:[%s1 + $0x1bc] sm:$0xf]
  %v143 = vld [vmem:[%s1 + $0x1c0] sm:$0xf]
  %v144 = vld [vmem:[%s1 + $0x1c4] sm:$0xf]
  %v145 = vld [vmem:[%s1 + $0x1c8] sm:$0xf]
  %v146 = vld [vmem:[%s1 + $0x1cc] sm:$0xf]
  %v147 = vld [vmem:[%s1 + $0x1d0] sm:$0xf]
  %v148 = vld [vmem:[%s1 + $0x1d4] sm:$0xf]
  %v149 = vld [vmem:[%s1 + $0x1d8] sm:$0xf]
  %v150 = vld [vmem:[%s1 + $0x1dc] sm:$0xf]
  %v151 = vld [vmem:[%s1 + $0x1e0] sm:$0xf]
  %v152 = vld [vmem:[%s1 + $0x1e4] sm:$0xf]
  %v153 = vld [vmem:[%s1 + $0x1e8] sm:$0xf]
  %v154 = vld [vmem:[%s1 + $0x1ec] sm:$0xf]
  %v155 = vld [vmem:[%s1 + $0x1f0] sm:$0xf]
  %v156 = vld [vmem:[%s1 + $0x1f4] sm:$0xf]
  %v157 = vld [vmem:[%s1 + $0x1f8] sm:$0xf]
  %v158 = vld [vmem:[%s1 + $0x1fc] sm:$0xf]
  %v159 = vld [vmem:[%s2] sm:$0x1]
  %v161 = vlaneseq
  %v162 = vshrl.u32 %v161, 7
  %v163 = vsub.s32 0, %v162
  %v164 = vrot.slane %v159, %v163
  %v182 = vunpack.c.l.b16 %v15
  %v183 = vunpack.c.h.b16 %v15
  %v184 = vunpack.c.l.b16 %v16
  %v185 = vunpack.c.h.b16 %v16
  %v186 = vunpack.c.l.b16 %v17
  %v187 = vunpack.c.h.b16 %v17
  %v188 = vunpack.c.l.b16 %v18
  %v189 = vunpack.c.h.b16 %v18
  %v190 = vunpack.c.l.b16 %v19
  %v191 = vunpack.c.h.b16 %v19
  %v192 = vunpack.c.l.b16 %v20
  %v193 = vunpack.c.h.b16 %v20
  %v194 = vunpack.c.l.b16 %v21
  %v195 = vunpack.c.h.b16 %v21
  %v196 = vunpack.c.l.b16 %v22
  %v197 = vunpack.c.h.b16 %v22
  %v198 = vunpack.c.l.b16 %v23
  %v199 = vunpack.c.h.b16 %v23
  %v200 = vunpack.c.l.b16 %v24
  %v201 = vunpack.c.h.b16 %v24
  %v202 = vunpack.c.l.b16 %v25
  %v203 = vunpack.c.h.b16 %v25
  %v204 = vunpack.c.l.b16 %v26
  %v205 = vunpack.c.h.b16 %v26
  %v206 = vunpack.c.l.b16 %v27
  %v207 = vunpack.c.h.b16 %v27
  %v208 = vunpack.c.l.b16 %v28
  %v209 = vunpack.c.h.b16 %v28
  %v210 = vunpack.c.l.b16 %v29
  %v211 = vunpack.c.h.b16 %v29
  %v212 = vunpack.c.l.b16 %v30
  %v213 = vunpack.c.h.b16 %v30
  %v214 = vpack.c.b16 %v190, %v182
  %v215 = vpack.c.b16 %v191, %v183
  %v216 = vpack.c.b16 %v192, %v184
  %v217 = vpack.c.b16 %v193, %v185
  %v218 = vpack.c.b16 %v194, %v186
  %v219 = vpack.c.b16 %v195, %v187
  %v220 = vpack.c.b16 %v196, %v188
  %v221 = vpack.c.b16 %v197, %v189
  %v222 = vpack.c.b16 %v206, %v198
  %v223 = vpack.c.b16 %v207, %v199
  %v224 = vpack.c.b16 %v208, %v200
  %v225 = vpack.c.b16 %v209, %v201
  %v226 = vpack.c.b16 %v210, %v202
  %v227 = vpack.c.b16 %v211, %v203
  %v228 = vpack.c.b16 %v212, %v204
  %v229 = vpack.c.b16 %v213, %v205
  %v374 = vunpack.c.l.b16 %v31
  %v375 = vunpack.c.l.b16 %v32
  %v376 = vunpack.c.l.b16 %v33
  %v377 = vunpack.c.l.b16 %v34
  %v378 = vunpack.c.l.b16 %v35
  %v379 = vunpack.c.l.b16 %v36
  %v380 = vunpack.c.l.b16 %v37
  %v381 = vunpack.c.l.b16 %v38
  %v382 = vunpack.c.l.b16 %v39
  %v383 = vunpack.c.l.b16 %v40
  %v384 = vunpack.c.l.b16 %v41
  %v385 = vunpack.c.l.b16 %v42
  %v386 = vunpack.c.l.b16 %v43
  %v387 = vunpack.c.l.b16 %v44
  %v388 = vunpack.c.l.b16 %v45
  %v389 = vunpack.c.l.b16 %v46
  %v390 = vunpack.c.l.b16 %v47
  %v391 = vunpack.c.l.b16 %v48
  %v392 = vunpack.c.l.b16 %v49
  %v393 = vunpack.c.l.b16 %v50
  %v394 = vunpack.c.l.b16 %v51
  %v395 = vunpack.c.l.b16 %v52
  %v396 = vunpack.c.l.b16 %v53
  %v397 = vunpack.c.l.b16 %v54
  %v398 = vunpack.c.l.b16 %v55
  %v399 = vunpack.c.l.b16 %v56
  %v400 = vunpack.c.l.b16 %v57
  %v401 = vunpack.c.l.b16 %v58
  %v402 = vunpack.c.l.b16 %v59
  %v403 = vunpack.c.l.b16 %v60
  %v404 = vunpack.c.l.b16 %v61
  %v405 = vunpack.c.l.b16 %v62
  %v406 = vunpack.c.l.b16 %v63
  %v407 = vunpack.c.l.b16 %v64
  %v408 = vunpack.c.l.b16 %v65
  %v409 = vunpack.c.l.b16 %v66
  %v410 = vunpack.c.l.b16 %v67
  %v411 = vunpack.c.l.b16 %v68
  %v412 = vunpack.c.l.b16 %v69
  %v413 = vunpack.c.l.b16 %v70
  %v414 = vunpack.c.l.b16 %v71
  %v415 = vunpack.c.l.b16 %v72
  %v416 = vunpack.c.l.b16 %v73
  %v417 = vunpack.c.l.b16 %v74
  %v418 = vunpack.c.l.b16 %v75
  %v419 = vunpack.c.l.b16 %v76
  %v420 = vunpack.c.l.b16 %v77
  %v421 = vunpack.c.l.b16 %v78
  %v422 = vunpack.c.l.b16 %v79
  %v423 = vunpack.c.l.b16 %v80
  %v424 = vunpack.c.l.b16 %v81
  %v425 = vunpack.c.l.b16 %v82
  %v426 = vunpack.c.l.b16 %v83
  %v427 = vunpack.c.l.b16 %v84
  %v428 = vunpack.c.l.b16 %v85
  %v429 = vunpack.c.l.b16 %v86
  %v430 = vunpack.c.l.b16 %v87
  %v431 = vunpack.c.l.b16 %v88
  %v432 = vunpack.c.l.b16 %v89
  %v433 = vunpack.c.l.b16 %v90
  %v434 = vunpack.c.l.b16 %v91
  %v435 = vunpack.c.l.b16 %v92
  %v436 = vunpack.c.l.b16 %v93
  %v437 = vunpack.c.l.b16 %v94
  %v438 = vunpack.c.l.b16 %v95
  %v439 = vunpack.c.l.b16 %v96
  %v440 = vunpack.c.l.b16 %v97
  %v441 = vunpack.c.l.b16 %v98
  %v442 = vunpack.c.l.b16 %v99
  %v443 = vunpack.c.l.b16 %v100
  %v444 = vunpack.c.l.b16 %v101
  %v445 = vunpack.c.l.b16 %v102
  %v446 = vunpack.c.l.b16 %v103
  %v447 = vunpack.c.l.b16 %v104
  %v448 = vunpack.c.l.b16 %v105
  %v449 = vunpack.c.l.b16 %v106
  %v450 = vunpack.c.l.b16 %v107
  %v451 = vunpack.c.l.b16 %v108
  %v452 = vunpack.c.l.b16 %v109
  %v453 = vunpack.c.l.b16 %v110
  %v454 = vunpack.c.l.b16 %v111
  %v455 = vunpack.c.l.b16 %v112
  %v456 = vunpack.c.l.b16 %v113
  %v457 = vunpack.c.l.b16 %v114
  %v458 = vunpack.c.l.b16 %v115
  %v459 = vunpack.c.l.b16 %v116
  %v460 = vunpack.c.l.b16 %v117
  %v461 = vunpack.c.l.b16 %v118
  %v462 = vunpack.c.l.b16 %v119
  %v463 = vunpack.c.l.b16 %v120
  %v464 = vunpack.c.l.b16 %v121
  %v465 = vunpack.c.l.b16 %v122
  %v466 = vunpack.c.l.b16 %v123
  %v467 = vunpack.c.l.b16 %v124
  %v468 = vunpack.c.l.b16 %v125
  %v469 = vunpack.c.l.b16 %v126
  %v470 = vunpack.c.l.b16 %v127
  %v471 = vunpack.c.l.b16 %v128
  %v472 = vunpack.c.l.b16 %v129
  %v473 = vunpack.c.l.b16 %v130
  %v474 = vunpack.c.l.b16 %v131
  %v475 = vunpack.c.l.b16 %v132
  %v476 = vunpack.c.l.b16 %v133
  %v477 = vunpack.c.l.b16 %v134
  %v478 = vunpack.c.l.b16 %v135
  %v479 = vunpack.c.l.b16 %v136
  %v480 = vunpack.c.l.b16 %v137
  %v481 = vunpack.c.l.b16 %v138
  %v482 = vunpack.c.l.b16 %v139
  %v483 = vunpack.c.l.b16 %v140
  %v484 = vunpack.c.l.b16 %v141
  %v485 = vunpack.c.l.b16 %v142
  %v486 = vunpack.c.l.b16 %v143
  %v487 = vunpack.c.l.b16 %v144
  %v488 = vunpack.c.l.b16 %v145
  %v489 = vunpack.c.l.b16 %v146
  %v490 = vunpack.c.l.b16 %v147
  %v491 = vunpack.c.l.b16 %v148
  %v492 = vunpack.c.l.b16 %v149
  %v493 = vunpack.c.l.b16 %v150
  %v494 = vunpack.c.l.b16 %v151
  %v495 = vunpack.c.l.b16 %v152
  %v496 = vunpack.c.l.b16 %v153
  %v497 = vunpack.c.l.b16 %v154
  %v498 = vunpack.c.l.b16 %v155
  %v499 = vunpack.c.l.b16 %v156
  %v500 = vunpack.c.l.b16 %v157
  %v501 = vunpack.c.l.b16 %v158
  %v502 = vpack.c.b16 %v375, %v374
  %v503 = vpack.c.b16 %v377, %v376
  %v504 = vpack.c.b16 %v379, %v378
  %v505 = vpack.c.b16 %v381, %v380
  %v506 = vpack.c.b16 %v383, %v382
  %v507 = vpack.c.b16 %v385, %v384
  %v508 = vpack.c.b16 %v387, %v386
  %v509 = vpack.c.b16 %v389, %v388
  %v510 = vpack.c.b16 %v391, %v390
  %v511 = vpack.c.b16 %v393, %v392
  %v512 = vpack.c.b16 %v395, %v394
  %v513 = vpack.c.b16 %v397, %v396
  %v514 = vpack.c.b16 %v399, %v398
  %v515 = vpack.c.b16 %v401, %v400
  %v516 = vpack.c.b16 %v403, %v402
  %v517 = vpack.c.b16 %v405, %v404
  %v518 = vpack.c.b16 %v407, %v406
  %v519 = vpack.c.b16 %v409, %v408
  %v520 = vpack.c.b16 %v411, %v410
  %v521 = vpack.c.b16 %v413, %v412
  %v522 = vpack.c.b16 %v415, %v414
  %v523 = vpack.c.b16 %v417, %v416
  %v524 = vpack.c.b16 %v419, %v418
  %v525 = vpack.c.b16 %v421, %v420
  %v526 = vpack.c.b16 %v423, %v422
  %v527 = vpack.c.b16 %v425, %v424
  %v528 = vpack.c.b16 %v427, %v426
  %v529 = vpack.c.b16 %v429, %v428
  %v530 = vpack.c.b16 %v431, %v430
  %v531 = vpack.c.b16 %v433, %v432
  %v532 = vpack.c.b16 %v435, %v434
  %v533 = vpack.c.b16 %v437, %v436
  %v534 = vpack.c.b16 %v439, %v438
  %v535 = vpack.c.b16 %v441, %v440
  %v536 = vpack.c.b16 %v443, %v442
  %v537 = vpack.c.b16 %v445, %v444
  %v538 = vpack.c.b16 %v447, %v446
  %v539 = vpack.c.b16 %v449, %v448
  %v540 = vpack.c.b16 %v451, %v450
  %v541 = vpack.c.b16 %v453, %v452
  %v542 = vpack.c.b16 %v455, %v454
  %v543 = vpack.c.b16 %v457, %v456
  %v544 = vpack.c.b16 %v459, %v458
  %v545 = vpack.c.b16 %v461, %v460
  %v546 = vpack.c.b16 %v463, %v462
  %v547 = vpack.c.b16 %v465, %v464
  %v548 = vpack.c.b16 %v467, %v466
  %v549 = vpack.c.b16 %v469, %v468
  %v550 = vpack.c.b16 %v471, %v470
  %v551 = vpack.c.b16 %v473, %v472
  %v552 = vpack.c.b16 %v475, %v474
  %v553 = vpack.c.b16 %v477, %v476
  %v554 = vpack.c.b16 %v479, %v478
  %v555 = vpack.c.b16 %v481, %v480
  %v556 = vpack.c.b16 %v483, %v482
  %v557 = vpack.c.b16 %v485, %v484
  %v558 = vpack.c.b16 %v487, %v486
  %v559 = vpack.c.b16 %v489, %v488
  %v560 = vpack.c.b16 %v491, %v490
  %v561 = vpack.c.b16 %v493, %v492
  %v562 = vpack.c.b16 %v495, %v494
  %v563 = vpack.c.b16 %v497, %v496
  %v564 = vpack.c.b16 %v499, %v498
  %v565 = vpack.c.b16 %v501, %v500
  %630 = vmatprep.subr.bf16.mxu0 0
  %631 = vmatpush1.bf16.msra.mxu0 %v509
  %632 = vmatprep.subr.bf16.mxu0 0
  %633 = vmatpush1.bf16.msra.mxu0 %v508
  %634 = vmatprep.subr.bf16.mxu0 0
  %635 = vmatpush1.bf16.msra.mxu0 %v507
  %636 = vmatprep.subr.bf16.mxu0 0
  %637 = vmatpush1.bf16.msra.mxu0 %v506
  %638 = vmatprep.subr.bf16.mxu0 0
  %639 = vmatpush1.bf16.msra.mxu0 %v505
  %640 = vmatprep.subr.bf16.mxu0 0
  %641 = vmatpush1.bf16.msra.mxu0 %v504
  %642 = vmatprep.subr.bf16.mxu0 0
  %643 = vmatpush1.bf16.msra.mxu0 %v503
  %644 = vmatprep.subr.bf16.mxu0 0
  %645 = vmatpush1.bf16.msra.mxu0 %v502
  %646 = vmatprep.subr.bf16.mxu0 0
  %647 = vmatpush2.bf16.msra.mxu0 %v517
  %648 = vmatprep.subr.bf16.mxu0 0
  %649 = vmatpush2.bf16.msra.mxu0 %v516
  %650 = vmatprep.subr.bf16.mxu0 0
  %651 = vmatpush2.bf16.msra.mxu0 %v515
  %652 = vmatprep.subr.bf16.mxu0 0
  %653 = vmatpush2.bf16.msra.mxu0 %v514
  %654 = vmatprep.subr.bf16.mxu0 0
  %655 = vmatpush2.bf16.msra.mxu0 %v513
  %656 = vmatprep.subr.bf16.mxu0 0
  %657 = vmatpush2.bf16.msra.mxu0 %v512
  %658 = vmatprep.subr.bf16.mxu0 0
  %659 = vmatpush2.bf16.msra.mxu0 %v511
  %660 = vmatprep.subr.bf16.mxu0 0
  %661 = vmatpush2.bf16.msra.mxu0 %v510
  %662 = vmatprep.mubr.bf16.mxu0 %v215
  %663 = vmatmul.mubr.bf16.gmra.mxu0 %v214
  %v664 = vpop.f32.mrf.mxu0
  %v665 = vadd.f32 %v164, %v664
  %v666 = vpop.f32.mrf.mxu0
  %v667 = vpop.f32.mrf.mxu0
  %v668 = vadd.f32 %v164, %v667
  %v669 = vpop.f32.mrf.mxu0
  %670 = vmatprep.mubr.bf16.mxu0 %v223
  %671 = vmatmul.mubr.bf16.gmra.mxu0 %v222
  %v672 = vpop.f32.mrf.mxu0
  %v673 = vadd.f32 %v164, %v672
  %v674 = vpop.f32.mrf.mxu0
  %v675 = vpop.f32.mrf.mxu0
  %v676 = vadd.f32 %v164, %v675
  %v677 = vpop.f32.mrf.mxu0
  %678 = vdwg.mxu0
  %679 = vmatprep.subr.bf16.mxu0 0
  %680 = vmatpush1.bf16.msra.mxu0 %v525
  %681 = vmatprep.subr.bf16.mxu0 0
  %682 = vmatpush1.bf16.msra.mxu0 %v524
  %683 = vmatprep.subr.bf16.mxu0 0
  %684 = vmatpush1.bf16.msra.mxu0 %v523
  %685 = vmatprep.subr.bf16.mxu0 0
  %686 = vmatpush1.bf16.msra.mxu0 %v522
  %687 = vmatprep.subr.bf16.mxu0 0
  %688 = vmatpush1.bf16.msra.mxu0 %v521
  %689 = vmatprep.subr.bf16.mxu0 0
  %690 = vmatpush1.bf16.msra.mxu0 %v520
  %691 = vmatprep.subr.bf16.mxu0 0
  %692 = vmatpush1.bf16.msra.mxu0 %v519
  %693 = vmatprep.subr.bf16.mxu0 0
  %694 = vmatpush1.bf16.msra.mxu0 %v518
  %695 = vmatprep.subr.bf16.mxu0 0
  %696 = vmatpush2.bf16.msra.mxu0 %v533
  %697 = vmatprep.subr.bf16.mxu0 0
  %698 = vmatpush2.bf16.msra.mxu0 %v532
  %699 = vmatprep.subr.bf16.mxu0 0
  %700 = vmatpush2.bf16.msra.mxu0 %v531
  %701 = vmatprep.subr.bf16.mxu0 0
  %702 = vmatpush2.bf16.msra.mxu0 %v530
  %703 = vmatprep.subr.bf16.mxu0 0
  %704 = vmatpush2.bf16.msra.mxu0 %v529
  %705 = vmatprep.subr.bf16.mxu0 0
  %706 = vmatpush2.bf16.msra.mxu0 %v528
  %707 = vmatprep.subr.bf16.mxu0 0
  %708 = vmatpush2.bf16.msra.mxu0 %v527
  %709 = vmatprep.subr.bf16.mxu0 0
  %710 = vmatpush2.bf16.msra.mxu0 %v526
  %711 = vmatprep.mubr.bf16.mxu0 %v217
  %712 = vmatmul.mubr.bf16.gmra.mxu0 %v216
  %v713 = vpop.f32.mrf.mxu0
  %v714 = vadd.f32 %v665, %v713
  %v715 = vpop.f32.mrf.mxu0
  %v716 = vpop.f32.mrf.mxu0
  %v717 = vadd.f32 %v668, %v716
  %v718 = vpop.f32.mrf.mxu0
  %719 = vmatprep.mubr.bf16.mxu0 %v225
  %720 = vmatmul.mubr.bf16.gmra.mxu0 %v224
  %v721 = vpop.f32.mrf.mxu0
  %v722 = vadd.f32 %v673, %v721
  %v723 = vpop.f32.mrf.mxu0
  %v724 = vpop.f32.mrf.mxu0
  %v725 = vadd.f32 %v676, %v724
  %v726 = vpop.f32.mrf.mxu0
  %727 = vdwg.mxu0
  %728 = vmatprep.subr.bf16.mxu0 0
  %729 = vmatpush1.bf16.msra.mxu0 %v541
  %730 = vmatprep.subr.bf16.mxu0 0
  %731 = vmatpush1.bf16.msra.mxu0 %v540
  %732 = vmatprep.subr.bf16.mxu0 0
  %733 = vmatpush1.bf16.msra.mxu0 %v539
  %734 = vmatprep.subr.bf16.mxu0 0
  %735 = vmatpush1.bf16.msra.mxu0 %v538
  %736 = vmatprep.subr.bf16.mxu0 0
  %737 = vmatpush1.bf16.msra.mxu0 %v537
  %738 = vmatprep.subr.bf16.mxu0 0
  %739 = vmatpush1.bf16.msra.mxu0 %v536
  %740 = vmatprep.subr.bf16.mxu0 0
  %741 = vmatpush1.bf16.msra.mxu0 %v535
  %742 = vmatprep.subr.bf16.mxu0 0
  %743 = vmatpush1.bf16.msra.mxu0 %v534
  %744 = vmatprep.subr.bf16.mxu0 0
  %745 = vmatpush2.bf16.msra.mxu0 %v549
  %746 = vmatprep.subr.bf16.mxu0 0
  %747 = vmatpush2.bf16.msra.mxu0 %v548
  %748 = vmatprep.subr.bf16.mxu0 0
  %749 = vmatpush2.bf16.msra.mxu0 %v547
  %750 = vmatprep.subr.bf16.mxu0 0
  %751 = vmatpush2.bf16.msra.mxu0 %v546
  %752 = vmatprep.subr.bf16.mxu0 0
  %753 = vmatpush2.bf16.msra.mxu0 %v545
  %754 = vmatprep.subr.bf16.mxu0 0
  %755 = vmatpush2.bf16.msra.mxu0 %v544
  %756 = vmatprep.subr.bf16.mxu0 0
  %757 = vmatpush2.bf16.msra.mxu0 %v543
  %758 = vmatprep.subr.bf16.mxu0 0
  %759 = vmatpush2.bf16.msra.mxu0 %v542
  %760 = vmatprep.mubr.bf16.mxu0 %v219
  %761 = vmatmul.mubr.bf16.gmra.mxu0 %v218
  %v762 = vpop.f32.mrf.mxu0
  %v763 = vadd.f32 %v714, %v762
  %v764 = vpop.f32.mrf.mxu0
  %v765 = vpop.f32.mrf.mxu0
  %v766 = vadd.f32 %v717, %v765
  %v767 = vpop.f32.mrf.mxu0
  %768 = vmatprep.mubr.bf16.mxu0 %v227
  %769 = vmatmul.mubr.bf16.gmra.mxu0 %v226
  %v770 = vpop.f32.mrf.mxu0
  %v771 = vadd.f32 %v722, %v770
  %v772 = vpop.f32.mrf.mxu0
  %v773 = vpop.f32.mrf.mxu0
  %v774 = vadd.f32 %v725, %v773
  %v775 = vpop.f32.mrf.mxu0
  %776 = vdwg.mxu0
  %777 = vmatprep.subr.bf16.mxu0 0
  %778 = vmatpush1.bf16.msra.mxu0 %v557
  %779 = vmatprep.subr.bf16.mxu0 0
  %780 = vmatpush1.bf16.msra.mxu0 %v556
  %781 = vmatprep.subr.bf16.mxu0 0
  %782 = vmatpush1.bf16.msra.mxu0 %v555
  %783 = vmatprep.subr.bf16.mxu0 0
  %784 = vmatpush1.bf16.msra.mxu0 %v554
  %785 = vmatprep.subr.bf16.mxu0 0
  %786 = vmatpush1.bf16.msra.mxu0 %v553
  %787 = vmatprep.subr.bf16.mxu0 0
  %788 = vmatpush1.bf16.msra.mxu0 %v552
  %789 = vmatprep.subr.bf16.mxu0 0
  %790 = vmatpush1.bf16.msra.mxu0 %v551
  %791 = vmatprep.subr.bf16.mxu0 0
  %792 = vmatpush1.bf16.msra.mxu0 %v550
  %793 = vmatprep.subr.bf16.mxu0 0
  %794 = vmatpush2.bf16.msra.mxu0 %v565
  %795 = vmatprep.subr.bf16.mxu0 0
  %796 = vmatpush2.bf16.msra.mxu0 %v564
  %797 = vmatprep.subr.bf16.mxu0 0
  %798 = vmatpush2.bf16.msra.mxu0 %v563
  %799 = vmatprep.subr.bf16.mxu0 0
  %800 = vmatpush2.bf16.msra.mxu0 %v562
  %801 = vmatprep.subr.bf16.mxu0 0
  %802 = vmatpush2.bf16.msra.mxu0 %v561
  %803 = vmatprep.subr.bf16.mxu0 0
  %804 = vmatpush2.bf16.msra.mxu0 %v560
  %805 = vmatprep.subr.bf16.mxu0 0
  %806 = vmatpush2.bf16.msra.mxu0 %v559
  %807 = vmatprep.subr.bf16.mxu0 0
  %808 = vmatpush2.bf16.msra.mxu0 %v558
  %809 = vmatprep.mubr.bf16.mxu0 %v221
  %810 = vmatmul.mubr.bf16.gmra.mxu0 %v220
  %v811 = vpop.f32.mrf.mxu0
  %v812 = vadd.f32 %v763, %v811
  %v813 = vpop.f32.mrf.mxu0
  %v814 = vpop.f32.mrf.mxu0
  %v815 = vadd.f32 %v766, %v814
  %v816 = vpop.f32.mrf.mxu0
  %817 = vmatprep.mubr.bf16.mxu0 %v229
  %818 = vmatmul.mubr.bf16.gmra.mxu0 %v228
  %v819 = vpop.f32.mrf.mxu0
  %v820 = vadd.f32 %v771, %v819
  %v821 = vpop.f32.mrf.mxu0
  %v822 = vpop.f32.mrf.mxu0
  %v823 = vadd.f32 %v774, %v822
  %v824 = vpop.f32.mrf.mxu0
  %825 = vdwg.mxu0
  %vm826 = vcmp.ge.f32.partialorder %v812, 0.0
  %vm827 = vcmp.ge.f32.partialorder %v815, 0.0
  %vm828 = vcmp.ge.f32.partialorder %v820, 0.0
  %vm829 = vcmp.ge.f32.partialorder %v823, 0.0
  %v830 = vmul.f32 %v812, 0.2
  %v831 = vmul.f32 %v815, 0.2
  %v832 = vmul.f32 %v820, 0.2
  %v833 = vmul.f32 %v823, 0.2
  %v834 = vsel %vm826, %v812, %v830
  %v835 = vsel %vm827, %v815, %v831
  %v836 = vsel %vm828, %v820, %v832
  %v837 = vsel %vm829, %v823, %v833
  %838 = vst [vmem:[%s3] sm:$0xff] %v834
  %839 = vst [vmem:[%s3 + $0x8] sm:$0xff] %v835
  %840 = vst [vmem:[%s3 + $0x10] sm:$0xff] %v836
  %841 = vst [vmem:[%s3 + $0x18] sm:$0xff] %v837
  // Predicated region
  $region14: #{discriminator_forward.7} parent=0 // pred_check
    _
  $region15: #{discriminator_forward.7} parent=0 // pred_check_branch
    %843 = sbr.rel (0) target = $region17
  $region16: #{discriminator_forward.7} parent=0 // pred_region
    _
  $region17: #{discriminator_forward.7} parent=0 // pred_fallthru
    _
  // Predicated region
  $region18: #{discriminator_forward.7} parent=0 // pred_check
    _
  $region19: #{discriminator_forward.7} parent=0 // pred_check_branch
    %845 = sbr.rel (0) target = $region21
  $region20: #{discriminator_forward.7} parent=0 // pred_region
    _
  $region21: #{discriminator_forward.7} parent=0 // pred_fallthru
    _

// kernel: discriminator_forward.9
$region0: #{discriminator_forward.9}
  #allocation0 [shape = 'u32[]', space=smem, size = 0x4, offset = 0x4, fixed_abs, tag = 'smem constant byte address 0x4 - core index']
  #allocation1 [shape = 'u32[144,128]{1,0:T(1,128)}', space=vmem, size = 0x12000, scoped, tag = 'internal scratch']
  #allocation2 [shape = 'f32[1,1]{1,0:T(1,128)S(1)}', space=vmem, size = 0x200, scoped, tag = 'scoped memory for discriminator_forward.9']
  %s0 = inlined_call_operand.vmem [shape: bf16[8,256], index: 0, kind: input, shape index: {}]
  %s1 = inlined_call_operand.vmem [shape: bf16[256,1], index: 1, kind: input, shape index: {}]
  %s2 = inlined_call_operand.<no memory space> [shape: f32[1,1], index: 2, kind: input, shape index: {}]
  %s3 = inlined_call_operand.vmem [shape: f32[8,1], index: 3, kind: output, shape index: {}]
  %s4 = sld [smem:[#allocation0]]
  $region22: #{discriminator_forward.9} parent=0
    _
  %s6 = ssub.s32 1, %s4
  %s7 = scalar_select 0, %s6, %s4
  %v8 = vstv %s2
  %9 = vst [vmem:[#allocation2] sm:$0x1] %v8
  // Predicated region
  $region2: #{discriminator_forward.9} parent=0 // pred_check
    _
  $region3: #{discriminator_forward.9} parent=0 // pred_check_branch
    %11 = sbr.rel (0) target = $region5
  $region4: #{discriminator_forward.9} parent=0 // pred_region
    _
  $region5: #{discriminator_forward.9} parent=0 // pred_fallthru
    _
  // Predicated region
  $region6: #{discriminator_forward.9} parent=0 // pred_check
    _
  $region7: #{discriminator_forward.9} parent=0 // pred_check_branch
    %13 = sbr.rel (0) target = $region9
  $region8: #{discriminator_forward.9} parent=0 // pred_region
    _
  $region9: #{discriminator_forward.9} parent=0 // pred_fallthru
    _
  // Predicated region
  $region10: #{discriminator_forward.9} parent=0 // pred_check
    _
  $region11: #{discriminator_forward.9} parent=0 // pred_check_branch
    %15 = sbr.rel (0) target = $region13
  $region12: #{discriminator_forward.9} parent=0 // pred_region
    _
  $region13: #{discriminator_forward.9} parent=0 // pred_fallthru
    _
  %v17 = vld [vmem:[%s0] sm:$0xff]
  %v18 = vld [vmem:[%s1] sm:$0xf]
  %v19 = vld [vmem:[%s1 + $0x4] sm:$0xf]
  %v20 = vld [vmem:[%s1 + $0x8] sm:$0xf]
  %v21 = vld [vmem:[%s1 + $0xc] sm:$0xf]
  %v22 = vld [vmem:[%s1 + $0x10] sm:$0xf]
  %v23 = vld [vmem:[%s1 + $0x14] sm:$0xf]
  %v24 = vld [vmem:[%s1 + $0x18] sm:$0xf]
  %v25 = vld [vmem:[%s1 + $0x1c] sm:$0xf]
  %v26 = vld [vmem:[%s1 + $0x20] sm:$0xf]
  %v27 = vld [vmem:[%s1 + $0x24] sm:$0xf]
  %v28 = vld [vmem:[%s1 + $0x28] sm:$0xf]
  %v29 = vld [vmem:[%s1 + $0x2c] sm:$0xf]
  %v30 = vld [vmem:[%s1 + $0x30] sm:$0xf]
  %v31 = vld [vmem:[%s1 + $0x34] sm:$0xf]
  %v32 = vld [vmem:[%s1 + $0x38] sm:$0xf]
  %v33 = vld [vmem:[%s1 + $0x3c] sm:$0xf]
  %v34 = vld [vmem:[%s1 + $0x40] sm:$0xf]
  %v35 = vld [vmem:[%s1 + $0x44] sm:$0xf]
  %v36 = vld [vmem:[%s1 + $0x48] sm:$0xf]
  %v37 = vld [vmem:[%s1 + $0x4c] sm:$0xf]
  %v38 = vld [vmem:[%s1 + $0x50] sm:$0xf]
  %v39 = vld [vmem:[%s1 + $0x54] sm:$0xf]
  %v40 = vld [vmem:[%s1 + $0x58] sm:$0xf]
  %v41 = vld [vmem:[%s1 + $0x5c] sm:$0xf]
  %v42 = vld [vmem:[%s1 + $0x60] sm:$0xf]
  %v43 = vld [vmem:[%s1 + $0x64] sm:$0xf]
  %v44 = vld [vmem:[%s1 + $0x68] sm:$0xf]
  %v45 = vld [vmem:[%s1 + $0x6c] sm:$0xf]
  %v46 = vld [vmem:[%s1 + $0x70] sm:$0xf]
  %v47 = vld [vmem:[%s1 + $0x74] sm:$0xf]
  %v48 = vld [vmem:[%s1 + $0x78] sm:$0xf]
  %v49 = vld [vmem:[%s1 + $0x7c] sm:$0xf]
  %v50 = vld [vmem:[#allocation2] sm:$0x1]
  %v52 = vlaneseq
  %v53 = vshrl.u32 %v52, 7
  %v54 = vsub.s32 0, %v53
  %v55 = vrot.slane %v50, %v54
  %v58 = vunpack.c.l.b16 %v17
  %v59 = vunpack.c.h.b16 %v17
  %v60 = vpack.c.b16 %v58, %v58
  %v61 = vpack.c.b16 %v59, %v59
  %v96 = vunpack.c.l.b16 %v18
  %v97 = vunpack.c.l.b16 %v19
  %v98 = vunpack.c.l.b16 %v20
  %v99 = vunpack.c.l.b16 %v21
  %v100 = vunpack.c.l.b16 %v22
  %v101 = vunpack.c.l.b16 %v23
  %v102 = vunpack.c.l.b16 %v24
  %v103 = vunpack.c.l.b16 %v25
  %v104 = vunpack.c.l.b16 %v26
  %v105 = vunpack.c.l.b16 %v27
  %v106 = vunpack.c.l.b16 %v28
  %v107 = vunpack.c.l.b16 %v29
  %v108 = vunpack.c.l.b16 %v30
  %v109 = vunpack.c.l.b16 %v31
  %v110 = vunpack.c.l.b16 %v32
  %v111 = vunpack.c.l.b16 %v33
  %v112 = vunpack.c.l.b16 %v34
  %v113 = vunpack.c.l.b16 %v35
  %v114 = vunpack.c.l.b16 %v36
  %v115 = vunpack.c.l.b16 %v37
  %v116 = vunpack.c.l.b16 %v38
  %v117 = vunpack.c.l.b16 %v39
  %v118 = vunpack.c.l.b16 %v40
  %v119 = vunpack.c.l.b16 %v41
  %v120 = vunpack.c.l.b16 %v42
  %v121 = vunpack.c.l.b16 %v43
  %v122 = vunpack.c.l.b16 %v44
  %v123 = vunpack.c.l.b16 %v45
  %v124 = vunpack.c.l.b16 %v46
  %v125 = vunpack.c.l.b16 %v47
  %v126 = vunpack.c.l.b16 %v48
  %v127 = vunpack.c.l.b16 %v49
  %v128 = vpack.c.b16 %v97, %v96
  %v129 = vpack.c.b16 %v99, %v98
  %v130 = vpack.c.b16 %v101, %v100
  %v131 = vpack.c.b16 %v103, %v102
  %v132 = vpack.c.b16 %v105, %v104
  %v133 = vpack.c.b16 %v107, %v106
  %v134 = vpack.c.b16 %v109, %v108
  %v135 = vpack.c.b16 %v111, %v110
  %v136 = vpack.c.b16 %v113, %v112
  %v137 = vpack.c.b16 %v115, %v114
  %v138 = vpack.c.b16 %v117, %v116
  %v139 = vpack.c.b16 %v119, %v118
  %v140 = vpack.c.b16 %v121, %v120
  %v141 = vpack.c.b16 %v123, %v122
  %v142 = vpack.c.b16 %v125, %v124
  %v143 = vpack.c.b16 %v127, %v126
  %160 = vmatprep.subr.bf16.mxu0 0
  %161 = vmatpush1.bf16.msra.mxu0 %v135
  %162 = vmatprep.subr.bf16.mxu0 0
  %163 = vmatpush1.bf16.msra.mxu0 %v134
  %164 = vmatprep.subr.bf16.mxu0 0
  %165 = vmatpush1.bf16.msra.mxu0 %v133
  %166 = vmatprep.subr.bf16.mxu0 0
  %167 = vmatpush1.bf16.msra.mxu0 %v132
  %168 = vmatprep.subr.bf16.mxu0 0
  %169 = vmatpush1.bf16.msra.mxu0 %v131
  %170 = vmatprep.subr.bf16.mxu0 0
  %171 = vmatpush1.bf16.msra.mxu0 %v130
  %172 = vmatprep.subr.bf16.mxu0 0
  %173 = vmatpush1.bf16.msra.mxu0 %v129
  %174 = vmatprep.subr.bf16.mxu0 0
  %175 = vmatpush1.bf16.msra.mxu0 %v128
  %176 = vmatprep.subr.bf16.mxu0 0
  %177 = vmatpush2.bf16.msra.mxu0 %v143
  %178 = vmatprep.subr.bf16.mxu0 0
  %179 = vmatpush2.bf16.msra.mxu0 %v142
  %180 = vmatprep.subr.bf16.mxu0 0
  %181 = vmatpush2.bf16.msra.mxu0 %v141
  %182 = vmatprep.subr.bf16.mxu0 0
  %183 = vmatpush2.bf16.msra.mxu0 %v140
  %184 = vmatprep.subr.bf16.mxu0 0
  %185 = vmatpush2.bf16.msra.mxu0 %v139
  %186 = vmatprep.subr.bf16.mxu0 0
  %187 = vmatpush2.bf16.msra.mxu0 %v138
  %188 = vmatprep.subr.bf16.mxu0 0
  %189 = vmatpush2.bf16.msra.mxu0 %v137
  %190 = vmatprep.subr.bf16.mxu0 0
  %191 = vmatpush2.bf16.msra.mxu0 %v136
  %192 = vmatprep.mubr.bf16.mxu0 %v61
  %193 = vmatmul.mubr.bf16.gmra.mxu0 %v60
  %v194 = vpop.f32.mrf.mxu0
  %v195 = vadd.f32 %v55, %v194
  %v196 = vpop.f32.mrf.mxu0
  %v197 = vpop.f32.mrf.mxu0
  %v198 = vpop.f32.mrf.mxu0
  %199 = vdwg.mxu0
  %vm200 = vcmask 7168
  %201 = vst.msk [vmem:[%s3] sm:$0xff] %vm200, %v195
  // Predicated region
  $region14: #{discriminator_forward.9} parent=0 // pred_check
    _
  $region15: #{discriminator_forward.9} parent=0 // pred_check_branch
    %203 = sbr.rel (0) target = $region17
  $region16: #{discriminator_forward.9} parent=0 // pred_region
    _
  $region17: #{discriminator_forward.9} parent=0 // pred_fallthru
    _
  // Predicated region
  $region18: #{discriminator_forward.9} parent=0 // pred_check
    _
  $region19: #{discriminator_forward.9} parent=0 // pred_check_branch
    %205 = sbr.rel (0) target = $region21
  $region20: #{discriminator_forward.9} parent=0 // pred_region
    _
  $region21: #{discriminator_forward.9} parent=0 // pred_fallthru
    _

// kernel: discriminator_forward.8
$region0: #{discriminator_forward.8}
  #allocation0 [shape = 'u32[]', space=smem, size = 0x4, offset = 0x4, fixed_abs, tag = 'smem constant byte address 0x4 - core index']
  #allocation1 [shape = 'u32[144,128]{1,0:T(1,128)}', space=vmem, size = 0x12000, scoped, tag = 'internal scratch']
  %s0 = inlined_call_operand.vmem [shape: bf16[8,2048], index: 0, kind: input, shape index: {}]
  %s1 = inlined_call_operand.vmem [shape: bf16[2048,256], index: 1, kind: input, shape index: {}]
  %s2 = inlined_call_operand.vmem [shape: f32[1,256], index: 2, kind: input, shape index: {}]
  %s3 = inlined_call_operand.vmem [shape: f32[8,256], index: 3, kind: output, shape index: {}]
  %s4 = sld [smem:[#allocation0]]
  $region22: #{discriminator_forward.8} parent=0
    _
  %s6 = ssub.s32 1, %s4
  %s7 = scalar_select 0, %s6, %s4
  // Predicated region
  $region2: #{discriminator_forward.8} parent=0 // pred_check
    _
  $region3: #{discriminator_forward.8} parent=0 // pred_check_branch
    %9 = sbr.rel (0) target = $region5
  $region4: #{discriminator_forward.8} parent=0 // pred_region
    _
  $region5: #{discriminator_forward.8} parent=0 // pred_fallthru
    _
  // Predicated region
  $region6: #{discriminator_forward.8} parent=0 // pred_check
    _
  $region7: #{discriminator_forward.8} parent=0 // pred_check_branch
    %11 = sbr.rel (0) target = $region9
  $region8: #{discriminator_forward.8} parent=0 // pred_region
    _
  $region9: #{discriminator_forward.8} parent=0 // pred_fallthru
    _
  // Predicated region
  $region10: #{discriminator_forward.8} parent=0 // pred_check
    _
  $region11: #{discriminator_forward.8} parent=0 // pred_check_branch
    %13 = sbr.rel (0) target = $region13
  $region12: #{discriminator_forward.8} parent=0 // pred_region
    _
  $region13: #{discriminator_forward.8} parent=0 // pred_fallthru
    _
  %v14 = vld [vmem:[%s0] sm:$0xff]
  %v15 = vld [vmem:[%s0 + $0x8] sm:$0xff]
  %v16 = vld [vmem:[%s0 + $0x10] sm:$0xff]
  %v17 = vld [vmem:[%s0 + $0x18] sm:$0xff]
  %v18 = vld [vmem:[%s0 + $0x20] sm:$0xff]
  %v19 = vld [vmem:[%s0 + $0x28] sm:$0xff]
  %v20 = vld [vmem:[%s0 + $0x30] sm:$0xff]
  %v21 = vld [vmem:[%s0 + $0x38] sm:$0xff]
  %v22 = vld [vmem:[%s1] sm:$0xff]
  %v23 = vld [vmem:[%s1 + $0x8] sm:$0xff]
  %v24 = vld [vmem:[%s1 + $0x10] sm:$0xff]
  %v25 = vld [vmem:[%s1 + $0x18] sm:$0xff]
  %v26 = vld [vmem:[%s1 + $0x20] sm:$0xff]
  %v27 = vld [vmem:[%s1 + $0x28] sm:$0xff]
  %v28 = vld [vmem:[%s1 + $0x30] sm:$0xff]
  %v29 = vld [vmem:[%s1 + $0x38] sm:$0xff]
  %v30 = vld [vmem:[%s1 + $0x40] sm:$0xff]
  %v31 = vld [vmem:[%s1 + $0x48] sm:$0xff]
  %v32 = vld [vmem:[%s1 + $0x50] sm:$0xff]
  %v33 = vld [vmem:[%s1 + $0x58] sm:$0xff]
  %v34 = vld [vmem:[%s1 + $0x60] sm:$0xff]
  %v35 = vld [vmem:[%s1 + $0x68] sm:$0xff]
  %v36 = vld [vmem:[%s1 + $0x70] sm:$0xff]
  %v37 = vld [vmem:[%s1 + $0x78] sm:$0xff]
  %v38 = vld [vmem:[%s1 + $0x80] sm:$0xff]
  %v39 = vld [vmem:[%s1 + $0x88] sm:$0xff]
  %v40 = vld [vmem:[%s1 + $0x90] sm:$0xff]
  %v41 = vld [vmem:[%s1 + $0x98] sm:$0xff]
  %v42 = vld [vmem:[%s1 + $0xa0] sm:$0xff]
  %v43 = vld [vmem:[%s1 + $0xa8] sm:$0xff]
  %v44 = vld [vmem:[%s1 + $0xb0] sm:$0xff]
  %v45 = vld [vmem:[%s1 + $0xb8] sm:$0xff]
  %v46 = vld [vmem:[%s1 + $0xc0] sm:$0xff]
  %v47 = vld [vmem:[%s1 + $0xc8] sm:$0xff]
  %v48 = vld [vmem:[%s1 + $0xd0] sm:$0xff]
  %v49 = vld [vmem:[%s1 + $0xd8] sm:$0xff]
  %v50 = vld [vmem:[%s1 + $0xe0] sm:$0xff]
  %v51 = vld [vmem:[%s1 + $0xe8] sm:$0xff]
  %v52 = vld [vmem:[%s1 + $0xf0] sm:$0xff]
  %v53 = vld [vmem:[%s1 + $0xf8] sm:$0xff]
  %v54 = vld [vmem:[%s1 + $0x100] sm:$0xff]
  %v55 = vld [vmem:[%s1 + $0x108] sm:$0xff]
  %v56 = vld [vmem:[%s1 + $0x110] sm:$0xff]
  %v57 = vld [vmem:[%s1 + $0x118] sm:$0xff]
  %v58 = vld [vmem:[%s1 + $0x120] sm:$0xff]
  %v59 = vld [vmem:[%s1 + $0x128] sm:$0xff]
  %v60 = vld [vmem:[%s1 + $0x130] sm:$0xff]
  %v61 = vld [vmem:[%s1 + $0x138] sm:$0xff]
  %v62 = vld [vmem:[%s1 + $0x140] sm:$0xff]
  %v63 = vld [vmem:[%s1 + $0x148] sm:$0xff]
  %v64 = vld [vmem:[%s1 + $0x150] sm:$0xff]
  %v65 = vld [vmem:[%s1 + $0x158] sm:$0xff]
  %v66 = vld [vmem:[%s1 + $0x160] sm:$0xff]
  %v67 = vld [vmem:[%s1 + $0x168] sm:$0xff]
  %v68 = vld [vmem:[%s1 + $0x170] sm:$0xff]
  %v69 = vld [vmem:[%s1 + $0x178] sm:$0xff]
  %v70 = vld [vmem:[%s1 + $0x180] sm:$0xff]
  %v71 = vld [vmem:[%s1 + $0x188] sm:$0xff]
  %v72 = vld [vmem:[%s1 + $0x190] sm:$0xff]
  %v73 = vld [vmem:[%s1 + $0x198] sm:$0xff]
  %v74 = vld [vmem:[%s1 + $0x1a0] sm:$0xff]
  %v75 = vld [vmem:[%s1 + $0x1a8] sm:$0xff]
  %v76 = vld [vmem:[%s1 + $0x1b0] sm:$0xff]
  %v77 = vld [vmem:[%s1 + $0x1b8] sm:$0xff]
  %v78 = vld [vmem:[%s1 + $0x1c0] sm:$0xff]
  %v79 = vld [vmem:[%s1 + $0x1c8] sm:$0xff]
  %v80 = vld [vmem:[%s1 + $0x1d0] sm:$0xff]
  %v81 = vld [vmem:[%s1 + $0x1d8] sm:$0xff]
  %v82 = vld [vmem:[%s1 + $0x1e0] sm:$0xff]
  %v83 = vld [vmem:[%s1 + $0x1e8] sm:$0xff]
  %v84 = vld [vmem:[%s1 + $0x1f0] sm:$0xff]
  %v85 = vld [vmem:[%s1 + $0x1f8] sm:$0xff]
  %v86 = vld [vmem:[%s1 + $0x200] sm:$0xff]
  %v87 = vld [vmem:[%s1 + $0x208] sm:$0xff]
  %v88 = vld [vmem:[%s1 + $0x210] sm:$0xff]
  %v89 = vld [vmem:[%s1 + $0x218] sm:$0xff]
  %v90 = vld [vmem:[%s1 + $0x220] sm:$0xff]
  %v91 = vld [vmem:[%s1 + $0x228] sm:$0xff]
  %v92 = vld [vmem:[%s1 + $0x230] sm:$0xff]
  %v93 = vld [vmem:[%s1 + $0x238] sm:$0xff]
  %v94 = vld [vmem:[%s1 + $0x240] sm:$0xff]
  %v95 = vld [vmem:[%s1 + $0x248] sm:$0xff]
  %v96 = vld [vmem:[%s1 + $0x250] sm:$0xff]
  %v97 = vld [vmem:[%s1 + $0x258] sm:$0xff]
  %v98 = vld [vmem:[%s1 + $0x260] sm:$0xff]
  %v99 = vld [vmem:[%s1 + $0x268] sm:$0xff]
  %v100 = vld [vmem:[%s1 + $0x270] sm:$0xff]
  %v101 = vld [vmem:[%s1 + $0x278] sm:$0xff]
  %v102 = vld [vmem:[%s1 + $0x280] sm:$0xff]
  %v103 = vld [vmem:[%s1 + $0x288] sm:$0xff]
  %v104 = vld [vmem:[%s1 + $0x290] sm:$0xff]
  %v105 = vld [vmem:[%s1 + $0x298] sm:$0xff]
  %v106 = vld [vmem:[%s1 + $0x2a0] sm:$0xff]
  %v107 = vld [vmem:[%s1 + $0x2a8] sm:$0xff]
  %v108 = vld [vmem:[%s1 + $0x2b0] sm:$0xff]
  %v109 = vld [vmem:[%s1 + $0x2b8] sm:$0xff]
  %v110 = vld [vmem:[%s1 + $0x2c0] sm:$0xff]
  %v111 = vld [vmem:[%s1 + $0x2c8] sm:$0xff]
  %v112 = vld [vmem:[%s1 + $0x2d0] sm:$0xff]
  %v113 = vld [vmem:[%s1 + $0x2d8] sm:$0xff]
  %v114 = vld [vmem:[%s1 + $0x2e0] sm:$0xff]
  %v115 = vld [vmem:[%s1 + $0x2e8] sm:$0xff]
  %v116 = vld [vmem:[%s1 + $0x2f0] sm:$0xff]
  %v117 = vld [vmem:[%s1 + $0x2f8] sm:$0xff]
  %v118 = vld [vmem:[%s1 + $0x300] sm:$0xff]
  %v119 = vld [vmem:[%s1 + $0x308] sm:$0xff]
  %v120 = vld [vmem:[%s1 + $0x310] sm:$0xff]
  %v121 = vld [vmem:[%s1 + $0x318] sm:$0xff]
  %v122 = vld [vmem:[%s1 + $0x320] sm:$0xff]
  %v123 = vld [vmem:[%s1 + $0x328] sm:$0xff]
  %v124 = vld [vmem:[%s1 + $0x330] sm:$0xff]
  %v125 = vld [vmem:[%s1 + $0x338] sm:$0xff]
  %v126 = vld [vmem:[%s1 + $0x340] sm:$0xff]
  %v127 = vld [vmem:[%s1 + $0x348] sm:$0xff]
  %v128 = vld [vmem:[%s1 + $0x350] sm:$0xff]
  %v129 = vld [vmem:[%s1 + $0x358] sm:$0xff]
  %v130 = vld [vmem:[%s1 + $0x360] sm:$0xff]
  %v131 = vld [vmem:[%s1 + $0x368] sm:$0xff]
  %v132 = vld [vmem:[%s1 + $0x370] sm:$0xff]
  %v133 = vld [vmem:[%s1 + $0x378] sm:$0xff]
  %v134 = vld [vmem:[%s1 + $0x380] sm:$0xff]
  %v135 = vld [vmem:[%s1 + $0x388] sm:$0xff]
  %v136 = vld [vmem:[%s1 + $0x390] sm:$0xff]
  %v137 = vld [vmem:[%s1 + $0x398] sm:$0xff]
  %v138 = vld [vmem:[%s1 + $0x3a0] sm:$0xff]
  %v139 = vld [vmem:[%s1 + $0x3a8] sm:$0xff]
  %v140 = vld [vmem:[%s1 + $0x3b0] sm:$0xff]
  %v141 = vld [vmem:[%s1 + $0x3b8] sm:$0xff]
  %v142 = vld [vmem:[%s1 + $0x3c0] sm:$0xff]
  %v143 = vld [vmem:[%s1 + $0x3c8] sm:$0xff]
  %v144 = vld [vmem:[%s1 + $0x3d0] sm:$0xff]
  %v145 = vld [vmem:[%s1 + $0x3d8] sm:$0xff]
  %v146 = vld [vmem:[%s1 + $0x3e0] sm:$0xff]
  %v147 = vld [vmem:[%s1 + $0x3e8] sm:$0xff]
  %v148 = vld [vmem:[%s1 + $0x3f0] sm:$0xff]
  %v149 = vld [vmem:[%s1 + $0x3f8] sm:$0xff]
  %v150 = vld [vmem:[%s1 + $0x400] sm:$0xff]
  %v151 = vld [vmem:[%s1 + $0x408] sm:$0xff]
  %v152 = vld [vmem:[%s1 + $0x410] sm:$0xff]
  %v153 = vld [vmem:[%s1 + $0x418] sm:$0xff]
  %v154 = vld [vmem:[%s1 + $0x420] sm:$0xff]
  %v155 = vld [vmem:[%s1 + $0x428] sm:$0xff]
  %v156 = vld [vmem:[%s1 + $0x430] sm:$0xff]
  %v157 = vld [vmem:[%s1 + $0x438] sm:$0xff]
  %v158 = vld [vmem:[%s1 + $0x440] sm:$0xff]
  %v159 = vld [vmem:[%s1 + $0x448] sm:$0xff]
  %v160 = vld [vmem:[%s1 + $0x450] sm:$0xff]
  %v161 = vld [vmem:[%s1 + $0x458] sm:$0xff]
  %v162 = vld [vmem:[%s1 + $0x460] sm:$0xff]
  %v163 = vld [vmem:[%s1 + $0x468] sm:$0xff]
  %v164 = vld [vmem:[%s1 + $0x470] sm:$0xff]
  %v165 = vld [vmem:[%s1 + $0x478] sm:$0xff]
  %v166 = vld [vmem:[%s1 + $0x480] sm:$0xff]
  %v167 = vld [vmem:[%s1 + $0x488] sm:$0xff]
  %v168 = vld [vmem:[%s1 + $0x490] sm:$0xff]
  %v169 = vld [vmem:[%s1 + $0x498] sm:$0xff]
  %v170 = vld [vmem:[%s1 + $0x4a0] sm:$0xff]
  %v171 = vld [vmem:[%s1 + $0x4a8] sm:$0xff]
  %v172 = vld [vmem:[%s1 + $0x4b0] sm:$0xff]
  %v173 = vld [vmem:[%s1 + $0x4b8] sm:$0xff]
  %v174 = vld [vmem:[%s1 + $0x4c0] sm:$0xff]
  %v175 = vld [vmem:[%s1 + $0x4c8] sm:$0xff]
  %v176 = vld [vmem:[%s1 + $0x4d0] sm:$0xff]
  %v177 = vld [vmem:[%s1 + $0x4d8] sm:$0xff]
  %v178 = vld [vmem:[%s1 + $0x4e0] sm:$0xff]
  %v179 = vld [vmem:[%s1 + $0x4e8] sm:$0xff]
  %v180 = vld [vmem:[%s1 + $0x4f0] sm:$0xff]
  %v181 = vld [vmem:[%s1 + $0x4f8] sm:$0xff]
  %v182 = vld [vmem:[%s1 + $0x500] sm:$0xff]
  %v183 = vld [vmem:[%s1 + $0x508] sm:$0xff]
  %v184 = vld [vmem:[%s1 + $0x510] sm:$0xff]
  %v185 = vld [vmem:[%s1 + $0x518] sm:$0xff]
  %v186 = vld [vmem:[%s1 + $0x520] sm:$0xff]
  %v187 = vld [vmem:[%s1 + $0x528] sm:$0xff]
  %v188 = vld [vmem:[%s1 + $0x530] sm:$0xff]
  %v189 = vld [vmem:[%s1 + $0x538] sm:$0xff]
  %v190 = vld [vmem:[%s1 + $0x540] sm:$0xff]
  %v191 = vld [vmem:[%s1 + $0x548] sm:$0xff]
  %v192 = vld [vmem:[%s1 + $0x550] sm:$0xff]
  %v193 = vld [vmem:[%s1 + $0x558] sm:$0xff]
  %v194 = vld [vmem:[%s1 + $0x560] sm:$0xff]
  %v195 = vld [vmem:[%s1 + $0x568] sm:$0xff]
  %v196 = vld [vmem:[%s1 + $0x570] sm:$0xff]
  %v197 = vld [vmem:[%s1 + $0x578] sm:$0xff]
  %v198 = vld [vmem:[%s1 + $0x580] sm:$0xff]
  %v199 = vld [vmem:[%s1 + $0x588] sm:$0xff]
  %v200 = vld [vmem:[%s1 + $0x590] sm:$0xff]
  %v201 = vld [vmem:[%s1 + $0x598] sm:$0xff]
  %v202 = vld [vmem:[%s1 + $0x5a0] sm:$0xff]
  %v203 = vld [vmem:[%s1 + $0x5a8] sm:$0xff]
  %v204 = vld [vmem:[%s1 + $0x5b0] sm:$0xff]
  %v205 = vld [vmem:[%s1 + $0x5b8] sm:$0xff]
  %v206 = vld [vmem:[%s1 + $0x5c0] sm:$0xff]
  %v207 = vld [vmem:[%s1 + $0x5c8] sm:$0xff]
  %v208 = vld [vmem:[%s1 + $0x5d0] sm:$0xff]
  %v209 = vld [vmem:[%s1 + $0x5d8] sm:$0xff]
  %v210 = vld [vmem:[%s1 + $0x5e0] sm:$0xff]
  %v211 = vld [vmem:[%s1 + $0x5e8] sm:$0xff]
  %v212 = vld [vmem:[%s1 + $0x5f0] sm:$0xff]
  %v213 = vld [vmem:[%s1 + $0x5f8] sm:$0xff]
  %v214 = vld [vmem:[%s1 + $0x600] sm:$0xff]
  %v215 = vld [vmem:[%s1 + $0x608] sm:$0xff]
  %v216 = vld [vmem:[%s1 + $0x610] sm:$0xff]
  %v217 = vld [vmem:[%s1 + $0x618] sm:$0xff]
  %v218 = vld [vmem:[%s1 + $0x620] sm:$0xff]
  %v219 = vld [vmem:[%s1 + $0x628] sm:$0xff]
  %v220 = vld [vmem:[%s1 + $0x630] sm:$0xff]
  %v221 = vld [vmem:[%s1 + $0x638] sm:$0xff]
  %v222 = vld [vmem:[%s1 + $0x640] sm:$0xff]
  %v223 = vld [vmem:[%s1 + $0x648] sm:$0xff]
  %v224 = vld [vmem:[%s1 + $0x650] sm:$0xff]
  %v225 = vld [vmem:[%s1 + $0x658] sm:$0xff]
  %v226 = vld [vmem:[%s1 + $0x660] sm:$0xff]
  %v227 = vld [vmem:[%s1 + $0x668] sm:$0xff]
  %v228 = vld [vmem:[%s1 + $0x670] sm:$0xff]
  %v229 = vld [vmem:[%s1 + $0x678] sm:$0xff]
  %v230 = vld [vmem:[%s1 + $0x680] sm:$0xff]
  %v231 = vld [vmem:[%s1 + $0x688] sm:$0xff]
  %v232 = vld [vmem:[%s1 + $0x690] sm:$0xff]
  %v233 = vld [vmem:[%s1 + $0x698] sm:$0xff]
  %v234 = vld [vmem:[%s1 + $0x6a0] sm:$0xff]
  %v235 = vld [vmem:[%s1 + $0x6a8] sm:$0xff]
  %v236 = vld [vmem:[%s1 + $0x6b0] sm:$0xff]
  %v237 = vld [vmem:[%s1 + $0x6b8] sm:$0xff]
  %v238 = vld [vmem:[%s1 + $0x6c0] sm:$0xff]
  %v239 = vld [vmem:[%s1 + $0x6c8] sm:$0xff]
  %v240 = vld [vmem:[%s1 + $0x6d0] sm:$0xff]
  %v241 = vld [vmem:[%s1 + $0x6d8] sm:$0xff]
  %v242 = vld [vmem:[%s1 + $0x6e0] sm:$0xff]
  %v243 = vld [vmem:[%s1 + $0x6e8] sm:$0xff]
  %v244 = vld [vmem:[%s1 + $0x6f0] sm:$0xff]
  %v245 = vld [vmem:[%s1 + $0x6f8] sm:$0xff]
  %v246 = vld [vmem:[%s1 + $0x700] sm:$0xff]
  %v247 = vld [vmem:[%s1 + $0x708] sm:$0xff]
  %v248 = vld [vmem:[%s1 + $0x710] sm:$0xff]
  %v249 = vld [vmem:[%s1 + $0x718] sm:$0xff]
  %v250 = vld [vmem:[%s1 + $0x720] sm:$0xff]
  %v251 = vld [vmem:[%s1 + $0x728] sm:$0xff]
  %v252 = vld [vmem:[%s1 + $0x730] sm:$0xff]
  %v253 = vld [vmem:[%s1 + $0x738] sm:$0xff]
  %v254 = vld [vmem:[%s1 + $0x740] sm:$0xff]
  %v255 = vld [vmem:[%s1 + $0x748] sm:$0xff]
  %v256 = vld [vmem:[%s1 + $0x750] sm:$0xff]
  %v257 = vld [vmem:[%s1 + $0x758] sm:$0xff]
  %v258 = vld [vmem:[%s1 + $0x760] sm:$0xff]
  %v259 = vld [vmem:[%s1 + $0x768] sm:$0xff]
  %v260 = vld [vmem:[%s1 + $0x770] sm:$0xff]
  %v261 = vld [vmem:[%s1 + $0x778] sm:$0xff]
  %v262 = vld [vmem:[%s1 + $0x780] sm:$0xff]
  %v263 = vld [vmem:[%s1 + $0x788] sm:$0xff]
  %v264 = vld [vmem:[%s1 + $0x790] sm:$0xff]
  %v265 = vld [vmem:[%s1 + $0x798] sm:$0xff]
  %v266 = vld [vmem:[%s1 + $0x7a0] sm:$0xff]
  %v267 = vld [vmem:[%s1 + $0x7a8] sm:$0xff]
  %v268 = vld [vmem:[%s1 + $0x7b0] sm:$0xff]
  %v269 = vld [vmem:[%s1 + $0x7b8] sm:$0xff]
  %v270 = vld [vmem:[%s1 + $0x7c0] sm:$0xff]
  %v271 = vld [vmem:[%s1 + $0x7c8] sm:$0xff]
  %v272 = vld [vmem:[%s1 + $0x7d0] sm:$0xff]
  %v273 = vld [vmem:[%s1 + $0x7d8] sm:$0xff]
  %v274 = vld [vmem:[%s1 + $0x7e0] sm:$0xff]
  %v275 = vld [vmem:[%s1 + $0x7e8] sm:$0xff]
  %v276 = vld [vmem:[%s1 + $0x7f0] sm:$0xff]
  %v277 = vld [vmem:[%s1 + $0x7f8] sm:$0xff]
  %v278 = vld [vmem:[%s2] sm:$0x3]
  %v280 = vlaneseq
  %v281 = vshrl.u32 %v280, 7
  %v282 = vsub.s32 0, %v281
  %v283 = vrot.slane %v278, %v282
  %v284 = vlaneseq
  %v285 = vshrl.u32 %v284, 7
  %v286 = vsub.s32 1, %v285
  %v287 = vrot.slane %v278, %v286
  %v298 = vunpack.c.l.b16 %v14
  %v299 = vunpack.c.h.b16 %v14
  %v300 = vunpack.c.l.b16 %v15
  %v301 = vunpack.c.h.b16 %v15
  %v302 = vunpack.c.l.b16 %v16
  %v303 = vunpack.c.h.b16 %v16
  %v304 = vunpack.c.l.b16 %v17
  %v305 = vunpack.c.h.b16 %v17
  %v306 = vunpack.c.l.b16 %v18
  %v307 = vunpack.c.h.b16 %v18
  %v308 = vunpack.c.l.b16 %v19
  %v309 = vunpack.c.h.b16 %v19
  %v310 = vunpack.c.l.b16 %v20
  %v311 = vunpack.c.h.b16 %v20
  %v312 = vunpack.c.l.b16 %v21
  %v313 = vunpack.c.h.b16 %v21
  %v314 = vpack.c.b16 %v298, %v298
  %v315 = vpack.c.b16 %v299, %v299
  %v316 = vpack.c.b16 %v300, %v300
  %v317 = vpack.c.b16 %v301, %v301
  %v318 = vpack.c.b16 %v302, %v302
  %v319 = vpack.c.b16 %v303, %v303
  %v320 = vpack.c.b16 %v304, %v304
  %v321 = vpack.c.b16 %v305, %v305
  %v322 = vpack.c.b16 %v306, %v306
  %v323 = vpack.c.b16 %v307, %v307
  %v324 = vpack.c.b16 %v308, %v308
  %v325 = vpack.c.b16 %v309, %v309
  %v326 = vpack.c.b16 %v310, %v310
  %v327 = vpack.c.b16 %v311, %v311
  %v328 = vpack.c.b16 %v312, %v312
  %v329 = vpack.c.b16 %v313, %v313
  %v602 = vunpack.c.l.b16 %v22
  %v603 = vunpack.c.h.b16 %v22
  %v604 = vunpack.c.l.b16 %v23
  %v605 = vunpack.c.h.b16 %v23
  %v606 = vunpack.c.l.b16 %v24
  %v607 = vunpack.c.h.b16 %v24
  %v608 = vunpack.c.l.b16 %v25
  %v609 = vunpack.c.h.b16 %v25
  %v610 = vunpack.c.l.b16 %v26
  %v611 = vunpack.c.h.b16 %v26
  %v612 = vunpack.c.l.b16 %v27
  %v613 = vunpack.c.h.b16 %v27
  %v614 = vunpack.c.l.b16 %v28
  %v615 = vunpack.c.h.b16 %v28
  %v616 = vunpack.c.l.b16 %v29
  %v617 = vunpack.c.h.b16 %v29
  %v618 = vunpack.c.l.b16 %v30
  %v619 = vunpack.c.h.b16 %v30
  %v620 = vunpack.c.l.b16 %v31
  %v621 = vunpack.c.h.b16 %v31
  %v622 = vunpack.c.l.b16 %v32
  %v623 = vunpack.c.h.b16 %v32
  %v624 = vunpack.c.l.b16 %v33
  %v625 = vunpack.c.h.b16 %v33
  %v626 = vunpack.c.l.b16 %v34
  %v627 = vunpack.c.h.b16 %v34
  %v628 = vunpack.c.l.b16 %v35
  %v629 = vunpack.c.h.b16 %v35
  %v630 = vunpack.c.l.b16 %v36
  %v631 = vunpack.c.h.b16 %v36
  %v632 = vunpack.c.l.b16 %v37
  %v633 = vunpack.c.h.b16 %v37
  %v634 = vunpack.c.l.b16 %v38
  %v635 = vunpack.c.h.b16 %v38
  %v636 = vunpack.c.l.b16 %v39
  %v637 = vunpack.c.h.b16 %v39
  %v638 = vunpack.c.l.b16 %v40
  %v639 = vunpack.c.h.b16 %v40
  %v640 = vunpack.c.l.b16 %v41
  %v641 = vunpack.c.h.b16 %v41
  %v642 = vunpack.c.l.b16 %v42
  %v643 = vunpack.c.h.b16 %v42
  %v644 = vunpack.c.l.b16 %v43
  %v645 = vunpack.c.h.b16 %v43
  %v646 = vunpack.c.l.b16 %v44
  %v647 = vunpack.c.h.b16 %v44
  %v648 = vunpack.c.l.b16 %v45
  %v649 = vunpack.c.h.b16 %v45
  %v650 = vunpack.c.l.b16 %v46
  %v651 = vunpack.c.h.b16 %v46
  %v652 = vunpack.c.l.b16 %v47
  %v653 = vunpack.c.h.b16 %v47
  %v654 = vunpack.c.l.b16 %v48
  %v655 = vunpack.c.h.b16 %v48
  %v656 = vunpack.c.l.b16 %v49
  %v657 = vunpack.c.h.b16 %v49
  %v658 = vunpack.c.l.b16 %v50
  %v659 = vunpack.c.h.b16 %v50
  %v660 = vunpack.c.l.b16 %v51
  %v661 = vunpack.c.h.b16 %v51
  %v662 = vunpack.c.l.b16 %v52
  %v663 = vunpack.c.h.b16 %v52
  %v664 = vunpack.c.l.b16 %v53
  %v665 = vunpack.c.h.b16 %v53
  %v666 = vunpack.c.l.b16 %v54
  %v667 = vunpack.c.h.b16 %v54
  %v668 = vunpack.c.l.b16 %v55
  %v669 = vunpack.c.h.b16 %v55
  %v670 = vunpack.c.l.b16 %v56
  %v671 = vunpack.c.h.b16 %v56
  %v672 = vunpack.c.l.b16 %v57
  %v673 = vunpack.c.h.b16 %v57
  %v674 = vunpack.c.l.b16 %v58
  %v675 = vunpack.c.h.b16 %v58
  %v676 = vunpack.c.l.b16 %v59
  %v677 = vunpack.c.h.b16 %v59
  %v678 = vunpack.c.l.b16 %v60
  %v679 = vunpack.c.h.b16 %v60
  %v680 = vunpack.c.l.b16 %v61
  %v681 = vunpack.c.h.b16 %v61
  %v682 = vunpack.c.l.b16 %v62
  %v683 = vunpack.c.h.b16 %v62
  %v684 = vunpack.c.l.b16 %v63
  %v685 = vunpack.c.h.b16 %v63
  %v686 = vunpack.c.l.b16 %v64
  %v687 = vunpack.c.h.b16 %v64
  %v688 = vunpack.c.l.b16 %v65
  %v689 = vunpack.c.h.b16 %v65
  %v690 = vunpack.c.l.b16 %v66
  %v691 = vunpack.c.h.b16 %v66
  %v692 = vunpack.c.l.b16 %v67
  %v693 = vunpack.c.h.b16 %v67
  %v694 = vunpack.c.l.b16 %v68
  %v695 = vunpack.c.h.b16 %v68
  %v696 = vunpack.c.l.b16 %v69
  %v697 = vunpack.c.h.b16 %v69
  %v698 = vunpack.c.l.b16 %v70
  %v699 = vunpack.c.h.b16 %v70
  %v700 = vunpack.c.l.b16 %v71
  %v701 = vunpack.c.h.b16 %v71
  %v702 = vunpack.c.l.b16 %v72
  %v703 = vunpack.c.h.b16 %v72
  %v704 = vunpack.c.l.b16 %v73
  %v705 = vunpack.c.h.b16 %v73
  %v706 = vunpack.c.l.b16 %v74
  %v707 = vunpack.c.h.b16 %v74
  %v708 = vunpack.c.l.b16 %v75
  %v709 = vunpack.c.h.b16 %v75
  %v710 = vunpack.c.l.b16 %v76
  %v711 = vunpack.c.h.b16 %v76
  %v712 = vunpack.c.l.b16 %v77
  %v713 = vunpack.c.h.b16 %v77
  %v714 = vunpack.c.l.b16 %v78
  %v715 = vunpack.c.h.b16 %v78
  %v716 = vunpack.c.l.b16 %v79
  %v717 = vunpack.c.h.b16 %v79
  %v718 = vunpack.c.l.b16 %v80
  %v719 = vunpack.c.h.b16 %v80
  %v720 = vunpack.c.l.b16 %v81
  %v721 = vunpack.c.h.b16 %v81
  %v722 = vunpack.c.l.b16 %v82
  %v723 = vunpack.c.h.b16 %v82
  %v724 = vunpack.c.l.b16 %v83
  %v725 = vunpack.c.h.b16 %v83
  %v726 = vunpack.c.l.b16 %v84
  %v727 = vunpack.c.h.b16 %v84
  %v728 = vunpack.c.l.b16 %v85
  %v729 = vunpack.c.h.b16 %v85
  %v730 = vunpack.c.l.b16 %v86
  %v731 = vunpack.c.h.b16 %v86
  %v732 = vunpack.c.l.b16 %v87
  %v733 = vunpack.c.h.b16 %v87
  %v734 = vunpack.c.l.b16 %v88
  %v735 = vunpack.c.h.b16 %v88
  %v736 = vunpack.c.l.b16 %v89
  %v737 = vunpack.c.h.b16 %v89
  %v738 = vunpack.c.l.b16 %v90
  %v739 = vunpack.c.h.b16 %v90
  %v740 = vunpack.c.l.b16 %v91
  %v741 = vunpack.c.h.b16 %v91
  %v742 = vunpack.c.l.b16 %v92
  %v743 = vunpack.c.h.b16 %v92
  %v744 = vunpack.c.l.b16 %v93
  %v745 = vunpack.c.h.b16 %v93
  %v746 = vunpack.c.l.b16 %v94
  %v747 = vunpack.c.h.b16 %v94
  %v748 = vunpack.c.l.b16 %v95
  %v749 = vunpack.c.h.b16 %v95
  %v750 = vunpack.c.l.b16 %v96
  %v751 = vunpack.c.h.b16 %v96
  %v752 = vunpack.c.l.b16 %v97
  %v753 = vunpack.c.h.b16 %v97
  %v754 = vunpack.c.l.b16 %v98
  %v755 = vunpack.c.h.b16 %v98
  %v756 = vunpack.c.l.b16 %v99
  %v757 = vunpack.c.h.b16 %v99
  %v758 = vunpack.c.l.b16 %v100
  %v759 = vunpack.c.h.b16 %v100
  %v760 = vunpack.c.l.b16 %v101
  %v761 = vunpack.c.h.b16 %v101
  %v762 = vunpack.c.l.b16 %v102
  %v763 = vunpack.c.h.b16 %v102
  %v764 = vunpack.c.l.b16 %v103
  %v765 = vunpack.c.h.b16 %v103
  %v766 = vunpack.c.l.b16 %v104
  %v767 = vunpack.c.h.b16 %v104
  %v768 = vunpack.c.l.b16 %v105
  %v769 = vunpack.c.h.b16 %v105
  %v770 = vunpack.c.l.b16 %v106
  %v771 = vunpack.c.h.b16 %v106
  %v772 = vunpack.c.l.b16 %v107
  %v773 = vunpack.c.h.b16 %v107
  %v774 = vunpack.c.l.b16 %v108
  %v775 = vunpack.c.h.b16 %v108
  %v776 = vunpack.c.l.b16 %v109
  %v777 = vunpack.c.h.b16 %v109
  %v778 = vunpack.c.l.b16 %v110
  %v779 = vunpack.c.h.b16 %v110
  %v780 = vunpack.c.l.b16 %v111
  %v781 = vunpack.c.h.b16 %v111
  %v782 = vunpack.c.l.b16 %v112
  %v783 = vunpack.c.h.b16 %v112
  %v784 = vunpack.c.l.b16 %v113
  %v785 = vunpack.c.h.b16 %v113
  %v786 = vunpack.c.l.b16 %v114
  %v787 = vunpack.c.h.b16 %v114
  %v788 = vunpack.c.l.b16 %v115
  %v789 = vunpack.c.h.b16 %v115
  %v790 = vunpack.c.l.b16 %v116
  %v791 = vunpack.c.h.b16 %v116
  %v792 = vunpack.c.l.b16 %v117
  %v793 = vunpack.c.h.b16 %v117
  %v794 = vunpack.c.l.b16 %v118
  %v795 = vunpack.c.h.b16 %v118
  %v796 = vunpack.c.l.b16 %v119
  %v797 = vunpack.c.h.b16 %v119
  %v798 = vunpack.c.l.b16 %v120
  %v799 = vunpack.c.h.b16 %v120
  %v800 = vunpack.c.l.b16 %v121
  %v801 = vunpack.c.h.b16 %v121
  %v802 = vunpack.c.l.b16 %v122
  %v803 = vunpack.c.h.b16 %v122
  %v804 = vunpack.c.l.b16 %v123
  %v805 = vunpack.c.h.b16 %v123
  %v806 = vunpack.c.l.b16 %v124
  %v807 = vunpack.c.h.b16 %v124
  %v808 = vunpack.c.l.b16 %v125
  %v809 = vunpack.c.h.b16 %v125
  %v810 = vunpack.c.l.b16 %v126
  %v811 = vunpack.c.h.b16 %v126
  %v812 = vunpack.c.l.b16 %v127
  %v813 = vunpack.c.h.b16 %v127
  %v814 = vunpack.c.l.b16 %v128
  %v815 = vunpack.c.h.b16 %v128
  %v816 = vunpack.c.l.b16 %v129
  %v817 = vunpack.c.h.b16 %v129
  %v818 = vunpack.c.l.b16 %v130
  %v819 = vunpack.c.h.b16 %v130
  %v820 = vunpack.c.l.b16 %v131
  %v821 = vunpack.c.h.b16 %v131
  %v822 = vunpack.c.l.b16 %v132
  %v823 = vunpack.c.h.b16 %v132
  %v824 = vunpack.c.l.b16 %v133
  %v825 = vunpack.c.h.b16 %v133
  %v826 = vunpack.c.l.b16 %v134
  %v827 = vunpack.c.h.b16 %v134
  %v828 = vunpack.c.l.b16 %v135
  %v829 = vunpack.c.h.b16 %v135
  %v830 = vunpack.c.l.b16 %v136
  %v831 = vunpack.c.h.b16 %v136
  %v832 = vunpack.c.l.b16 %v137
  %v833 = vunpack.c.h.b16 %v137
  %v834 = vunpack.c.l.b16 %v138
  %v835 = vunpack.c.h.b16 %v138
  %v836 = vunpack.c.l.b16 %v139
  %v837 = vunpack.c.h.b16 %v139
  %v838 = vunpack.c.l.b16 %v140
  %v839 = vunpack.c.h.b16 %v140
  %v840 = vunpack.c.l.b16 %v141
  %v841 = vunpack.c.h.b16 %v141
  %v842 = vunpack.c.l.b16 %v142
  %v843 = vunpack.c.h.b16 %v142
  %v844 = vunpack.c.l.b16 %v143
  %v845 = vunpack.c.h.b16 %v143
  %v846 = vunpack.c.l.b16 %v144
  %v847 = vunpack.c.h.b16 %v144
  %v848 = vunpack.c.l.b16 %v145
  %v849 = vunpack.c.h.b16 %v145
  %v850 = vunpack.c.l.b16 %v146
  %v851 = vunpack.c.h.b16 %v146
  %v852 = vunpack.c.l.b16 %v147
  %v853 = vunpack.c.h.b16 %v147
  %v854 = vunpack.c.l.b16 %v148
  %v855 = vunpack.c.h.b16 %v148
  %v856 = vunpack.c.l.b16 %v149
  %v857 = vunpack.c.h.b16 %v149
  %v858 = vunpack.c.l.b16 %v150
  %v859 = vunpack.c.h.b16 %v150
  %v860 = vunpack.c.l.b16 %v151
  %v861 = vunpack.c.h.b16 %v151
  %v862 = vunpack.c.l.b16 %v152
  %v863 = vunpack.c.h.b16 %v152
  %v864 = vunpack.c.l.b16 %v153
  %v865 = vunpack.c.h.b16 %v153
  %v866 = vunpack.c.l.b16 %v154
  %v867 = vunpack.c.h.b16 %v154
  %v868 = vunpack.c.l.b16 %v155
  %v869 = vunpack.c.h.b16 %v155
  %v870 = vunpack.c.l.b16 %v156
  %v871 = vunpack.c.h.b16 %v156
  %v872 = vunpack.c.l.b16 %v157
  %v873 = vunpack.c.h.b16 %v157
  %v874 = vunpack.c.l.b16 %v158
  %v875 = vunpack.c.h.b16 %v158
  %v876 = vunpack.c.l.b16 %v159
  %v877 = vunpack.c.h.b16 %v159
  %v878 = vunpack.c.l.b16 %v160
  %v879 = vunpack.c.h.b16 %v160
  %v880 = vunpack.c.l.b16 %v161
  %v881 = vunpack.c.h.b16 %v161
  %v882 = vunpack.c.l.b16 %v162
  %v883 = vunpack.c.h.b16 %v162
  %v884 = vunpack.c.l.b16 %v163
  %v885 = vunpack.c.h.b16 %v163
  %v886 = vunpack.c.l.b16 %v164
  %v887 = vunpack.c.h.b16 %v164
  %v888 = vunpack.c.l.b16 %v165
  %v889 = vunpack.c.h.b16 %v165
  %v890 = vunpack.c.l.b16 %v166
  %v891 = vunpack.c.h.b16 %v166
  %v892 = vunpack.c.l.b16 %v167
  %v893 = vunpack.c.h.b16 %v167
  %v894 = vunpack.c.l.b16 %v168
  %v895 = vunpack.c.h.b16 %v168
  %v896 = vunpack.c.l.b16 %v169
  %v897 = vunpack.c.h.b16 %v169
  %v898 = vunpack.c.l.b16 %v170
  %v899 = vunpack.c.h.b16 %v170
  %v900 = vunpack.c.l.b16 %v171
  %v901 = vunpack.c.h.b16 %v171
  %v902 = vunpack.c.l.b16 %v172
  %v903 = vunpack.c.h.b16 %v172
  %v904 = vunpack.c.l.b16 %v173
  %v905 = vunpack.c.h.b16 %v173
  %v906 = vunpack.c.l.b16 %v174
  %v907 = vunpack.c.h.b16 %v174
  %v908 = vunpack.c.l.b16 %v175
  %v909 = vunpack.c.h.b16 %v175
  %v910 = vunpack.c.l.b16 %v176
  %v911 = vunpack.c.h.b16 %v176
  %v912 = vunpack.c.l.b16 %v177
  %v913 = vunpack.c.h.b16 %v177
  %v914 = vunpack.c.l.b16 %v178
  %v915 = vunpack.c.h.b16 %v178
  %v916 = vunpack.c.l.b16 %v179
  %v917 = vunpack.c.h.b16 %v179
  %v918 = vunpack.c.l.b16 %v180
  %v919 = vunpack.c.h.b16 %v180
  %v920 = vunpack.c.l.b16 %v181
  %v921 = vunpack.c.h.b16 %v181
  %v922 = vunpack.c.l.b16 %v182
  %v923 = vunpack.c.h.b16 %v182
  %v924 = vunpack.c.l.b16 %v183
  %v925 = vunpack.c.h.b16 %v183
  %v926 = vunpack.c.l.b16 %v184
  %v927 = vunpack.c.h.b16 %v184
  %v928 = vunpack.c.l.b16 %v185
  %v929 = vunpack.c.h.b16 %v185
  %v930 = vunpack.c.l.b16 %v186
  %v931 = vunpack.c.h.b16 %v186
  %v932 = vunpack.c.l.b16 %v187
  %v933 = vunpack.c.h.b16 %v187
  %v934 = vunpack.c.l.b16 %v188
  %v935 = vunpack.c.h.b16 %v188
  %v936 = vunpack.c.l.b16 %v189
  %v937 = vunpack.c.h.b16 %v189
  %v938 = vunpack.c.l.b16 %v190
  %v939 = vunpack.c.h.b16 %v190
  %v940 = vunpack.c.l.b16 %v191
  %v941 = vunpack.c.h.b16 %v191
  %v942 = vunpack.c.l.b16 %v192
  %v943 = vunpack.c.h.b16 %v192
  %v944 = vunpack.c.l.b16 %v193
  %v945 = vunpack.c.h.b16 %v193
  %v946 = vunpack.c.l.b16 %v194
  %v947 = vunpack.c.h.b16 %v194
  %v948 = vunpack.c.l.b16 %v195
  %v949 = vunpack.c.h.b16 %v195
  %v950 = vunpack.c.l.b16 %v196
  %v951 = vunpack.c.h.b16 %v196
  %v952 = vunpack.c.l.b16 %v197
  %v953 = vunpack.c.h.b16 %v197
  %v954 = vunpack.c.l.b16 %v198
  %v955 = vunpack.c.h.b16 %v198
  %v956 = vunpack.c.l.b16 %v199
  %v957 = vunpack.c.h.b16 %v199
  %v958 = vunpack.c.l.b16 %v200
  %v959 = vunpack.c.h.b16 %v200
  %v960 = vunpack.c.l.b16 %v201
  %v961 = vunpack.c.h.b16 %v201
  %v962 = vunpack.c.l.b16 %v202
  %v963 = vunpack.c.h.b16 %v202
  %v964 = vunpack.c.l.b16 %v203
  %v965 = vunpack.c.h.b16 %v203
  %v966 = vunpack.c.l.b16 %v204
  %v967 = vunpack.c.h.b16 %v204
  %v968 = vunpack.c.l.b16 %v205
  %v969 = vunpack.c.h.b16 %v205
  %v970 = vunpack.c.l.b16 %v206
  %v971 = vunpack.c.h.b16 %v206
  %v972 = vunpack.c.l.b16 %v207
  %v973 = vunpack.c.h.b16 %v207
  %v974 = vunpack.c.l.b16 %v208
  %v975 = vunpack.c.h.b16 %v208
  %v976 = vunpack.c.l.b16 %v209
  %v977 = vunpack.c.h.b16 %v209
  %v978 = vunpack.c.l.b16 %v210
  %v979 = vunpack.c.h.b16 %v210
  %v980 = vunpack.c.l.b16 %v211
  %v981 = vunpack.c.h.b16 %v211
  %v982 = vunpack.c.l.b16 %v212
  %v983 = vunpack.c.h.b16 %v212
  %v984 = vunpack.c.l.b16 %v213
  %v985 = vunpack.c.h.b16 %v213
  %v986 = vunpack.c.l.b16 %v214
  %v987 = vunpack.c.h.b16 %v214
  %v988 = vunpack.c.l.b16 %v215
  %v989 = vunpack.c.h.b16 %v215
  %v990 = vunpack.c.l.b16 %v216
  %v991 = vunpack.c.h.b16 %v216
  %v992 = vunpack.c.l.b16 %v217
  %v993 = vunpack.c.h.b16 %v217
  %v994 = vunpack.c.l.b16 %v218
  %v995 = vunpack.c.h.b16 %v218
  %v996 = vunpack.c.l.b16 %v219
  %v997 = vunpack.c.h.b16 %v219
  %v998 = vunpack.c.l.b16 %v220
  %v999 = vunpack.c.h.b16 %v220
  %v1000 = vunpack.c.l.b16 %v221
  %v1001 = vunpack.c.h.b16 %v221
  %v1002 = vunpack.c.l.b16 %v222
  %v1003 = vunpack.c.h.b16 %v222
  %v1004 = vunpack.c.l.b16 %v223
  %v1005 = vunpack.c.h.b16 %v223
  %v1006 = vunpack.c.l.b16 %v224
  %v1007 = vunpack.c.h.b16 %v224
  %v1008 = vunpack.c.l.b16 %v225
  %v1009 = vunpack.c.h.b16 %v225
  %v1010 = vunpack.c.l.b16 %v226
  %v1011 = vunpack.c.h.b16 %v226
  %v1012 = vunpack.c.l.b16 %v227
  %v1013 = vunpack.c.h.b16 %v227
  %v1014 = vunpack.c.l.b16 %v228
  %v1015 = vunpack.c.h.b16 %v228
  %v1016 = vunpack.c.l.b16 %v229
  %v1017 = vunpack.c.h.b16 %v229
  %v1018 = vunpack.c.l.b16 %v230
  %v1019 = vunpack.c.h.b16 %v230
  %v1020 = vunpack.c.l.b16 %v231
  %v1021 = vunpack.c.h.b16 %v231
  %v1022 = vunpack.c.l.b16 %v232
  %v1023 = vunpack.c.h.b16 %v232
  %v1024 = vunpack.c.l.b16 %v233
  %v1025 = vunpack.c.h.b16 %v233
  %v1026 = vunpack.c.l.b16 %v234
  %v1027 = vunpack.c.h.b16 %v234
  %v1028 = vunpack.c.l.b16 %v235
  %v1029 = vunpack.c.h.b16 %v235
  %v1030 = vunpack.c.l.b16 %v236
  %v1031 = vunpack.c.h.b16 %v236
  %v1032 = vunpack.c.l.b16 %v237
  %v1033 = vunpack.c.h.b16 %v237
  %v1034 = vunpack.c.l.b16 %v238
  %v1035 = vunpack.c.h.b16 %v238
  %v1036 = vunpack.c.l.b16 %v239
  %v1037 = vunpack.c.h.b16 %v239
  %v1038 = vunpack.c.l.b16 %v240
  %v1039 = vunpack.c.h.b16 %v240
  %v1040 = vunpack.c.l.b16 %v241
  %v1041 = vunpack.c.h.b16 %v241
  %v1042 = vunpack.c.l.b16 %v242
  %v1043 = vunpack.c.h.b16 %v242
  %v1044 = vunpack.c.l.b16 %v243
  %v1045 = vunpack.c.h.b16 %v243
  %v1046 = vunpack.c.l.b16 %v244
  %v1047 = vunpack.c.h.b16 %v244
  %v1048 = vunpack.c.l.b16 %v245
  %v1049 = vunpack.c.h.b16 %v245
  %v1050 = vunpack.c.l.b16 %v246
  %v1051 = vunpack.c.h.b16 %v246
  %v1052 = vunpack.c.l.b16 %v247
  %v1053 = vunpack.c.h.b16 %v247
  %v1054 = vunpack.c.l.b16 %v248
  %v1055 = vunpack.c.h.b16 %v248
  %v1056 = vunpack.c.l.b16 %v249
  %v1057 = vunpack.c.h.b16 %v249
  %v1058 = vunpack.c.l.b16 %v250
  %v1059 = vunpack.c.h.b16 %v250
  %v1060 = vunpack.c.l.b16 %v251
  %v1061 = vunpack.c.h.b16 %v251
  %v1062 = vunpack.c.l.b16 %v252
  %v1063 = vunpack.c.h.b16 %v252
  %v1064 = vunpack.c.l.b16 %v253
  %v1065 = vunpack.c.h.b16 %v253
  %v1066 = vunpack.c.l.b16 %v254
  %v1067 = vunpack.c.h.b16 %v254
  %v1068 = vunpack.c.l.b16 %v255
  %v1069 = vunpack.c.h.b16 %v255
  %v1070 = vunpack.c.l.b16 %v256
  %v1071 = vunpack.c.h.b16 %v256
  %v1072 = vunpack.c.l.b16 %v257
  %v1073 = vunpack.c.h.b16 %v257
  %v1074 = vunpack.c.l.b16 %v258
  %v1075 = vunpack.c.h.b16 %v258
  %v1076 = vunpack.c.l.b16 %v259
  %v1077 = vunpack.c.h.b16 %v259
  %v1078 = vunpack.c.l.b16 %v260
  %v1079 = vunpack.c.h.b16 %v260
  %v1080 = vunpack.c.l.b16 %v261
  %v1081 = vunpack.c.h.b16 %v261
  %v1082 = vunpack.c.l.b16 %v262
  %v1083 = vunpack.c.h.b16 %v262
  %v1084 = vunpack.c.l.b16 %v263
  %v1085 = vunpack.c.h.b16 %v263
  %v1086 = vunpack.c.l.b16 %v264
  %v1087 = vunpack.c.h.b16 %v264
  %v1088 = vunpack.c.l.b16 %v265
  %v1089 = vunpack.c.h.b16 %v265
  %v1090 = vunpack.c.l.b16 %v266
  %v1091 = vunpack.c.h.b16 %v266
  %v1092 = vunpack.c.l.b16 %v267
  %v1093 = vunpack.c.h.b16 %v267
  %v1094 = vunpack.c.l.b16 %v268
  %v1095 = vunpack.c.h.b16 %v268
  %v1096 = vunpack.c.l.b16 %v269
  %v1097 = vunpack.c.h.b16 %v269
  %v1098 = vunpack.c.l.b16 %v270
  %v1099 = vunpack.c.h.b16 %v270
  %v1100 = vunpack.c.l.b16 %v271
  %v1101 = vunpack.c.h.b16 %v271
  %v1102 = vunpack.c.l.b16 %v272
  %v1103 = vunpack.c.h.b16 %v272
  %v1104 = vunpack.c.l.b16 %v273
  %v1105 = vunpack.c.h.b16 %v273
  %v1106 = vunpack.c.l.b16 %v274
  %v1107 = vunpack.c.h.b16 %v274
  %v1108 = vunpack.c.l.b16 %v275
  %v1109 = vunpack.c.h.b16 %v275
  %v1110 = vunpack.c.l.b16 %v276
  %v1111 = vunpack.c.h.b16 %v276
  %v1112 = vunpack.c.l.b16 %v277
  %v1113 = vunpack.c.h.b16 %v277
  %v1114 = vpack.c.b16 %v604, %v602
  %v1115 = vpack.c.b16 %v605, %v603
  %v1116 = vpack.c.b16 %v608, %v606
  %v1117 = vpack.c.b16 %v609, %v607
  %v1118 = vpack.c.b16 %v612, %v610
  %v1119 = vpack.c.b16 %v613, %v611
  %v1120 = vpack.c.b16 %v616, %v614
  %v1121 = vpack.c.b16 %v617, %v615
  %v1122 = vpack.c.b16 %v620, %v618
  %v1123 = vpack.c.b16 %v621, %v619
  %v1124 = vpack.c.b16 %v624, %v622
  %v1125 = vpack.c.b16 %v625, %v623
  %v1126 = vpack.c.b16 %v628, %v626
  %v1127 = vpack.c.b16 %v629, %v627
  %v1128 = vpack.c.b16 %v632, %v630
  %v1129 = vpack.c.b16 %v633, %v631
  %v1130 = vpack.c.b16 %v636, %v634
  %v1131 = vpack.c.b16 %v637, %v635
  %v1132 = vpack.c.b16 %v640, %v638
  %v1133 = vpack.c.b16 %v641, %v639
  %v1134 = vpack.c.b16 %v644, %v642
  %v1135 = vpack.c.b16 %v645, %v643
  %v1136 = vpack.c.b16 %v648, %v646
  %v1137 = vpack.c.b16 %v649, %v647
  %v1138 = vpack.c.b16 %v652, %v650
  %v1139 = vpack.c.b16 %v653, %v651
  %v1140 = vpack.c.b16 %v656, %v654
  %v1141 = vpack.c.b16 %v657, %v655
  %v1142 = vpack.c.b16 %v660, %v658
  %v1143 = vpack.c.b16 %v661, %v659
  %v1144 = vpack.c.b16 %v664, %v662
  %v1145 = vpack.c.b16 %v665, %v663
  %v1146 = vpack.c.b16 %v668, %v666
  %v1147 = vpack.c.b16 %v669, %v667
  %v1148 = vpack.c.b16 %v672, %v670
  %v1149 = vpack.c.b16 %v673, %v671
  %v1150 = vpack.c.b16 %v676, %v674
  %v1151 = vpack.c.b16 %v677, %v675
  %v1152 = vpack.c.b16 %v680, %v678
  %v1153 = vpack.c.b16 %v681, %v679
  %v1154 = vpack.c.b16 %v684, %v682
  %v1155 = vpack.c.b16 %v685, %v683
  %v1156 = vpack.c.b16 %v688, %v686
  %v1157 = vpack.c.b16 %v689, %v687
  %v1158 = vpack.c.b16 %v692, %v690
  %v1159 = vpack.c.b16 %v693, %v691
  %v1160 = vpack.c.b16 %v696, %v694
  %v1161 = vpack.c.b16 %v697, %v695
  %v1162 = vpack.c.b16 %v700, %v698
  %v1163 = vpack.c.b16 %v701, %v699
  %v1164 = vpack.c.b16 %v704, %v702
  %v1165 = vpack.c.b16 %v705, %v703
  %v1166 = vpack.c.b16 %v708, %v706
  %v1167 = vpack.c.b16 %v709, %v707
  %v1168 = vpack.c.b16 %v712, %v710
  %v1169 = vpack.c.b16 %v713, %v711
  %v1170 = vpack.c.b16 %v716, %v714
  %v1171 = vpack.c.b16 %v717, %v715
  %v1172 = vpack.c.b16 %v720, %v718
  %v1173 = vpack.c.b16 %v721, %v719
  %v1174 = vpack.c.b16 %v724, %v722
  %v1175 = vpack.c.b16 %v725, %v723
  %v1176 = vpack.c.b16 %v728, %v726
  %v1177 = vpack.c.b16 %v729, %v727
  %v1178 = vpack.c.b16 %v732, %v730
  %v1179 = vpack.c.b16 %v733, %v731
  %v1180 = vpack.c.b16 %v736, %v734
  %v1181 = vpack.c.b16 %v737, %v735
  %v1182 = vpack.c.b16 %v740, %v738
  %v1183 = vpack.c.b16 %v741, %v739
  %v1184 = vpack.c.b16 %v744, %v742
  %v1185 = vpack.c.b16 %v745, %v743
  %v1186 = vpack.c.b16 %v748, %v746
  %v1187 = vpack.c.b16 %v749, %v747
  %v1188 = vpack.c.b16 %v752, %v750
  %v1189 = vpack.c.b16 %v753, %v751
  %v1190 = vpack.c.b16 %v756, %v754
  %v1191 = vpack.c.b16 %v757, %v755
  %v1192 = vpack.c.b16 %v760, %v758
  %v1193 = vpack.c.b16 %v761, %v759
  %v1194 = vpack.c.b16 %v764, %v762
  %v1195 = vpack.c.b16 %v765, %v763
  %v1196 = vpack.c.b16 %v768, %v766
  %v1197 = vpack.c.b16 %v769, %v767
  %v1198 = vpack.c.b16 %v772, %v770
  %v1199 = vpack.c.b16 %v773, %v771
  %v1200 = vpack.c.b16 %v776, %v774
  %v1201 = vpack.c.b16 %v777, %v775
  %v1202 = vpack.c.b16 %v780, %v778
  %v1203 = vpack.c.b16 %v781, %v779
  %v1204 = vpack.c.b16 %v784, %v782
  %v1205 = vpack.c.b16 %v785, %v783
  %v1206 = vpack.c.b16 %v788, %v786
  %v1207 = vpack.c.b16 %v789, %v787
  %v1208 = vpack.c.b16 %v792, %v790
  %v1209 = vpack.c.b16 %v793, %v791
  %v1210 = vpack.c.b16 %v796, %v794
  %v1211 = vpack.c.b16 %v797, %v795
  %v1212 = vpack.c.b16 %v800, %v798
  %v1213 = vpack.c.b16 %v801, %v799
  %v1214 = vpack.c.b16 %v804, %v802
  %v1215 = vpack.c.b16 %v805, %v803
  %v1216 = vpack.c.b16 %v808, %v806
  %v1217 = vpack.c.b16 %v809, %v807
  %v1218 = vpack.c.b16 %v812, %v810
  %v1219 = vpack.c.b16 %v813, %v811
  %v1220 = vpack.c.b16 %v816, %v814
  %v1221 = vpack.c.b16 %v817, %v815
  %v1222 = vpack.c.b16 %v820, %v818
  %v1223 = vpack.c.b16 %v821, %v819
  %v1224 = vpack.c.b16 %v824, %v822
  %v1225 = vpack.c.b16 %v825, %v823
  %v1226 = vpack.c.b16 %v828, %v826
  %v1227 = vpack.c.b16 %v829, %v827
  %v1228 = vpack.c.b16 %v832, %v830
  %v1229 = vpack.c.b16 %v833, %v831
  %v1230 = vpack.c.b16 %v836, %v834
  %v1231 = vpack.c.b16 %v837, %v835
  %v1232 = vpack.c.b16 %v840, %v838
  %v1233 = vpack.c.b16 %v841, %v839
  %v1234 = vpack.c.b16 %v844, %v842
  %v1235 = vpack.c.b16 %v845, %v843
  %v1236 = vpack.c.b16 %v848, %v846
  %v1237 = vpack.c.b16 %v849, %v847
  %v1238 = vpack.c.b16 %v852, %v850
  %v1239 = vpack.c.b16 %v853, %v851
  %v1240 = vpack.c.b16 %v856, %v854
  %v1241 = vpack.c.b16 %v857, %v855
  %v1242 = vpack.c.b16 %v860, %v858
  %v1243 = vpack.c.b16 %v861, %v859
  %v1244 = vpack.c.b16 %v864, %v862
  %v1245 = vpack.c.b16 %v865, %v863
  %v1246 = vpack.c.b16 %v868, %v866
  %v1247 = vpack.c.b16 %v869, %v867
  %v1248 = vpack.c.b16 %v872, %v870
  %v1249 = vpack.c.b16 %v873, %v871
  %v1250 = vpack.c.b16 %v876, %v874
  %v1251 = vpack.c.b16 %v877, %v875
  %v1252 = vpack.c.b16 %v880, %v878
  %v1253 = vpack.c.b16 %v881, %v879
  %v1254 = vpack.c.b16 %v884, %v882
  %v1255 = vpack.c.b16 %v885, %v883
  %v1256 = vpack.c.b16 %v888, %v886
  %v1257 = vpack.c.b16 %v889, %v887
  %v1258 = vpack.c.b16 %v892, %v890
  %v1259 = vpack.c.b16 %v893, %v891
  %v1260 = vpack.c.b16 %v896, %v894
  %v1261 = vpack.c.b16 %v897, %v895
  %v1262 = vpack.c.b16 %v900, %v898
  %v1263 = vpack.c.b16 %v901, %v899
  %v1264 = vpack.c.b16 %v904, %v902
  %v1265 = vpack.c.b16 %v905, %v903
  %v1266 = vpack.c.b16 %v908, %v906
  %v1267 = vpack.c.b16 %v909, %v907
  %v1268 = vpack.c.b16 %v912, %v910
  %v1269 = vpack.c.b16 %v913, %v911
  %v1270 = vpack.c.b16 %v916, %v914
  %v1271 = vpack.c.b16 %v917, %v915
  %v1272 = vpack.c.b16 %v920, %v918
  %v1273 = vpack.c.b16 %v921, %v919
  %v1274 = vpack.c.b16 %v924, %v922
  %v1275 = vpack.c.b16 %v925, %v923
  %v1276 = vpack.c.b16 %v928, %v926
  %v1277 = vpack.c.b16 %v929, %v927
  %v1278 = vpack.c.b16 %v932, %v930
  %v1279 = vpack.c.b16 %v933, %v931
  %v1280 = vpack.c.b16 %v936, %v934
  %v1281 = vpack.c.b16 %v937, %v935
  %v1282 = vpack.c.b16 %v940, %v938
  %v1283 = vpack.c.b16 %v941, %v939
  %v1284 = vpack.c.b16 %v944, %v942
  %v1285 = vpack.c.b16 %v945, %v943
  %v1286 = vpack.c.b16 %v948, %v946
  %v1287 = vpack.c.b16 %v949, %v947
  %v1288 = vpack.c.b16 %v952, %v950
  %v1289 = vpack.c.b16 %v953, %v951
  %v1290 = vpack.c.b16 %v956, %v954
  %v1291 = vpack.c.b16 %v957, %v955
  %v1292 = vpack.c.b16 %v960, %v958
  %v1293 = vpack.c.b16 %v961, %v959
  %v1294 = vpack.c.b16 %v964, %v962
  %v1295 = vpack.c.b16 %v965, %v963
  %v1296 = vpack.c.b16 %v968, %v966
  %v1297 = vpack.c.b16 %v969, %v967
  %v1298 = vpack.c.b16 %v972, %v970
  %v1299 = vpack.c.b16 %v973, %v971
  %v1300 = vpack.c.b16 %v976, %v974
  %v1301 = vpack.c.b16 %v977, %v975
  %v1302 = vpack.c.b16 %v980, %v978
  %v1303 = vpack.c.b16 %v981, %v979
  %v1304 = vpack.c.b16 %v984, %v982
  %v1305 = vpack.c.b16 %v985, %v983
  %v1306 = vpack.c.b16 %v988, %v986
  %v1307 = vpack.c.b16 %v989, %v987
  %v1308 = vpack.c.b16 %v992, %v990
  %v1309 = vpack.c.b16 %v993, %v991
  %v1310 = vpack.c.b16 %v996, %v994
  %v1311 = vpack.c.b16 %v997, %v995
  %v1312 = vpack.c.b16 %v1000, %v998
  %v1313 = vpack.c.b16 %v1001, %v999
  %v1314 = vpack.c.b16 %v1004, %v1002
  %v1315 = vpack.c.b16 %v1005, %v1003
  %v1316 = vpack.c.b16 %v1008, %v1006
  %v1317 = vpack.c.b16 %v1009, %v1007
  %v1318 = vpack.c.b16 %v1012, %v1010
  %v1319 = vpack.c.b16 %v1013, %v1011
  %v1320 = vpack.c.b16 %v1016, %v1014
  %v1321 = vpack.c.b16 %v1017, %v1015
  %v1322 = vpack.c.b16 %v1020, %v1018
  %v1323 = vpack.c.b16 %v1021, %v1019
  %v1324 = vpack.c.b16 %v1024, %v1022
  %v1325 = vpack.c.b16 %v1025, %v1023
  %v1326 = vpack.c.b16 %v1028, %v1026
  %v1327 = vpack.c.b16 %v1029, %v1027
  %v1328 = vpack.c.b16 %v1032, %v1030
  %v1329 = vpack.c.b16 %v1033, %v1031
  %v1330 = vpack.c.b16 %v1036, %v1034
  %v1331 = vpack.c.b16 %v1037, %v1035
  %v1332 = vpack.c.b16 %v1040, %v1038
  %v1333 = vpack.c.b16 %v1041, %v1039
  %v1334 = vpack.c.b16 %v1044, %v1042
  %v1335 = vpack.c.b16 %v1045, %v1043
  %v1336 = vpack.c.b16 %v1048, %v1046
  %v1337 = vpack.c.b16 %v1049, %v1047
  %v1338 = vpack.c.b16 %v1052, %v1050
  %v1339 = vpack.c.b16 %v1053, %v1051
  %v1340 = vpack.c.b16 %v1056, %v1054
  %v1341 = vpack.c.b16 %v1057, %v1055
  %v1342 = vpack.c.b16 %v1060, %v1058
  %v1343 = vpack.c.b16 %v1061, %v1059
  %v1344 = vpack.c.b16 %v1064, %v1062
  %v1345 = vpack.c.b16 %v1065, %v1063
  %v1346 = vpack.c.b16 %v1068, %v1066
  %v1347 = vpack.c.b16 %v1069, %v1067
  %v1348 = vpack.c.b16 %v1072, %v1070
  %v1349 = vpack.c.b16 %v1073, %v1071
  %v1350 = vpack.c.b16 %v1076, %v1074
  %v1351 = vpack.c.b16 %v1077, %v1075
  %v1352 = vpack.c.b16 %v1080, %v1078
  %v1353 = vpack.c.b16 %v1081, %v1079
  %v1354 = vpack.c.b16 %v1084, %v1082
  %v1355 = vpack.c.b16 %v1085, %v1083
  %v1356 = vpack.c.b16 %v1088, %v1086
  %v1357 = vpack.c.b16 %v1089, %v1087
  %v1358 = vpack.c.b16 %v1092, %v1090
  %v1359 = vpack.c.b16 %v1093, %v1091
  %v1360 = vpack.c.b16 %v1096, %v1094
  %v1361 = vpack.c.b16 %v1097, %v1095
  %v1362 = vpack.c.b16 %v1100, %v1098
  %v1363 = vpack.c.b16 %v1101, %v1099
  %v1364 = vpack.c.b16 %v1104, %v1102
  %v1365 = vpack.c.b16 %v1105, %v1103
  %v1366 = vpack.c.b16 %v1108, %v1106
  %v1367 = vpack.c.b16 %v1109, %v1107
  %v1368 = vpack.c.b16 %v1112, %v1110
  %v1369 = vpack.c.b16 %v1113, %v1111
  %1626 = vmatprep.subr.bf16.mxu0 %v1129
  %1627 = vmatpush1.bf16.msra.mxu0 %v1128
  %1628 = vmatprep.subr.bf16.mxu0 %v1127
  %1629 = vmatpush1.bf16.msra.mxu0 %v1126
  %1630 = vmatprep.subr.bf16.mxu0 %v1125
  %1631 = vmatpush1.bf16.msra.mxu0 %v1124
  %1632 = vmatprep.subr.bf16.mxu0 %v1123
  %1633 = vmatpush1.bf16.msra.mxu0 %v1122
  %1634 = vmatprep.subr.bf16.mxu0 %v1121
  %1635 = vmatpush1.bf16.msra.mxu0 %v1120
  %1636 = vmatprep.subr.bf16.mxu0 %v1119
  %1637 = vmatpush1.bf16.msra.mxu0 %v1118
  %1638 = vmatprep.subr.bf16.mxu0 %v1117
  %1639 = vmatpush1.bf16.msra.mxu0 %v1116
  %1640 = vmatprep.subr.bf16.mxu0 %v1115
  %1641 = vmatpush1.bf16.msra.mxu0 %v1114
  %1642 = vmatprep.subr.bf16.mxu0 %v1145
  %1643 = vmatpush2.bf16.msra.mxu0 %v1144
  %1644 = vmatprep.subr.bf16.mxu0 %v1143
  %1645 = vmatpush2.bf16.msra.mxu0 %v1142
  %1646 = vmatprep.subr.bf16.mxu0 %v1141
  %1647 = vmatpush2.bf16.msra.mxu0 %v1140
  %1648 = vmatprep.subr.bf16.mxu0 %v1139
  %1649 = vmatpush2.bf16.msra.mxu0 %v1138
  %1650 = vmatprep.subr.bf16.mxu0 %v1137
  %1651 = vmatpush2.bf16.msra.mxu0 %v1136
  %1652 = vmatprep.subr.bf16.mxu0 %v1135
  %1653 = vmatpush2.bf16.msra.mxu0 %v1134
  %1654 = vmatprep.subr.bf16.mxu0 %v1133
  %1655 = vmatpush2.bf16.msra.mxu0 %v1132
  %1656 = vmatprep.subr.bf16.mxu0 %v1131
  %1657 = vmatpush2.bf16.msra.mxu0 %v1130
  %1658 = vmatprep.mubr.bf16.mxu0 %v315
  %1659 = vmatmul.mubr.bf16.gmra.mxu0 %v314
  %v1660 = vpop.f32.mrf.mxu0
  %v1661 = vadd.f32 %v283, %v1660
  %v1662 = vpop.f32.mrf.mxu0
  %v1663 = vadd.f32 %v287, %v1662
  %v1664 = vpop.f32.mrf.mxu0
  %v1665 = vpop.f32.mrf.mxu0
  %1666 = vdwg.mxu0
  %1667 = vmatprep.subr.bf16.mxu0 %v1161
  %1668 = vmatpush1.bf16.msra.mxu0 %v1160
  %1669 = vmatprep.subr.bf16.mxu0 %v1159
  %1670 = vmatpush1.bf16.msra.mxu0 %v1158
  %1671 = vmatprep.subr.bf16.mxu0 %v1157
  %1672 = vmatpush1.bf16.msra.mxu0 %v1156
  %1673 = vmatprep.subr.bf16.mxu0 %v1155
  %1674 = vmatpush1.bf16.msra.mxu0 %v1154
  %1675 = vmatprep.subr.bf16.mxu0 %v1153
  %1676 = vmatpush1.bf16.msra.mxu0 %v1152
  %1677 = vmatprep.subr.bf16.mxu0 %v1151
  %1678 = vmatpush1.bf16.msra.mxu0 %v1150
  %1679 = vmatprep.subr.bf16.mxu0 %v1149
  %1680 = vmatpush1.bf16.msra.mxu0 %v1148
  %1681 = vmatprep.subr.bf16.mxu0 %v1147
  %1682 = vmatpush1.bf16.msra.mxu0 %v1146
  %1683 = vmatprep.subr.bf16.mxu0 %v1177
  %1684 = vmatpush2.bf16.msra.mxu0 %v1176
  %1685 = vmatprep.subr.bf16.mxu0 %v1175
  %1686 = vmatpush2.bf16.msra.mxu0 %v1174
  %1687 = vmatprep.subr.bf16.mxu0 %v1173
  %1688 = vmatpush2.bf16.msra.mxu0 %v1172
  %1689 = vmatprep.subr.bf16.mxu0 %v1171
  %1690 = vmatpush2.bf16.msra.mxu0 %v1170
  %1691 = vmatprep.subr.bf16.mxu0 %v1169
  %1692 = vmatpush2.bf16.msra.mxu0 %v1168
  %1693 = vmatprep.subr.bf16.mxu0 %v1167
  %1694 = vmatpush2.bf16.msra.mxu0 %v1166
  %1695 = vmatprep.subr.bf16.mxu0 %v1165
  %1696 = vmatpush2.bf16.msra.mxu0 %v1164
  %1697 = vmatprep.subr.bf16.mxu0 %v1163
  %1698 = vmatpush2.bf16.msra.mxu0 %v1162
  %1699 = vmatprep.mubr.bf16.mxu0 %v317
  %1700 = vmatmul.mubr.bf16.gmra.mxu0 %v316
  %v1701 = vpop.f32.mrf.mxu0
  %v1702 = vadd.f32 %v1661, %v1701
  %v1703 = vpop.f32.mrf.mxu0
  %v1704 = vadd.f32 %v1663, %v1703
  %v1705 = vpop.f32.mrf.mxu0
  %v1706 = vpop.f32.mrf.mxu0
  %1707 = vdwg.mxu0
  %1708 = vmatprep.subr.bf16.mxu0 %v1193
  %1709 = vmatpush1.bf16.msra.mxu0 %v1192
  %1710 = vmatprep.subr.bf16.mxu0 %v1191
  %1711 = vmatpush1.bf16.msra.mxu0 %v1190
  %1712 = vmatprep.subr.bf16.mxu0 %v1189
  %1713 = vmatpush1.bf16.msra.mxu0 %v1188
  %1714 = vmatprep.subr.bf16.mxu0 %v1187
  %1715 = vmatpush1.bf16.msra.mxu0 %v1186
  %1716 = vmatprep.subr.bf16.mxu0 %v1185
  %1717 = vmatpush1.bf16.msra.mxu0 %v1184
  %1718 = vmatprep.subr.bf16.mxu0 %v1183
  %1719 = vmatpush1.bf16.msra.mxu0 %v1182
  %1720 = vmatprep.subr.bf16.mxu0 %v1181
  %1721 = vmatpush1.bf16.msra.mxu0 %v1180
  %1722 = vmatprep.subr.bf16.mxu0 %v1179
  %1723 = vmatpush1.bf16.msra.mxu0 %v1178
  %1724 = vmatprep.subr.bf16.mxu0 %v1209
  %1725 = vmatpush2.bf16.msra.mxu0 %v1208
  %1726 = vmatprep.subr.bf16.mxu0 %v1207
  %1727 = vmatpush2.bf16.msra.mxu0 %v1206
  %1728 = vmatprep.subr.bf16.mxu0 %v1205
  %1729 = vmatpush2.bf16.msra.mxu0 %v1204
  %1730 = vmatprep.subr.bf16.mxu0 %v1203
  %1731 = vmatpush2.bf16.msra.mxu0 %v1202
  %1732 = vmatprep.subr.bf16.mxu0 %v1201
  %1733 = vmatpush2.bf16.msra.mxu0 %v1200
  %1734 = vmatprep.subr.bf16.mxu0 %v1199
  %1735 = vmatpush2.bf16.msra.mxu0 %v1198
  %1736 = vmatprep.subr.bf16.mxu0 %v1197
  %1737 = vmatpush2.bf16.msra.mxu0 %v1196
  %1738 = vmatprep.subr.bf16.mxu0 %v1195
  %1739 = vmatpush2.bf16.msra.mxu0 %v1194
  %1740 = vmatprep.mubr.bf16.mxu0 %v319
  %1741 = vmatmul.mubr.bf16.gmra.mxu0 %v318
  %v1742 = vpop.f32.mrf.mxu0
  %v1743 = vadd.f32 %v1702, %v1742
  %v1744 = vpop.f32.mrf.mxu0
  %v1745 = vadd.f32 %v1704, %v1744
  %v1746 = vpop.f32.mrf.mxu0
  %v1747 = vpop.f32.mrf.mxu0
  %1748 = vdwg.mxu0
  %1749 = vmatprep.subr.bf16.mxu0 %v1225
  %1750 = vmatpush1.bf16.msra.mxu0 %v1224
  %1751 = vmatprep.subr.bf16.mxu0 %v1223
  %1752 = vmatpush1.bf16.msra.mxu0 %v1222
  %1753 = vmatprep.subr.bf16.mxu0 %v1221
  %1754 = vmatpush1.bf16.msra.mxu0 %v1220
  %1755 = vmatprep.subr.bf16.mxu0 %v1219
  %1756 = vmatpush1.bf16.msra.mxu0 %v1218
  %1757 = vmatprep.subr.bf16.mxu0 %v1217
  %1758 = vmatpush1.bf16.msra.mxu0 %v1216
  %1759 = vmatprep.subr.bf16.mxu0 %v1215
  %1760 = vmatpush1.bf16.msra.mxu0 %v1214
  %1761 = vmatprep.subr.bf16.mxu0 %v1213
  %1762 = vmatpush1.bf16.msra.mxu0 %v1212
  %1763 = vmatprep.subr.bf16.mxu0 %v1211
  %1764 = vmatpush1.bf16.msra.mxu0 %v1210
  %1765 = vmatprep.subr.bf16.mxu0 %v1241
  %1766 = vmatpush2.bf16.msra.mxu0 %v1240
  %1767 = vmatprep.subr.bf16.mxu0 %v1239
  %1768 = vmatpush2.bf16.msra.mxu0 %v1238
  %1769 = vmatprep.subr.bf16.mxu0 %v1237
  %1770 = vmatpush2.bf16.msra.mxu0 %v1236
  %1771 = vmatprep.subr.bf16.mxu0 %v1235
  %1772 = vmatpush2.bf16.msra.mxu0 %v1234
  %1773 = vmatprep.subr.bf16.mxu0 %v1233
  %1774 = vmatpush2.bf16.msra.mxu0 %v1232
  %1775 = vmatprep.subr.bf16.mxu0 %v1231
  %1776 = vmatpush2.bf16.msra.mxu0 %v1230
  %1777 = vmatprep.subr.bf16.mxu0 %v1229
  %1778 = vmatpush2.bf16.msra.mxu0 %v1228
  %1779 = vmatprep.subr.bf16.mxu0 %v1227
  %1780 = vmatpush2.bf16.msra.mxu0 %v1226
  %1781 = vmatprep.mubr.bf16.mxu0 %v321
  %1782 = vmatmul.mubr.bf16.gmra.mxu0 %v320
  %v1783 = vpop.f32.mrf.mxu0
  %v1784 = vadd.f32 %v1743, %v1783
  %v1785 = vpop.f32.mrf.mxu0
  %v1786 = vadd.f32 %v1745, %v1785
  %v1787 = vpop.f32.mrf.mxu0
  %v1788 = vpop.f32.mrf.mxu0
  %1789 = vdwg.mxu0
  %1790 = vmatprep.subr.bf16.mxu0 %v1257
  %1791 = vmatpush1.bf16.msra.mxu0 %v1256
  %1792 = vmatprep.subr.bf16.mxu0 %v1255
  %1793 = vmatpush1.bf16.msra.mxu0 %v1254
  %1794 = vmatprep.subr.bf16.mxu0 %v1253
  %1795 = vmatpush1.bf16.msra.mxu0 %v1252
  %1796 = vmatprep.subr.bf16.mxu0 %v1251
  %1797 = vmatpush1.bf16.msra.mxu0 %v1250
  %1798 = vmatprep.subr.bf16.mxu0 %v1249
  %1799 = vmatpush1.bf16.msra.mxu0 %v1248
  %1800 = vmatprep.subr.bf16.mxu0 %v1247
  %1801 = vmatpush1.bf16.msra.mxu0 %v1246
  %1802 = vmatprep.subr.bf16.mxu0 %v1245
  %1803 = vmatpush1.bf16.msra.mxu0 %v1244
  %1804 = vmatprep.subr.bf16.mxu0 %v1243
  %1805 = vmatpush1.bf16.msra.mxu0 %v1242
  %1806 = vmatprep.subr.bf16.mxu0 %v1273
  %1807 = vmatpush2.bf16.msra.mxu0 %v1272
  %1808 = vmatprep.subr.bf16.mxu0 %v1271
  %1809 = vmatpush2.bf16.msra.mxu0 %v1270
  %1810 = vmatprep.subr.bf16.mxu0 %v1269
  %1811 = vmatpush2.bf16.msra.mxu0 %v1268
  %1812 = vmatprep.subr.bf16.mxu0 %v1267
  %1813 = vmatpush2.bf16.msra.mxu0 %v1266
  %1814 = vmatprep.subr.bf16.mxu0 %v1265
  %1815 = vmatpush2.bf16.msra.mxu0 %v1264
  %1816 = vmatprep.subr.bf16.mxu0 %v1263
  %1817 = vmatpush2.bf16.msra.mxu0 %v1262
  %1818 = vmatprep.subr.bf16.mxu0 %v1261
  %1819 = vmatpush2.bf16.msra.mxu0 %v1260
  %1820 = vmatprep.subr.bf16.mxu0 %v1259
  %1821 = vmatpush2.bf16.msra.mxu0 %v1258
  %1822 = vmatprep.mubr.bf16.mxu0 %v323
  %1823 = vmatmul.mubr.bf16.gmra.mxu0 %v322
  %v1824 = vpop.f32.mrf.mxu0
  %v1825 = vadd.f32 %v1784, %v1824
  %v1826 = vpop.f32.mrf.mxu0
  %v1827 = vadd.f32 %v1786, %v1826
  %v1828 = vpop.f32.mrf.mxu0
  %v1829 = vpop.f32.mrf.mxu0
  %1830 = vdwg.mxu0
  %1831 = vmatprep.subr.bf16.mxu0 %v1289
  %1832 = vmatpush1.bf16.msra.mxu0 %v1288
  %1833 = vmatprep.subr.bf16.mxu0 %v1287
  %1834 = vmatpush1.bf16.msra.mxu0 %v1286
  %1835 = vmatprep.subr.bf16.mxu0 %v1285
  %1836 = vmatpush1.bf16.msra.mxu0 %v1284
  %1837 = vmatprep.subr.bf16.mxu0 %v1283
  %1838 = vmatpush1.bf16.msra.mxu0 %v1282
  %1839 = vmatprep.subr.bf16.mxu0 %v1281
  %1840 = vmatpush1.bf16.msra.mxu0 %v1280
  %1841 = vmatprep.subr.bf16.mxu0 %v1279
  %1842 = vmatpush1.bf16.msra.mxu0 %v1278
  %1843 = vmatprep.subr.bf16.mxu0 %v1277
  %1844 = vmatpush1.bf16.msra.mxu0 %v1276
  %1845 = vmatprep.subr.bf16.mxu0 %v1275
  %1846 = vmatpush1.bf16.msra.mxu0 %v1274
  %1847 = vmatprep.subr.bf16.mxu0 %v1305
  %1848 = vmatpush2.bf16.msra.mxu0 %v1304
  %1849 = vmatprep.subr.bf16.mxu0 %v1303
  %1850 = vmatpush2.bf16.msra.mxu0 %v1302
  %1851 = vmatprep.subr.bf16.mxu0 %v1301
  %1852 = vmatpush2.bf16.msra.mxu0 %v1300
  %1853 = vmatprep.subr.bf16.mxu0 %v1299
  %1854 = vmatpush2.bf16.msra.mxu0 %v1298
  %1855 = vmatprep.subr.bf16.mxu0 %v1297
  %1856 = vmatpush2.bf16.msra.mxu0 %v1296
  %1857 = vmatprep.subr.bf16.mxu0 %v1295
  %1858 = vmatpush2.bf16.msra.mxu0 %v1294
  %1859 = vmatprep.subr.bf16.mxu0 %v1293
  %1860 = vmatpush2.bf16.msra.mxu0 %v1292
  %1861 = vmatprep.subr.bf16.mxu0 %v1291
  %1862 = vmatpush2.bf16.msra.mxu0 %v1290
  %1863 = vmatprep.mubr.bf16.mxu0 %v325
  %1864 = vmatmul.mubr.bf16.gmra.mxu0 %v324
  %v1865 = vpop.f32.mrf.mxu0
  %v1866 = vadd.f32 %v1825, %v1865
  %v1867 = vpop.f32.mrf.mxu0
  %v1868 = vadd.f32 %v1827, %v1867
  %v1869 = vpop.f32.mrf.mxu0
  %v1870 = vpop.f32.mrf.mxu0
  %1871 = vdwg.mxu0
  %1872 = vmatprep.subr.bf16.mxu0 %v1321
  %1873 = vmatpush1.bf16.msra.mxu0 %v1320
  %1874 = vmatprep.subr.bf16.mxu0 %v1319
  %1875 = vmatpush1.bf16.msra.mxu0 %v1318
  %1876 = vmatprep.subr.bf16.mxu0 %v1317
  %1877 = vmatpush1.bf16.msra.mxu0 %v1316
  %1878 = vmatprep.subr.bf16.mxu0 %v1315
  %1879 = vmatpush1.bf16.msra.mxu0 %v1314
  %1880 = vmatprep.subr.bf16.mxu0 %v1313
  %1881 = vmatpush1.bf16.msra.mxu0 %v1312
  %1882 = vmatprep.subr.bf16.mxu0 %v1311
  %1883 = vmatpush1.bf16.msra.mxu0 %v1310
  %1884 = vmatprep.subr.bf16.mxu0 %v1309
  %1885 = vmatpush1.bf16.msra.mxu0 %v1308
  %1886 = vmatprep.subr.bf16.mxu0 %v1307
  %1887 = vmatpush1.bf16.msra.mxu0 %v1306
  %1888 = vmatprep.subr.bf16.mxu0 %v1337
  %1889 = vmatpush2.bf16.msra.mxu0 %v1336
  %1890 = vmatprep.subr.bf16.mxu0 %v1335
  %1891 = vmatpush2.bf16.msra.mxu0 %v1334
  %1892 = vmatprep.subr.bf16.mxu0 %v1333
  %1893 = vmatpush2.bf16.msra.mxu0 %v1332
  %1894 = vmatprep.subr.bf16.mxu0 %v1331
  %1895 = vmatpush2.bf16.msra.mxu0 %v1330
  %1896 = vmatprep.subr.bf16.mxu0 %v1329
  %1897 = vmatpush2.bf16.msra.mxu0 %v1328
  %1898 = vmatprep.subr.bf16.mxu0 %v1327
  %1899 = vmatpush2.bf16.msra.mxu0 %v1326
  %1900 = vmatprep.subr.bf16.mxu0 %v1325
  %1901 = vmatpush2.bf16.msra.mxu0 %v1324
  %1902 = vmatprep.subr.bf16.mxu0 %v1323
  %1903 = vmatpush2.bf16.msra.mxu0 %v1322
  %1904 = vmatprep.mubr.bf16.mxu0 %v327
  %1905 = vmatmul.mubr.bf16.gmra.mxu0 %v326
  %v1906 = vpop.f32.mrf.mxu0
  %v1907 = vadd.f32 %v1866, %v1906
  %v1908 = vpop.f32.mrf.mxu0
  %v1909 = vadd.f32 %v1868, %v1908
  %v1910 = vpop.f32.mrf.mxu0
  %v1911 = vpop.f32.mrf.mxu0
  %1912 = vdwg.mxu0
  %1913 = vmatprep.subr.bf16.mxu0 %v1353
  %1914 = vmatpush1.bf16.msra.mxu0 %v1352
  %1915 = vmatprep.subr.bf16.mxu0 %v1351
  %1916 = vmatpush1.bf16.msra.mxu0 %v1350
  %1917 = vmatprep.subr.bf16.mxu0 %v1349
  %1918 = vmatpush1.bf16.msra.mxu0 %v1348
  %1919 = vmatprep.subr.bf16.mxu0 %v1347
  %1920 = vmatpush1.bf16.msra.mxu0 %v1346
  %1921 = vmatprep.subr.bf16.mxu0 %v1345
  %1922 = vmatpush1.bf16.msra.mxu0 %v1344
  %1923 = vmatprep.subr.bf16.mxu0 %v1343
  %1924 = vmatpush1.bf16.msra.mxu0 %v1342
  %1925 = vmatprep.subr.bf16.mxu0 %v1341
  %1926 = vmatpush1.bf16.msra.mxu0 %v1340
  %1927 = vmatprep.subr.bf16.mxu0 %v1339
  %1928 = vmatpush1.bf16.msra.mxu0 %v1338
  %1929 = vmatprep.subr.bf16.mxu0 %v1369
  %1930 = vmatpush2.bf16.msra.mxu0 %v1368
  %1931 = vmatprep.subr.bf16.mxu0 %v1367
  %1932 = vmatpush2.bf16.msra.mxu0 %v1366
  %1933 = vmatprep.subr.bf16.mxu0 %v1365
  %1934 = vmatpush2.bf16.msra.mxu0 %v1364
  %1935 = vmatprep.subr.bf16.mxu0 %v1363
  %1936 = vmatpush2.bf16.msra.mxu0 %v1362
  %1937 = vmatprep.subr.bf16.mxu0 %v1361
  %1938 = vmatpush2.bf16.msra.mxu0 %v1360
  %1939 = vmatprep.subr.bf16.mxu0 %v1359
  %1940 = vmatpush2.bf16.msra.mxu0 %v1358
  %1941 = vmatprep.subr.bf16.mxu0 %v1357
  %1942 = vmatpush2.bf16.msra.mxu0 %v1356
  %1943 = vmatprep.subr.bf16.mxu0 %v1355
  %1944 = vmatpush2.bf16.msra.mxu0 %v1354
  %1945 = vmatprep.mubr.bf16.mxu0 %v329
  %1946 = vmatmul.mubr.bf16.gmra.mxu0 %v328
  %v1947 = vpop.f32.mrf.mxu0
  %v1948 = vadd.f32 %v1907, %v1947
  %v1949 = vpop.f32.mrf.mxu0
  %v1950 = vadd.f32 %v1909, %v1949
  %v1951 = vpop.f32.mrf.mxu0
  %v1952 = vpop.f32.mrf.mxu0
  %1953 = vdwg.mxu0
  %vm1954 = vcmp.ge.f32.partialorder %v1948, 0.0
  %vm1955 = vcmp.ge.f32.partialorder %v1950, 0.0
  %v1956 = vmul.f32 %v1948, 0.2
  %v1957 = vmul.f32 %v1950, 0.2
  %v1958 = vsel %vm1954, %v1948, %v1956
  %v1959 = vsel %vm1955, %v1950, %v1957
  %1960 = vst [vmem:[%s3] sm:$0xff] %v1958
  %1961 = vst [vmem:[%s3 + $0x8] sm:$0xff] %v1959
  // Predicated region
  $region14: #{discriminator_forward.8} parent=0 // pred_check
    _
  $region15: #{discriminator_forward.8} parent=0 // pred_check_branch
    %1963 = sbr.rel (0) target = $region17
  $region16: #{discriminator_forward.8} parent=0 // pred_region
    _
  $region17: #{discriminator_forward.8} parent=0 // pred_fallthru
    _
  // Predicated region
  $region18: #{discriminator_forward.8} parent=0 // pred_check
    _
  $region19: #{discriminator_forward.8} parent=0 // pred_check_branch
    %1965 = sbr.rel (0) target = $region21
  $region20: #{discriminator_forward.8} parent=0 // pred_region
    _
  $region21: #{discriminator_forward.8} parent=0 // pred_fallthru
    _

</llo_original>
